<compile_context>
chip_gen: v7x
topology: tpu7x:2x2x1
jax: 0.10.0
libtpu: 0.0.40
codegen_flags: <defaults>
</compile_context>

<pallas_src>
import functools
import math

import jax
import jax.numpy as jnp
import numpy as np
from jax.experimental import pallas as pl
from jax.experimental.pallas import tpu as pltpu

LRELU_SLOPE = 0.2


def _round_up(v, m):
    return ((v + m - 1) // m) * m


def _vmem_limit_bytes():
    # Generation-aware scoped-VMEM cap (v7x: 64 MiB/TC, v5e/v6e: 128 MiB).
    try:
        cap = pltpu.get_tpu_info().vmem_capacity_bytes
    except Exception:
        cap = 64 * 1024 * 1024
    return int(min(cap * 3 // 4, 96 * 1024 * 1024))


_VMEM_LIMIT = _vmem_limit_bytes()


# ---------------------------------------------------------------------------
# Fused [InstanceNorm] -> LeakyReLU -> conv3x3 [+ shortcut [* scale]] kernel
# ---------------------------------------------------------------------------
def _fused_conv3x3_kernel(*refs, normalize, has_shortcut, learned_sc,
                          eps, slope, inv_hw, H, W, wp, Lout, Lin, scale):
    """Per-batch-element fused kernel (channels on sublanes, pixels on lanes).

    x_ref holds the zero-padded image row-flattened to (Cin, Lin): lane index
    r = h_pad*wp + w_pad.  Tap t=(ky,kx) of the 3x3 conv is the lane-shifted
    slice x[:, d:d+Lout] with d = ky*wp + kx; the 9 taps are stacked along the
    contraction dim into a (9*Cin, Lout) bf16 scratch and contracted against
    the (Cout, 9*Cin) weight in ONE MXU matmul.  Bias, shortcut (incl. the
    learned 1x1 conv) and the 1/sqrt(2) scale are folded into the single final
    store; valid output pixel (h, w) lives at lane h*wp + w.
    """
    it = iter(refs)
    x_ref = next(it)
    if normalize:
        g_ref = next(it)
        bt_ref = next(it)
    w_ref = next(it)
    b_ref = next(it)
    if has_shortcut:
        sc_ref = next(it)
        if learned_sc:
            wsc_ref = next(it)
    o_ref = next(it)
    xs_ref = next(it)                                   # (9*Cin, Lout) bf16 scratch

    x = x_ref[0].astype(jnp.float32)                    # (Cin, Lin)
    if normalize:
        # single-pass biased statistics; zero pad lanes contribute nothing.
        mean = jnp.sum(x, axis=1, keepdims=True) * inv_hw
        ex2 = jnp.sum(x * x, axis=1, keepdims=True) * inv_hw
        var = jnp.maximum(ex2 - mean * mean, 0.0)       # clamp cancellation
        x = (x - mean) * jax.lax.rsqrt(var + eps)
        x = x * g_ref[...] + bt_ref[...]                # (Cin,1) affine params
    x = jnp.where(x >= 0.0, x, x * slope)               # fused pre-activation
    if normalize:
        # Re-zero the spatial zero-pad lanes (mask built in-kernel from iota;
        # float floor trick avoids vector integer div).
        r = jax.lax.broadcasted_iota(jnp.int32, (1, Lin), 1).astype(jnp.float32)
        row = jnp.floor((r + 0.5) * (1.0 / wp))
        col = r - row * float(wp)
        interior = ((row >= 1.0) & (row <= float(H)) &
                    (col >= 1.0) & (col <= float(W)))
        x = x * interior.astype(jnp.float32)
    xb = x.astype(jnp.bfloat16)                         # bf16 into the MXU

    Cin = x.shape[0]
    for ky in range(3):                                 # build tap-stacked K
        for kx in range(3):
            t = ky * 3 + kx
            d = ky * wp + kx
            xs_ref[t * Cin:(t + 1) * Cin, :] = xb[:, d:d + Lout]

    # ONE matmul, K = 9*Cin, f32 accumulation; result (Cout, Lout) lane-dense.
    acc = jnp.dot(w_ref[...], xs_ref[...], preferred_element_type=jnp.float32)
    acc = acc + b_ref[...]                              # fold bias (Cout, 1)

    if has_shortcut:
        if learned_sc:
            acc = acc + jnp.dot(wsc_ref[...], sc_ref[0].astype(jnp.bfloat16),
                                preferred_element_type=jnp.float32)
        else:
            acc = acc + sc_ref[0].astype(jnp.float32)
    if scale is not None:
        acc = acc * scale
    o_ref[0] = acc                                      # single store


def fused_norm_act_conv3x3(x, w, b, *, gamma=None, beta=None, normalize=False,
                           shortcut=None, w_sc=None, scale=None,
                           eps=1e-5, slope=LRELU_SLOPE):
    """NCHW fused [IN] -> LeakyReLU -> conv3x3(s1, p1)  [+ shortcut [@ w_sc]] [* scale].

    x        : (N, Cin, H, W) float32
    w        : (3, 3, Cin, Cout) HWIO      b : (Cout,)
    shortcut : optional (N, Csc, H, W) tensor added in the epilogue
               (1x1-conv'ed with w_sc (Csc, Cout) if given).
    Returns (N, Cout, H, W) float32.
    """
    N, Cin, H, W = x.shape
    Cout = w.shape[-1]
    wp = W + 2
    Lout = _round_up(H * wp, 128)                       # lane-dense output width
    Lin = _round_up(max((H + 2) * wp, 2 * wp + 2 + Lout), 128)

    def to_in_frame(a):                                 # (N,C,H,W) -> (N,C,Lin)
        ap = jnp.pad(a.astype(jnp.float32), ((0, 0), (0, 0), (1, 1), (1, 1)))
        ap = ap.reshape(N, a.shape[1], (H + 2) * wp)
        return jnp.pad(ap, ((0, 0), (0, 0), (0, Lin - (H + 2) * wp)))

    def to_out_frame(a):                                # (N,C,H,W) -> (N,C,Lout)
        ap = jnp.pad(a.astype(jnp.float32), ((0, 0), (0, 0), (0, 0), (0, wp - W)))
        ap = ap.reshape(N, a.shape[1], H * wp)
        return jnp.pad(ap, ((0, 0), (0, 0), (0, Lout - H * wp)))

    inputs = [to_in_frame(x)]
    in_specs = [pl.BlockSpec((1, Cin, Lin), lambda n: (n, 0, 0))]
    if normalize:
        inputs += [gamma.reshape(Cin, 1).astype(jnp.float32),
                   beta.reshape(Cin, 1).astype(jnp.float32)]
        in_specs += [pl.BlockSpec((Cin, 1), lambda n: (0, 0)),
                     pl.BlockSpec((Cin, 1), lambda n: (0, 0))]

    # (Cout, 9*Cin) weight: row o, col (ky*3+kx)*Cin + i  ==  w[ky, kx, i, o]
    w2 = jnp.transpose(w, (3, 0, 1, 2)).reshape(Cout, 9 * Cin).astype(jnp.bfloat16)
    inputs += [w2, b.reshape(Cout, 1).astype(jnp.float32)]
    in_specs += [pl.BlockSpec((Cout, 9 * Cin), lambda n: (0, 0)),
                 pl.BlockSpec((Cout, 1), lambda n: (0, 0))]

    has_shortcut = shortcut is not None
    learned_sc = w_sc is not None
    Csc = 0
    if has_shortcut:
        Csc = shortcut.shape[1]
        inputs.append(to_out_frame(shortcut))
        in_specs.append(pl.BlockSpec((1, Csc, Lout), lambda n: (n, 0, 0)))
        if learned_sc:
            inputs.append(jnp.transpose(w_sc).astype(jnp.bfloat16))   # (Cout, Csc)
            in_specs.append(pl.BlockSpec((Cout, Csc), lambda n: (0, 0)))

    kernel = functools.partial(
        _fused_conv3x3_kernel, normalize=normalize, has_shortcut=has_shortcut,
        learned_sc=learned_sc, eps=eps, slope=slope, inv_hw=1.0 / (H * W),
        H=H, W=W, wp=wp, Lout=Lout, Lin=Lin, scale=scale)

    flops = 2 * N * Lout * (9 * Cin) * Cout
    bytes_acc = N * Cin * Lin * 4 + N * Cout * Lout * 4 + Cout * 9 * Cin * 2
    if has_shortcut:
        bytes_acc += N * Csc * Lout * 4
        if learned_sc:
            flops += 2 * N * Lout * Csc * Cout

    out = pl.pallas_call(
        kernel,
        out_shape=jax.ShapeDtypeStruct((N, Cout, Lout), jnp.float32),
        grid=(N,),
        in_specs=in_specs,
        out_specs=pl.BlockSpec((1, Cout, Lout), lambda n: (n, 0, 0)),
        scratch_shapes=[pltpu.VMEM((9 * Cin, Lout), jnp.bfloat16)],
        compiler_params=pltpu.CompilerParams(
            dimension_semantics=("parallel",),
            vmem_limit_bytes=_VMEM_LIMIT),
        cost_estimate=pl.CostEstimate(
            flops=int(flops),
            transcendentals=int(N * Cin) if normalize else 0,
            bytes_accessed=int(bytes_acc)),
    )(*inputs)

    # valid output pixel (h, w) lives at lane  h*wp + w
    y = out[:, :, :H * wp].reshape(N, Cout, H, wp)[:, :, :, :W]
    return y


# ---------------------------------------------------------------------------
# JAX glue (pure data movement)
# ---------------------------------------------------------------------------
def avg_pool2(x):                                       # NCHW 2x2 average pool
    N, C, H, W = x.shape
    return x.reshape(N, C, H // 2, 2, W // 2, 2).mean(axis=(3, 5))


# ---------------------------------------------------------------------------
# ResBlk (mirrors the PyTorch module; NCHW end-to-end, no transposes)
# ---------------------------------------------------------------------------
class ResBlk:
    def __init__(self, key, dim_in, dim_out, normalize=False, downsample=False):
        self.dim_in, self.dim_out = dim_in, dim_out
        self.normalize = normalize
        self.downsample = downsample
        self.learned_sc = dim_in != dim_out

        ks = list(jax.random.split(key, 8))
        s1 = 1.0 / math.sqrt(9 * dim_in)
        self.w1 = s1 * jax.random.normal(ks[0], (3, 3, dim_in, dim_in), jnp.float32)
        self.b1 = 0.01 * jax.random.normal(ks[1], (dim_in,), jnp.float32)
        self.w2 = s1 * jax.random.normal(ks[2], (3, 3, dim_in, dim_out), jnp.float32)
        self.b2 = 0.01 * jax.random.normal(ks[3], (dim_out,), jnp.float32)
        if normalize:
            self.g1 = 1.0 + 0.1 * jax.random.normal(ks[4], (dim_in,), jnp.float32)
            self.bt1 = 0.1 * jax.random.normal(ks[5], (dim_in,), jnp.float32)
            self.g2 = 1.0 + 0.1 * jax.random.normal(ks[6], (dim_in,), jnp.float32)
            self.bt2 = 0.1 * jax.random.normal(ks[7], (dim_in,), jnp.float32)
        if self.learned_sc:
            self.wsc = (1.0 / math.sqrt(dim_in)) * jax.random.normal(
                jax.random.fold_in(key, 99), (dim_in, dim_out), jnp.float32)

    def __call__(self, x):                              # (N, dim_in, H, W)
        # residual, first half:  [IN1] -> lrelu -> conv1   (one fused kernel)
        h = fused_norm_act_conv3x3(
            x, self.w1, self.b1,
            gamma=self.g1 if self.normalize else None,
            beta=self.bt1 if self.normalize else None,
            normalize=self.normalize)
        if self.downsample:
            h = avg_pool2(h)

        # shortcut input at conv2's resolution; its 1x1 conv (if any) is fused
        # into conv2's epilogue (avg-pool and 1x1 conv commute).
        sx = avg_pool2(x) if self.downsample else x

        # residual second half + shortcut add + 1/sqrt(2):  one fused kernel
        out = fused_norm_act_conv3x3(
            h, self.w2, self.b2,
            gamma=self.g2 if self.normalize else None,
            beta=self.bt2 if self.normalize else None,
            normalize=self.normalize,
            shortcut=sx,
            w_sc=self.wsc if self.learned_sc else None,
            scale=1.0 / math.sqrt(2.0))
        return out


# ---------------------------------------------------------------------------
# Pure-JAX reference (mirrors the PyTorch forward exactly)
# ---------------------------------------------------------------------------
def _ref_resblk(blk, x_nchw):
    x = jnp.transpose(x_nchw, (0, 2, 3, 1)).astype(jnp.float32)

    def conv3x3(a, w, b):
        return jax.lax.conv_general_dilated(
            a, w, window_strides=(1, 1), padding=((1, 1), (1, 1)),
            dimension_numbers=("NHWC", "HWIO", "NHWC")) + b

    def inorm(a, g, bt, eps=1e-5):
        mean = a.mean(axis=(1, 2), keepdims=True)
        var = ((a - mean) ** 2).mean(axis=(1, 2), keepdims=True)
        return (a - mean) * jax.lax.rsqrt(var + eps) * g + bt

    def lrelu(a):
        return jnp.where(a >= 0, a, LRELU_SLOPE * a)

    def pool(a):
        N, H, W, C = a.shape
        return a.reshape(N, H // 2, 2, W // 2, 2, C).mean(axis=(2, 4))

    r = x
    if blk.normalize:
        r = inorm(r, blk.g1, blk.bt1)
    r = lrelu(r)
    r = conv3x3(r, blk.w1, blk.b1)
    if blk.downsample:
        r = pool(r)
    if blk.normalize:
        r = inorm(r, blk.g2, blk.bt2)
    r = lrelu(r)
    r = conv3x3(r, blk.w2, blk.b2)

    s = x
    if blk.learned_sc:
        s = jnp.einsum("nhwc,cd->nhwd", s, blk.wsc)
    if blk.downsample:
        s = pool(s)

    out = (s + r) / math.sqrt(2.0)
    return jnp.transpose(out, (0, 3, 1, 2))


if __name__ == "__main__":
    key = jax.random.PRNGKey(0)
    x = jax.random.normal(jax.random.fold_in(key, 1), (2, 32, 16, 16), jnp.float32)

    # Two configurations exercising every branch of ResBlk.
    blk_a = ResBlk(jax.random.fold_in(key, 2), 32, 64, normalize=True, downsample=True)
    blk_b = ResBlk(jax.random.fold_in(key, 3), 32, 32, normalize=False, downsample=False)

    fwd = jax.jit(lambda t: (blk_a(t), blk_b(t)))
    out_a, out_b = fwd(x)
    jax.block_until_ready((out_a, out_b))

    assert out_a.shape == (2, 64, 8, 8)
    assert out_b.shape == (2, 32, 16, 16)

    # Loose tolerance: the Pallas path feeds the MXU bf16 (f32 accumulation).
    ref_a = _ref_resblk(blk_a, x)
    ref_b = _ref_resblk(blk_b, x)
    np.testing.assert_allclose(np.asarray(out_a), np.asarray(ref_a), rtol=7e-2, atol=7e-2)
    np.testing.assert_allclose(np.asarray(out_b), np.asarray(ref_b), rtol=7e-2, atol=7e-2)

    print("KERNEL_OK")
</pallas_src>

<mosaic_0001>
module attributes {stable_mosaic.version = 11 : i64} {
  func.func @_fused_conv3x3_kernel(%arg0: i32, %arg1: memref<1x32x512xf32, #tpu.memory_space<vmem>>, %arg2: memref<32x288xbf16, #tpu.memory_space<vmem>>, %arg3: memref<32x1xf32, #tpu.memory_space<vmem>>, %arg4: memref<1x32x384xf32, #tpu.memory_space<vmem>>, %arg5: memref<288x384xbf16, #tpu.memory_space<vmem>>) attributes {dimension_semantics = [#tpu.dimension_semantics<parallel>], iteration_bounds = array<i64: 2>, scalar_prefetch = 0 : i64, scratch_operands = 1 : i64, tpu.core_type = #tpu.core_type<tc>, window_params = [{transform_indices = @transform_0, window_bounds = array<i64: 1, 32, 512>}, {pipeline_mode = #tpu.pipeline_mode<synchronous>, transform_indices = @transform_1, window_bounds = array<i64: 32, 288>}, {pipeline_mode = #tpu.pipeline_mode<synchronous>, transform_indices = @transform_2, window_bounds = array<i64: 32, 1>}, {transform_indices = @transform_3, window_bounds = array<i64: 1, 32, 384>}]} {
    %c0 = arith.constant 0 : index
    %c0_0 = arith.constant 0 : index
    %c0_1 = arith.constant 0 : index
    %0 = vector.load %arg1[%c0, %c0_0, %c0_1] : memref<1x32x512xf32, #tpu.memory_space<vmem>>, vector<1x32x512xf32>
    %1 = vector.shape_cast %0 : vector<1x32x512xf32> to vector<32x512xf32>
    %cst = arith.constant 0.000000e+00 : f32
    %2 = vector.broadcast %cst : f32 to vector<32x512xf32>
    %3 = arith.cmpf oge, %1, %2 : vector<32x512xf32>
    %cst_2 = arith.constant 2.000000e-01 : f32
    %4 = vector.broadcast %cst_2 : f32 to vector<32x512xf32>
    %5 = arith.mulf %1, %4 : vector<32x512xf32>
    %6 = arith.select %3, %1, %5 : vector<32x512xi1>, vector<32x512xf32>
    %7 = arith.truncf %6 : vector<32x512xf32> to vector<32x512xbf16>
    %8 = vector.extract_strided_slice %7 {offsets = [0, 0], sizes = [32, 384], strides = [1, 1]} : vector<32x512xbf16> to vector<32x384xbf16>
    %c0_3 = arith.constant 0 : index
    %c0_4 = arith.constant 0 : index
    %9 = vector.load %arg5[%c0_3, %c0_4] : memref<288x384xbf16, #tpu.memory_space<vmem>>, vector<32x384xbf16>
    tpu.vector_store %arg5[%c0_3, %c0_4], %8 {strides = array<i32>} : memref<288x384xbf16, #tpu.memory_space<vmem>>, vector<32x384xbf16>,
    %10 = vector.extract_strided_slice %7 {offsets = [0, 1], sizes = [32, 384], strides = [1, 1]} : vector<32x512xbf16> to vector<32x384xbf16>
    %c32 = arith.constant 32 : index
    %c0_5 = arith.constant 0 : index
    %11 = vector.load %arg5[%c32, %c0_5] : memref<288x384xbf16, #tpu.memory_space<vmem>>, vector<32x384xbf16>
    tpu.vector_store %arg5[%c32, %c0_5], %10 {strides = array<i32>} : memref<288x384xbf16, #tpu.memory_space<vmem>>, vector<32x384xbf16>,
    %12 = vector.extract_strided_slice %7 {offsets = [0, 2], sizes = [32, 384], strides = [1, 1]} : vector<32x512xbf16> to vector<32x384xbf16>
    %c64 = arith.constant 64 : index
    %c0_6 = arith.constant 0 : index
    %13 = vector.load %arg5[%c64, %c0_6] : memref<288x384xbf16, #tpu.memory_space<vmem>>, vector<32x384xbf16>
    tpu.vector_store %arg5[%c64, %c0_6], %12 {strides = array<i32>} : memref<288x384xbf16, #tpu.memory_space<vmem>>, vector<32x384xbf16>,
    %14 = vector.extract_strided_slice %7 {offsets = [0, 18], sizes = [32, 384], strides = [1, 1]} : vector<32x512xbf16> to vector<32x384xbf16>
    %c96 = arith.constant 96 : index
    %c0_7 = arith.constant 0 : index
    %15 = vector.load %arg5[%c96, %c0_7] : memref<288x384xbf16, #tpu.memory_space<vmem>>, vector<32x384xbf16>
    tpu.vector_store %arg5[%c96, %c0_7], %14 {strides = array<i32>} : memref<288x384xbf16, #tpu.memory_space<vmem>>, vector<32x384xbf16>,
    %16 = vector.extract_strided_slice %7 {offsets = [0, 19], sizes = [32, 384], strides = [1, 1]} : vector<32x512xbf16> to vector<32x384xbf16>
    %c128 = arith.constant 128 : index
    %c0_8 = arith.constant 0 : index
    %17 = vector.load %arg5[%c128, %c0_8] : memref<288x384xbf16, #tpu.memory_space<vmem>>, vector<32x384xbf16>
    tpu.vector_store %arg5[%c128, %c0_8], %16 {strides = array<i32>} : memref<288x384xbf16, #tpu.memory_space<vmem>>, vector<32x384xbf16>,
    %18 = vector.extract_strided_slice %7 {offsets = [0, 20], sizes = [32, 384], strides = [1, 1]} : vector<32x512xbf16> to vector<32x384xbf16>
    %c160 = arith.constant 160 : index
    %c0_9 = arith.constant 0 : index
    %19 = vector.load %arg5[%c160, %c0_9] : memref<288x384xbf16, #tpu.memory_space<vmem>>, vector<32x384xbf16>
    tpu.vector_store %arg5[%c160, %c0_9], %18 {strides = array<i32>} : memref<288x384xbf16, #tpu.memory_space<vmem>>, vector<32x384xbf16>,
    %20 = vector.extract_strided_slice %7 {offsets = [0, 36], sizes = [32, 384], strides = [1, 1]} : vector<32x512xbf16> to vector<32x384xbf16>
    %c192 = arith.constant 192 : index
    %c0_10 = arith.constant 0 : index
    %21 = vector.load %arg5[%c192, %c0_10] : memref<288x384xbf16, #tpu.memory_space<vmem>>, vector<32x384xbf16>
    tpu.vector_store %arg5[%c192, %c0_10], %20 {strides = array<i32>} : memref<288x384xbf16, #tpu.memory_space<vmem>>, vector<32x384xbf16>,
    %22 = vector.extract_strided_slice %7 {offsets = [0, 37], sizes = [32, 384], strides = [1, 1]} : vector<32x512xbf16> to vector<32x384xbf16>
    %c224 = arith.constant 224 : index
    %c0_11 = arith.constant 0 : index
    %23 = vector.load %arg5[%c224, %c0_11] : memref<288x384xbf16, #tpu.memory_space<vmem>>, vector<32x384xbf16>
    tpu.vector_store %arg5[%c224, %c0_11], %22 {strides = array<i32>} : memref<288x384xbf16, #tpu.memory_space<vmem>>, vector<32x384xbf16>,
    %24 = vector.extract_strided_slice %7 {offsets = [0, 38], sizes = [32, 384], strides = [1, 1]} : vector<32x512xbf16> to vector<32x384xbf16>
    %c256 = arith.constant 256 : index
    %c0_12 = arith.constant 0 : index
    %25 = vector.load %arg5[%c256, %c0_12] : memref<288x384xbf16, #tpu.memory_space<vmem>>, vector<32x384xbf16>
    tpu.vector_store %arg5[%c256, %c0_12], %24 {strides = array<i32>} : memref<288x384xbf16, #tpu.memory_space<vmem>>, vector<32x384xbf16>,
    %c0_13 = arith.constant 0 : index
    %c0_14 = arith.constant 0 : index
    %26 = vector.load %arg2[%c0_13, %c0_14] : memref<32x288xbf16, #tpu.memory_space<vmem>>, vector<32x288xbf16>
    %c0_15 = arith.constant 0 : index
    %c0_16 = arith.constant 0 : index
    %27 = vector.load %arg5[%c0_15, %c0_16] : memref<288x384xbf16, #tpu.memory_space<vmem>>, vector<288x384xbf16>
    %cst_17 = arith.constant dense<0.000000e+00> : vector<32x384xf32>
    %28 = tpu.matmul %26, %27, %cst_17 {dimension_numbers = #tpu.dot_dimension_numbers<[1], [0], [0], [1], [0, 0, 1, 1], [], []>} : vector<32x288xbf16>, vector<288x384xbf16>, vector<32x384xf32> -> vector<32x384xf32>
    %c0_18 = arith.constant 0 : index
    %c0_19 = arith.constant 0 : index
    %29 = vector.load %arg3[%c0_18, %c0_19] : memref<32x1xf32, #tpu.memory_space<vmem>>, vector<32x1xf32>
    %30 = vector.broadcast %29 : vector<32x1xf32> to vector<32x384xf32>
    %31 = arith.addf %28, %30 : vector<32x384xf32>
    %c0_20 = arith.constant 0 : index
    %c0_21 = arith.constant 0 : index
    %c0_22 = arith.constant 0 : index
    %32 = vector.load %arg4[%c0_20, %c0_21, %c0_22] : memref<1x32x384xf32, #tpu.memory_space<vmem>>, vector<1x32x384xf32>
    %33 = vector.shape_cast %32 : vector<1x32x384xf32> to vector<32x384xf32>
    %34 = vector.shape_cast %31 : vector<32x384xf32> to vector<1x32x384xf32>
    tpu.vector_store %arg4[%c0_20, %c0_21, %c0_22], %34 {strides = array<i32>} : memref<1x32x384xf32, #tpu.memory_space<vmem>>, vector<1x32x384xf32>,
    return
  }
  func.func @transform_0(%arg0: i32) -> (i32, i32, i32) {
    %c0_i32 = arith.constant 0 : i32
    %c0_i32_0 = arith.constant 0 : i32
    %c0_i32_1 = arith.constant 0 : i32
    return %arg0, %c0_i32, %c0_i32_0 : i32, i32, i32
  }
  func.func @transform_1(%arg0: i32) -> (i32, i32) {
    %c0_i32 = arith.constant 0 : i32
    %c0_i32_0 = arith.constant 0 : i32
    %c0_i32_1 = arith.constant 0 : i32
    return %c0_i32, %c0_i32_0 : i32, i32
  }
  func.func @transform_2(%arg0: i32) -> (i32, i32) {
    %c0_i32 = arith.constant 0 : i32
    %c0_i32_0 = arith.constant 0 : i32
    %c0_i32_1 = arith.constant 0 : i32
    return %c0_i32, %c0_i32_0 : i32, i32
  }
  func.func @transform_3(%arg0: i32) -> (i32, i32, i32) {
    %c0_i32 = arith.constant 0 : i32
    %c0_i32_0 = arith.constant 0 : i32
    %c0_i32_1 = arith.constant 0 : i32
    return %arg0, %c0_i32, %c0_i32_0 : i32, i32, i32
  }
}

module attributes {stable_mosaic.version = 11 : i64} {
  func.func @_fused_conv3x3_kernel(%arg0: i32, %arg1: memref<1x32x512xf32, #tpu.memory_space<vmem>>, %arg2: memref<32x1xf32, #tpu.memory_space<vmem>>, %arg3: memref<32x1xf32, #tpu.memory_space<vmem>>, %arg4: memref<32x288xbf16, #tpu.memory_space<vmem>>, %arg5: memref<32x1xf32, #tpu.memory_space<vmem>>, %arg6: memref<1x32x384xf32, #tpu.memory_space<vmem>>, %arg7: memref<288x384xbf16, #tpu.memory_space<vmem>>) attributes {dimension_semantics = [#tpu.dimension_semantics<parallel>], iteration_bounds = array<i64: 2>, scalar_prefetch = 0 : i64, scratch_operands = 1 : i64, tpu.core_type = #tpu.core_type<tc>, window_params = [{transform_indices = @transform_0, window_bounds = array<i64: 1, 32, 512>}, {pipeline_mode = #tpu.pipeline_mode<synchronous>, transform_indices = @transform_1, window_bounds = array<i64: 32, 1>}, {pipeline_mode = #tpu.pipeline_mode<synchronous>, transform_indices = @transform_2, window_bounds = array<i64: 32, 1>}, {pipeline_mode = #tpu.pipeline_mode<synchronous>, transform_indices = @transform_3, window_bounds = array<i64: 32, 288>}, {pipeline_mode = #tpu.pipeline_mode<synchronous>, transform_indices = @transform_4, window_bounds = array<i64: 32, 1>}, {transform_indices = @transform_5, window_bounds = array<i64: 1, 32, 384>}]} {
    %c0 = arith.constant 0 : index
    %c0_0 = arith.constant 0 : index
    %c0_1 = arith.constant 0 : index
    %0 = vector.load %arg1[%c0, %c0_0, %c0_1] : memref<1x32x512xf32, #tpu.memory_space<vmem>>, vector<1x32x512xf32>
    %1 = vector.shape_cast %0 : vector<1x32x512xf32> to vector<32x512xf32>
    %cst = arith.constant dense<0.000000e+00> : vector<32xf32>
    %2 = vector.multi_reduction <add>, %1, %cst [1] : vector<32x512xf32> to vector<32xf32>
    %3 = vector.shape_cast %2 : vector<32xf32> to vector<32x1xf32>
    %cst_2 = arith.constant 3.906250e-03 : f32
    %4 = vector.broadcast %cst_2 : f32 to vector<32x1xf32>
    %5 = arith.mulf %3, %4 : vector<32x1xf32>
    %6 = arith.mulf %1, %1 : vector<32x512xf32>
    %cst_3 = arith.constant dense<0.000000e+00> : vector<32xf32>
    %7 = vector.multi_reduction <add>, %6, %cst_3 [1] : vector<32x512xf32> to vector<32xf32>
    %8 = vector.shape_cast %7 : vector<32xf32> to vector<32x1xf32>
    %cst_4 = arith.constant 3.906250e-03 : f32
    %9 = vector.broadcast %cst_4 : f32 to vector<32x1xf32>
    %10 = arith.mulf %8, %9 : vector<32x1xf32>
    %11 = arith.mulf %5, %5 : vector<32x1xf32>
    %12 = arith.subf %10, %11 : vector<32x1xf32>
    %cst_5 = arith.constant 0.000000e+00 : f32
    %13 = vector.broadcast %cst_5 : f32 to vector<32x1xf32>
    %14 = arith.maximumf %12, %13 : vector<32x1xf32>
    %15 = vector.broadcast %5 : vector<32x1xf32> to vector<32x512xf32>
    %16 = arith.subf %1, %15 : vector<32x512xf32>
    %cst_6 = arith.constant 9.99999974E-6 : f32
    %17 = vector.broadcast %cst_6 : f32 to vector<32x1xf32>
    %18 = arith.addf %14, %17 : vector<32x1xf32>
    %19 = math.rsqrt %18 : vector<32x1xf32>
    %20 = vector.broadcast %19 : vector<32x1xf32> to vector<32x512xf32>
    %21 = arith.mulf %16, %20 : vector<32x512xf32>
    %c0_7 = arith.constant 0 : index
    %c0_8 = arith.constant 0 : index
    %22 = vector.load %arg2[%c0_7, %c0_8] : memref<32x1xf32, #tpu.memory_space<vmem>>, vector<32x1xf32>
    %23 = vector.broadcast %22 : vector<32x1xf32> to vector<32x512xf32>
    %24 = arith.mulf %21, %23 : vector<32x512xf32>
    %c0_9 = arith.constant 0 : index
    %c0_10 = arith.constant 0 : index
    %25 = vector.load %arg3[%c0_9, %c0_10] : memref<32x1xf32, #tpu.memory_space<vmem>>, vector<32x1xf32>
    %26 = vector.broadcast %25 : vector<32x1xf32> to vector<32x512xf32>
    %27 = arith.addf %24, %26 : vector<32x512xf32>
    %cst_11 = arith.constant 0.000000e+00 : f32
    %28 = vector.broadcast %cst_11 : f32 to vector<32x512xf32>
    %29 = arith.cmpf oge, %27, %28 : vector<32x512xf32>
    %cst_12 = arith.constant 2.000000e-01 : f32
    %30 = vector.broadcast %cst_12 : f32 to vector<32x512xf32>
    %31 = arith.mulf %27, %30 : vector<32x512xf32>
    %32 = arith.select %29, %27, %31 : vector<32x512xi1>, vector<32x512xf32>
    %33 = tpu.iota {dimensions = array<i32: 1>} : vector<1x512xi32>
    %34 = arith.sitofp %33 : vector<1x512xi32> to vector<1x512xf32>
    %cst_13 = arith.constant 5.000000e-01 : f32
    %35 = vector.broadcast %cst_13 : f32 to vector<1x512xf32>
    %36 = arith.addf %34, %35 : vector<1x512xf32>
    %cst_14 = arith.constant 0.055555556 : f32
    %37 = vector.broadcast %cst_14 : f32 to vector<1x512xf32>
    %38 = arith.mulf %36, %37 : vector<1x512xf32>
    %39 = math.floor %38 : vector<1x512xf32>
    %cst_15 = arith.constant 1.800000e+01 : f32
    %40 = vector.broadcast %cst_15 : f32 to vector<1x512xf32>
    %41 = arith.mulf %39, %40 : vector<1x512xf32>
    %42 = arith.subf %34, %41 : vector<1x512xf32>
    %cst_16 = arith.constant 1.000000e+00 : f32
    %43 = vector.broadcast %cst_16 : f32 to vector<1x512xf32>
    %44 = arith.cmpf oge, %39, %43 : vector<1x512xf32>
    %cst_17 = arith.constant 1.600000e+01 : f32
    %45 = vector.broadcast %cst_17 : f32 to vector<1x512xf32>
    %46 = arith.cmpf ole, %39, %45 : vector<1x512xf32>
    %47 = arith.andi %44, %46 : vector<1x512xi1>
    %cst_18 = arith.constant 1.000000e+00 : f32
    %48 = vector.broadcast %cst_18 : f32 to vector<1x512xf32>
    %49 = arith.cmpf oge, %42, %48 : vector<1x512xf32>
    %50 = arith.andi %47, %49 : vector<1x512xi1>
    %cst_19 = arith.constant 1.600000e+01 : f32
    %51 = vector.broadcast %cst_19 : f32 to vector<1x512xf32>
    %52 = arith.cmpf ole, %42, %51 : vector<1x512xf32>
    %53 = arith.andi %50, %52 : vector<1x512xi1>
    %54 = arith.extui %53 : vector<1x512xi1> to vector<1x512xi32>
    %55 = arith.sitofp %54 : vector<1x512xi32> to vector<1x512xf32>
    %56 = vector.broadcast %55 : vector<1x512xf32> to vector<32x512xf32>
    %57 = arith.mulf %32, %56 : vector<32x512xf32>
    %58 = arith.truncf %57 : vector<32x512xf32> to vector<32x512xbf16>
    %59 = vector.extract_strided_slice %58 {offsets = [0, 0], sizes = [32, 384], strides = [1, 1]} : vector<32x512xbf16> to vector<32x384xbf16>
    %c0_20 = arith.constant 0 : index
    %c0_21 = arith.constant 0 : index
    %60 = vector.load %arg7[%c0_20, %c0_21] : memref<288x384xbf16, #tpu.memory_space<vmem>>, vector<32x384xbf16>
    tpu.vector_store %arg7[%c0_20, %c0_21], %59 {strides = array<i32>} : memref<288x384xbf16, #tpu.memory_space<vmem>>, vector<32x384xbf16>,
    %61 = vector.extract_strided_slice %58 {offsets = [0, 1], sizes = [32, 384], strides = [1, 1]} : vector<32x512xbf16> to vector<32x384xbf16>
    %c32 = arith.constant 32 : index
    %c0_22 = arith.constant 0 : index
    %62 = vector.load %arg7[%c32, %c0_22] : memref<288x384xbf16, #tpu.memory_space<vmem>>, vector<32x384xbf16>
    tpu.vector_store %arg7[%c32, %c0_22], %61 {strides = array<i32>} : memref<288x384xbf16, #tpu.memory_space<vmem>>, vector<32x384xbf16>,
    %63 = vector.extract_strided_slice %58 {offsets = [0, 2], sizes = [32, 384], strides = [1, 1]} : vector<32x512xbf16> to vector<32x384xbf16>
    %c64 = arith.constant 64 : index
    %c0_23 = arith.constant 0 : index
    %64 = vector.load %arg7[%c64, %c0_23] : memref<288x384xbf16, #tpu.memory_space<vmem>>, vector<32x384xbf16>
    tpu.vector_store %arg7[%c64, %c0_23], %63 {strides = array<i32>} : memref<288x384xbf16, #tpu.memory_space<vmem>>, vector<32x384xbf16>,
    %65 = vector.extract_strided_slice %58 {offsets = [0, 18], sizes = [32, 384], strides = [1, 1]} : vector<32x512xbf16> to vector<32x384xbf16>
    %c96 = arith.constant 96 : index
    %c0_24 = arith.constant 0 : index
    %66 = vector.load %arg7[%c96, %c0_24] : memref<288x384xbf16, #tpu.memory_space<vmem>>, vector<32x384xbf16>
    tpu.vector_store %arg7[%c96, %c0_24], %65 {strides = array<i32>} : memref<288x384xbf16, #tpu.memory_space<vmem>>, vector<32x384xbf16>,
    %67 = vector.extract_strided_slice %58 {offsets = [0, 19], sizes = [32, 384], strides = [1, 1]} : vector<32x512xbf16> to vector<32x384xbf16>
    %c128 = arith.constant 128 : index
    %c0_25 = arith.constant 0 : index
    %68 = vector.load %arg7[%c128, %c0_25] : memref<288x384xbf16, #tpu.memory_space<vmem>>, vector<32x384xbf16>
    tpu.vector_store %arg7[%c128, %c0_25], %67 {strides = array<i32>} : memref<288x384xbf16, #tpu.memory_space<vmem>>, vector<32x384xbf16>,
    %69 = vector.extract_strided_slice %58 {offsets = [0, 20], sizes = [32, 384], strides = [1, 1]} : vector<32x512xbf16> to vector<32x384xbf16>
    %c160 = arith.constant 160 : index
    %c0_26 = arith.constant 0 : index
    %70 = vector.load %arg7[%c160, %c0_26] : memref<288x384xbf16, #tpu.memory_space<vmem>>, vector<32x384xbf16>
    tpu.vector_store %arg7[%c160, %c0_26], %69 {strides = array<i32>} : memref<288x384xbf16, #tpu.memory_space<vmem>>, vector<32x384xbf16>,
    %71 = vector.extract_strided_slice %58 {offsets = [0, 36], sizes = [32, 384], strides = [1, 1]} : vector<32x512xbf16> to vector<32x384xbf16>
    %c192 = arith.constant 192 : index
    %c0_27 = arith.constant 0 : index
    %72 = vector.load %arg7[%c192, %c0_27] : memref<288x384xbf16, #tpu.memory_space<vmem>>, vector<32x384xbf16>
    tpu.vector_store %arg7[%c192, %c0_27], %71 {strides = array<i32>} : memref<288x384xbf16, #tpu.memory_space<vmem>>, vector<32x384xbf16>,
    %73 = vector.extract_strided_slice %58 {offsets = [0, 37], sizes = [32, 384], strides = [1, 1]} : vector<32x512xbf16> to vector<32x384xbf16>
    %c224 = arith.constant 224 : index
    %c0_28 = arith.constant 0 : index
    %74 = vector.load %arg7[%c224, %c0_28] : memref<288x384xbf16, #tpu.memory_space<vmem>>, vector<32x384xbf16>
    tpu.vector_store %arg7[%c224, %c0_28], %73 {strides = array<i32>} : memref<288x384xbf16, #tpu.memory_space<vmem>>, vector<32x384xbf16>,
    %75 = vector.extract_strided_slice %58 {offsets = [0, 38], sizes = [32, 384], strides = [1, 1]} : vector<32x512xbf16> to vector<32x384xbf16>
    %c256 = arith.constant 256 : index
    %c0_29 = arith.constant 0 : index
    %76 = vector.load %arg7[%c256, %c0_29] : memref<288x384xbf16, #tpu.memory_space<vmem>>, vector<32x384xbf16>
    tpu.vector_store %arg7[%c256, %c0_29], %75 {strides = array<i32>} : memref<288x384xbf16, #tpu.memory_space<vmem>>, vector<32x384xbf16>,
    %c0_30 = arith.constant 0 : index
    %c0_31 = arith.constant 0 : index
    %77 = vector.load %arg4[%c0_30, %c0_31] : memref<32x288xbf16, #tpu.memory_space<vmem>>, vector<32x288xbf16>
    %c0_32 = arith.constant 0 : index
    %c0_33 = arith.constant 0 : index
    %78 = vector.load %arg7[%c0_32, %c0_33] : memref<288x384xbf16, #tpu.memory_space<vmem>>, vector<288x384xbf16>
    %cst_34 = arith.constant dense<0.000000e+00> : vector<32x384xf32>
    %79 = tpu.matmul %77, %78, %cst_34 {dimension_numbers = #tpu.dot_dimension_numbers<[1], [0], [0], [1], [0, 0, 1, 1], [], []>} : vector<32x288xbf16>, vector<288x384xbf16>, vector<32x384xf32> -> vector<32x384xf32>
    %c0_35 = arith.constant 0 : index
    %c0_36 = arith.constant 0 : index
    %80 = vector.load %arg5[%c0_35, %c0_36] : memref<32x1xf32, #tpu.memory_space<vmem>>, vector<32x1xf32>
    %81 = vector.broadcast %80 : vector<32x1xf32> to vector<32x384xf32>
    %82 = arith.addf %79, %81 : vector<32x384xf32>
    %c0_37 = arith.constant 0 : index
    %c0_38 = arith.constant 0 : index
    %c0_39 = arith.constant 0 : index
    %83 = vector.load %arg6[%c0_37, %c0_38, %c0_39] : memref<1x32x384xf32, #tpu.memory_space<vmem>>, vector<1x32x384xf32>
    %84 = vector.shape_cast %83 : vector<1x32x384xf32> to vector<32x384xf32>
    %85 = vector.shape_cast %82 : vector<32x384xf32> to vector<1x32x384xf32>
    tpu.vector_store %arg6[%c0_37, %c0_38, %c0_39], %85 {strides = array<i32>} : memref<1x32x384xf32, #tpu.memory_space<vmem>>, vector<1x32x384xf32>,
    return
  }
  func.func @transform_0(%arg0: i32) -> (i32, i32, i32) {
    %c0_i32 = arith.constant 0 : i32
    %c0_i32_0 = arith.constant 0 : i32
    %c0_i32_1 = arith.constant 0 : i32
    return %arg0, %c0_i32, %c0_i32_0 : i32, i32, i32
  }
  func.func @transform_1(%arg0: i32) -> (i32, i32) {
    %c0_i32 = arith.constant 0 : i32
    %c0_i32_0 = arith.constant 0 : i32
    %c0_i32_1 = arith.constant 0 : i32
    return %c0_i32, %c0_i32_0 : i32, i32
  }
  func.func @transform_2(%arg0: i32) -> (i32, i32) {
    %c0_i32 = arith.constant 0 : i32
    %c0_i32_0 = arith.constant 0 : i32
    %c0_i32_1 = arith.constant 0 : i32
    return %c0_i32, %c0_i32_0 : i32, i32
  }
  func.func @transform_3(%arg0: i32) -> (i32, i32) {
    %c0_i32 = arith.constant 0 : i32
    %c0_i32_0 = arith.constant 0 : i32
    %c0_i32_1 = arith.constant 0 : i32
    return %c0_i32, %c0_i32_0 : i32, i32
  }
  func.func @transform_4(%arg0: i32) -> (i32, i32) {
    %c0_i32 = arith.constant 0 : i32
    %c0_i32_0 = arith.constant 0 : i32
    %c0_i32_1 = arith.constant 0 : i32
    return %c0_i32, %c0_i32_0 : i32, i32
  }
  func.func @transform_5(%arg0: i32) -> (i32, i32, i32) {
    %c0_i32 = arith.constant 0 : i32
    %c0_i32_0 = arith.constant 0 : i32
    %c0_i32_1 = arith.constant 0 : i32
    return %arg0, %c0_i32, %c0_i32_0 : i32, i32, i32
  }
}

module attributes {stable_mosaic.version = 11 : i64} {
  func.func @_fused_conv3x3_kernel(%arg0: i32, %arg1: memref<1x32x512xf32, #tpu.memory_space<vmem>>, %arg2: memref<32x288xbf16, #tpu.memory_space<vmem>>, %arg3: memref<32x1xf32, #tpu.memory_space<vmem>>, %arg4: memref<1x32x384xf32, #tpu.memory_space<vmem>>, %arg5: memref<1x32x384xf32, #tpu.memory_space<vmem>>, %arg6: memref<288x384xbf16, #tpu.memory_space<vmem>>) attributes {dimension_semantics = [#tpu.dimension_semantics<parallel>], iteration_bounds = array<i64: 2>, scalar_prefetch = 0 : i64, scratch_operands = 1 : i64, tpu.core_type = #tpu.core_type<tc>, window_params = [{transform_indices = @transform_0, window_bounds = array<i64: 1, 32, 512>}, {pipeline_mode = #tpu.pipeline_mode<synchronous>, transform_indices = @transform_1, window_bounds = array<i64: 32, 288>}, {pipeline_mode = #tpu.pipeline_mode<synchronous>, transform_indices = @transform_2, window_bounds = array<i64: 32, 1>}, {transform_indices = @transform_3, window_bounds = array<i64: 1, 32, 384>}, {transform_indices = @transform_4, window_bounds = array<i64: 1, 32, 384>}]} {
    %c0 = arith.constant 0 : index
    %c0_0 = arith.constant 0 : index
    %c0_1 = arith.constant 0 : index
    %0 = vector.load %arg1[%c0, %c0_0, %c0_1] : memref<1x32x512xf32, #tpu.memory_space<vmem>>, vector<1x32x512xf32>
    %1 = vector.shape_cast %0 : vector<1x32x512xf32> to vector<32x512xf32>
    %cst = arith.constant 0.000000e+00 : f32
    %2 = vector.broadcast %cst : f32 to vector<32x512xf32>
    %3 = arith.cmpf oge, %1, %2 : vector<32x512xf32>
    %cst_2 = arith.constant 2.000000e-01 : f32
    %4 = vector.broadcast %cst_2 : f32 to vector<32x512xf32>
    %5 = arith.mulf %1, %4 : vector<32x512xf32>
    %6 = arith.select %3, %1, %5 : vector<32x512xi1>, vector<32x512xf32>
    %7 = arith.truncf %6 : vector<32x512xf32> to vector<32x512xbf16>
    %8 = vector.extract_strided_slice %7 {offsets = [0, 0], sizes = [32, 384], strides = [1, 1]} : vector<32x512xbf16> to vector<32x384xbf16>
    %c0_3 = arith.constant 0 : index
    %c0_4 = arith.constant 0 : index
    %9 = vector.load %arg6[%c0_3, %c0_4] : memref<288x384xbf16, #tpu.memory_space<vmem>>, vector<32x384xbf16>
    tpu.vector_store %arg6[%c0_3, %c0_4], %8 {strides = array<i32>} : memref<288x384xbf16, #tpu.memory_space<vmem>>, vector<32x384xbf16>,
    %10 = vector.extract_strided_slice %7 {offsets = [0, 1], sizes = [32, 384], strides = [1, 1]} : vector<32x512xbf16> to vector<32x384xbf16>
    %c32 = arith.constant 32 : index
    %c0_5 = arith.constant 0 : index
    %11 = vector.load %arg6[%c32, %c0_5] : memref<288x384xbf16, #tpu.memory_space<vmem>>, vector<32x384xbf16>
    tpu.vector_store %arg6[%c32, %c0_5], %10 {strides = array<i32>} : memref<288x384xbf16, #tpu.memory_space<vmem>>, vector<32x384xbf16>,
    %12 = vector.extract_strided_slice %7 {offsets = [0, 2], sizes = [32, 384], strides = [1, 1]} : vector<32x512xbf16> to vector<32x384xbf16>
    %c64 = arith.constant 64 : index
    %c0_6 = arith.constant 0 : index
    %13 = vector.load %arg6[%c64, %c0_6] : memref<288x384xbf16, #tpu.memory_space<vmem>>, vector<32x384xbf16>
    tpu.vector_store %arg6[%c64, %c0_6], %12 {strides = array<i32>} : memref<288x384xbf16, #tpu.memory_space<vmem>>, vector<32x384xbf16>,
    %14 = vector.extract_strided_slice %7 {offsets = [0, 18], sizes = [32, 384], strides = [1, 1]} : vector<32x512xbf16> to vector<32x384xbf16>
    %c96 = arith.constant 96 : index
    %c0_7 = arith.constant 0 : index
    %15 = vector.load %arg6[%c96, %c0_7] : memref<288x384xbf16, #tpu.memory_space<vmem>>, vector<32x384xbf16>
    tpu.vector_store %arg6[%c96, %c0_7], %14 {strides = array<i32>} : memref<288x384xbf16, #tpu.memory_space<vmem>>, vector<32x384xbf16>,
    %16 = vector.extract_strided_slice %7 {offsets = [0, 19], sizes = [32, 384], strides = [1, 1]} : vector<32x512xbf16> to vector<32x384xbf16>
    %c128 = arith.constant 128 : index
    %c0_8 = arith.constant 0 : index
    %17 = vector.load %arg6[%c128, %c0_8] : memref<288x384xbf16, #tpu.memory_space<vmem>>, vector<32x384xbf16>
    tpu.vector_store %arg6[%c128, %c0_8], %16 {strides = array<i32>} : memref<288x384xbf16, #tpu.memory_space<vmem>>, vector<32x384xbf16>,
    %18 = vector.extract_strided_slice %7 {offsets = [0, 20], sizes = [32, 384], strides = [1, 1]} : vector<32x512xbf16> to vector<32x384xbf16>
    %c160 = arith.constant 160 : index
    %c0_9 = arith.constant 0 : index
    %19 = vector.load %arg6[%c160, %c0_9] : memref<288x384xbf16, #tpu.memory_space<vmem>>, vector<32x384xbf16>
    tpu.vector_store %arg6[%c160, %c0_9], %18 {strides = array<i32>} : memref<288x384xbf16, #tpu.memory_space<vmem>>, vector<32x384xbf16>,
    %20 = vector.extract_strided_slice %7 {offsets = [0, 36], sizes = [32, 384], strides = [1, 1]} : vector<32x512xbf16> to vector<32x384xbf16>
    %c192 = arith.constant 192 : index
    %c0_10 = arith.constant 0 : index
    %21 = vector.load %arg6[%c192, %c0_10] : memref<288x384xbf16, #tpu.memory_space<vmem>>, vector<32x384xbf16>
    tpu.vector_store %arg6[%c192, %c0_10], %20 {strides = array<i32>} : memref<288x384xbf16, #tpu.memory_space<vmem>>, vector<32x384xbf16>,
    %22 = vector.extract_strided_slice %7 {offsets = [0, 37], sizes = [32, 384], strides = [1, 1]} : vector<32x512xbf16> to vector<32x384xbf16>
    %c224 = arith.constant 224 : index
    %c0_11 = arith.constant 0 : index
    %23 = vector.load %arg6[%c224, %c0_11] : memref<288x384xbf16, #tpu.memory_space<vmem>>, vector<32x384xbf16>
    tpu.vector_store %arg6[%c224, %c0_11], %22 {strides = array<i32>} : memref<288x384xbf16, #tpu.memory_space<vmem>>, vector<32x384xbf16>,
    %24 = vector.extract_strided_slice %7 {offsets = [0, 38], sizes = [32, 384], strides = [1, 1]} : vector<32x512xbf16> to vector<32x384xbf16>
    %c256 = arith.constant 256 : index
    %c0_12 = arith.constant 0 : index
    %25 = vector.load %arg6[%c256, %c0_12] : memref<288x384xbf16, #tpu.memory_space<vmem>>, vector<32x384xbf16>
    tpu.vector_store %arg6[%c256, %c0_12], %24 {strides = array<i32>} : memref<288x384xbf16, #tpu.memory_space<vmem>>, vector<32x384xbf16>,
    %c0_13 = arith.constant 0 : index
    %c0_14 = arith.constant 0 : index
    %26 = vector.load %arg2[%c0_13, %c0_14] : memref<32x288xbf16, #tpu.memory_space<vmem>>, vector<32x288xbf16>
    %c0_15 = arith.constant 0 : index
    %c0_16 = arith.constant 0 : index
    %27 = vector.load %arg6[%c0_15, %c0_16] : memref<288x384xbf16, #tpu.memory_space<vmem>>, vector<288x384xbf16>
    %cst_17 = arith.constant dense<0.000000e+00> : vector<32x384xf32>
    %28 = tpu.matmul %26, %27, %cst_17 {dimension_numbers = #tpu.dot_dimension_numbers<[1], [0], [0], [1], [0, 0, 1, 1], [], []>} : vector<32x288xbf16>, vector<288x384xbf16>, vector<32x384xf32> -> vector<32x384xf32>
    %c0_18 = arith.constant 0 : index
    %c0_19 = arith.constant 0 : index
    %29 = vector.load %arg3[%c0_18, %c0_19] : memref<32x1xf32, #tpu.memory_space<vmem>>, vector<32x1xf32>
    %30 = vector.broadcast %29 : vector<32x1xf32> to vector<32x384xf32>
    %31 = arith.addf %28, %30 : vector<32x384xf32>
    %c0_20 = arith.constant 0 : index
    %c0_21 = arith.constant 0 : index
    %c0_22 = arith.constant 0 : index
    %32 = vector.load %arg4[%c0_20, %c0_21, %c0_22] : memref<1x32x384xf32, #tpu.memory_space<vmem>>, vector<1x32x384xf32>
    %33 = vector.shape_cast %32 : vector<1x32x384xf32> to vector<32x384xf32>
    %34 = arith.addf %31, %33 : vector<32x384xf32>
    %cst_23 = arith.constant 0.707106769 : f32
    %35 = vector.broadcast %cst_23 : f32 to vector<32x384xf32>
    %36 = arith.mulf %34, %35 : vector<32x384xf32>
    %c0_24 = arith.constant 0 : index
    %c0_25 = arith.constant 0 : index
    %c0_26 = arith.constant 0 : index
    %37 = vector.load %arg5[%c0_24, %c0_25, %c0_26] : memref<1x32x384xf32, #tpu.memory_space<vmem>>, vector<1x32x384xf32>
    %38 = vector.shape_cast %37 : vector<1x32x384xf32> to vector<32x384xf32>
    %39 = vector.shape_cast %36 : vector<32x384xf32> to vector<1x32x384xf32>
    tpu.vector_store %arg5[%c0_24, %c0_25, %c0_26], %39 {strides = array<i32>} : memref<1x32x384xf32, #tpu.memory_space<vmem>>, vector<1x32x384xf32>,
    return
  }
  func.func @transform_0(%arg0: i32) -> (i32, i32, i32) {
    %c0_i32 = arith.constant 0 : i32
    %c0_i32_0 = arith.constant 0 : i32
    %c0_i32_1 = arith.constant 0 : i32
    return %arg0, %c0_i32, %c0_i32_0 : i32, i32, i32
  }
  func.func @transform_1(%arg0: i32) -> (i32, i32) {
    %c0_i32 = arith.constant 0 : i32
    %c0_i32_0 = arith.constant 0 : i32
    %c0_i32_1 = arith.constant 0 : i32
    return %c0_i32, %c0_i32_0 : i32, i32
  }
  func.func @transform_2(%arg0: i32) -> (i32, i32) {
    %c0_i32 = arith.constant 0 : i32
    %c0_i32_0 = arith.constant 0 : i32
    %c0_i32_1 = arith.constant 0 : i32
    return %c0_i32, %c0_i32_0 : i32, i32
  }
  func.func @transform_3(%arg0: i32) -> (i32, i32, i32) {
    %c0_i32 = arith.constant 0 : i32
    %c0_i32_0 = arith.constant 0 : i32
    %c0_i32_1 = arith.constant 0 : i32
    return %arg0, %c0_i32, %c0_i32_0 : i32, i32, i32
  }
  func.func @transform_4(%arg0: i32) -> (i32, i32, i32) {
    %c0_i32 = arith.constant 0 : i32
    %c0_i32_0 = arith.constant 0 : i32
    %c0_i32_1 = arith.constant 0 : i32
    return %arg0, %c0_i32, %c0_i32_0 : i32, i32, i32
  }
}

module attributes {stable_mosaic.version = 11 : i64} {
  func.func @_fused_conv3x3_kernel(%arg0: i32, %arg1: memref<1x32x256xf32, #tpu.memory_space<vmem>>, %arg2: memref<32x1xf32, #tpu.memory_space<vmem>>, %arg3: memref<32x1xf32, #tpu.memory_space<vmem>>, %arg4: memref<64x288xbf16, #tpu.memory_space<vmem>>, %arg5: memref<64x1xf32, #tpu.memory_space<vmem>>, %arg6: memref<1x32x128xf32, #tpu.memory_space<vmem>>, %arg7: memref<64x32xbf16, #tpu.memory_space<vmem>>, %arg8: memref<1x64x128xf32, #tpu.memory_space<vmem>>, %arg9: memref<288x128xbf16, #tpu.memory_space<vmem>>) attributes {dimension_semantics = [#tpu.dimension_semantics<parallel>], iteration_bounds = array<i64: 2>, scalar_prefetch = 0 : i64, scratch_operands = 1 : i64, tpu.core_type = #tpu.core_type<tc>, window_params = [{transform_indices = @transform_0, window_bounds = array<i64: 1, 32, 256>}, {pipeline_mode = #tpu.pipeline_mode<synchronous>, transform_indices = @transform_1, window_bounds = array<i64: 32, 1>}, {pipeline_mode = #tpu.pipeline_mode<synchronous>, transform_indices = @transform_2, window_bounds = array<i64: 32, 1>}, {pipeline_mode = #tpu.pipeline_mode<synchronous>, transform_indices = @transform_3, window_bounds = array<i64: 64, 288>}, {pipeline_mode = #tpu.pipeline_mode<synchronous>, transform_indices = @transform_4, window_bounds = array<i64: 64, 1>}, {transform_indices = @transform_5, window_bounds = array<i64: 1, 32, 128>}, {pipeline_mode = #tpu.pipeline_mode<synchronous>, transform_indices = @transform_6, window_bounds = array<i64: 64, 32>}, {transform_indices = @transform_7, window_bounds = array<i64: 1, 64, 128>}]} {
    %c0 = arith.constant 0 : index
    %c0_0 = arith.constant 0 : index
    %c0_1 = arith.constant 0 : index
    %0 = vector.load %arg1[%c0, %c0_0, %c0_1] : memref<1x32x256xf32, #tpu.memory_space<vmem>>, vector<1x32x256xf32>
    %1 = vector.shape_cast %0 : vector<1x32x256xf32> to vector<32x256xf32>
    %cst = arith.constant dense<0.000000e+00> : vector<32xf32>
    %2 = vector.multi_reduction <add>, %1, %cst [1] : vector<32x256xf32> to vector<32xf32>
    %3 = vector.shape_cast %2 : vector<32xf32> to vector<32x1xf32>
    %cst_2 = arith.constant 1.562500e-02 : f32
    %4 = vector.broadcast %cst_2 : f32 to vector<32x1xf32>
    %5 = arith.mulf %3, %4 : vector<32x1xf32>
    %6 = arith.mulf %1, %1 : vector<32x256xf32>
    %cst_3 = arith.constant dense<0.000000e+00> : vector<32xf32>
    %7 = vector.multi_reduction <add>, %6, %cst_3 [1] : vector<32x256xf32> to vector<32xf32>
    %8 = vector.shape_cast %7 : vector<32xf32> to vector<32x1xf32>
    %cst_4 = arith.constant 1.562500e-02 : f32
    %9 = vector.broadcast %cst_4 : f32 to vector<32x1xf32>
    %10 = arith.mulf %8, %9 : vector<32x1xf32>
    %11 = arith.mulf %5, %5 : vector<32x1xf32>
    %12 = arith.subf %10, %11 : vector<32x1xf32>
    %cst_5 = arith.constant 0.000000e+00 : f32
    %13 = vector.broadcast %cst_5 : f32 to vector<32x1xf32>
    %14 = arith.maximumf %12, %13 : vector<32x1xf32>
    %15 = vector.broadcast %5 : vector<32x1xf32> to vector<32x256xf32>
    %16 = arith.subf %1, %15 : vector<32x256xf32>
    %cst_6 = arith.constant 9.99999974E-6 : f32
    %17 = vector.broadcast %cst_6 : f32 to vector<32x1xf32>
    %18 = arith.addf %14, %17 : vector<32x1xf32>
    %19 = math.rsqrt %18 : vector<32x1xf32>
    %20 = vector.broadcast %19 : vector<32x1xf32> to vector<32x256xf32>
    %21 = arith.mulf %16, %20 : vector<32x256xf32>
    %c0_7 = arith.constant 0 : index
    %c0_8 = arith.constant 0 : index
    %22 = vector.load %arg2[%c0_7, %c0_8] : memref<32x1xf32, #tpu.memory_space<vmem>>, vector<32x1xf32>
    %23 = vector.broadcast %22 : vector<32x1xf32> to vector<32x256xf32>
    %24 = arith.mulf %21, %23 : vector<32x256xf32>
    %c0_9 = arith.constant 0 : index
    %c0_10 = arith.constant 0 : index
    %25 = vector.load %arg3[%c0_9, %c0_10] : memref<32x1xf32, #tpu.memory_space<vmem>>, vector<32x1xf32>
    %26 = vector.broadcast %25 : vector<32x1xf32> to vector<32x256xf32>
    %27 = arith.addf %24, %26 : vector<32x256xf32>
    %cst_11 = arith.constant 0.000000e+00 : f32
    %28 = vector.broadcast %cst_11 : f32 to vector<32x256xf32>
    %29 = arith.cmpf oge, %27, %28 : vector<32x256xf32>
    %cst_12 = arith.constant 2.000000e-01 : f32
    %30 = vector.broadcast %cst_12 : f32 to vector<32x256xf32>
    %31 = arith.mulf %27, %30 : vector<32x256xf32>
    %32 = arith.select %29, %27, %31 : vector<32x256xi1>, vector<32x256xf32>
    %33 = tpu.iota {dimensions = array<i32: 1>} : vector<1x256xi32>
    %34 = arith.sitofp %33 : vector<1x256xi32> to vector<1x256xf32>
    %cst_13 = arith.constant 5.000000e-01 : f32
    %35 = vector.broadcast %cst_13 : f32 to vector<1x256xf32>
    %36 = arith.addf %34, %35 : vector<1x256xf32>
    %cst_14 = arith.constant 1.000000e-01 : f32
    %37 = vector.broadcast %cst_14 : f32 to vector<1x256xf32>
    %38 = arith.mulf %36, %37 : vector<1x256xf32>
    %39 = math.floor %38 : vector<1x256xf32>
    %cst_15 = arith.constant 1.000000e+01 : f32
    %40 = vector.broadcast %cst_15 : f32 to vector<1x256xf32>
    %41 = arith.mulf %39, %40 : vector<1x256xf32>
    %42 = arith.subf %34, %41 : vector<1x256xf32>
    %cst_16 = arith.constant 1.000000e+00 : f32
    %43 = vector.broadcast %cst_16 : f32 to vector<1x256xf32>
    %44 = arith.cmpf oge, %39, %43 : vector<1x256xf32>
    %cst_17 = arith.constant 8.000000e+00 : f32
    %45 = vector.broadcast %cst_17 : f32 to vector<1x256xf32>
    %46 = arith.cmpf ole, %39, %45 : vector<1x256xf32>
    %47 = arith.andi %44, %46 : vector<1x256xi1>
    %cst_18 = arith.constant 1.000000e+00 : f32
    %48 = vector.broadcast %cst_18 : f32 to vector<1x256xf32>
    %49 = arith.cmpf oge, %42, %48 : vector<1x256xf32>
    %50 = arith.andi %47, %49 : vector<1x256xi1>
    %cst_19 = arith.constant 8.000000e+00 : f32
    %51 = vector.broadcast %cst_19 : f32 to vector<1x256xf32>
    %52 = arith.cmpf ole, %42, %51 : vector<1x256xf32>
    %53 = arith.andi %50, %52 : vector<1x256xi1>
    %54 = arith.extui %53 : vector<1x256xi1> to vector<1x256xi32>
    %55 = arith.sitofp %54 : vector<1x256xi32> to vector<1x256xf32>
    %56 = vector.broadcast %55 : vector<1x256xf32> to vector<32x256xf32>
    %57 = arith.mulf %32, %56 : vector<32x256xf32>
    %58 = arith.truncf %57 : vector<32x256xf32> to vector<32x256xbf16>
    %59 = vector.extract_strided_slice %58 {offsets = [0, 0], sizes = [32, 128], strides = [1, 1]} : vector<32x256xbf16> to vector<32x128xbf16>
    %c0_20 = arith.constant 0 : index
    %c0_21 = arith.constant 0 : index
    %60 = vector.load %arg9[%c0_20, %c0_21] : memref<288x128xbf16, #tpu.memory_space<vmem>>, vector<32x128xbf16>
    tpu.vector_store %arg9[%c0_20, %c0_21], %59 {strides = array<i32>} : memref<288x128xbf16, #tpu.memory_space<vmem>>, vector<32x128xbf16>,
    %61 = vector.extract_strided_slice %58 {offsets = [0, 1], sizes = [32, 128], strides = [1, 1]} : vector<32x256xbf16> to vector<32x128xbf16>
    %c32 = arith.constant 32 : index
    %c0_22 = arith.constant 0 : index
    %62 = vector.load %arg9[%c32, %c0_22] : memref<288x128xbf16, #tpu.memory_space<vmem>>, vector<32x128xbf16>
    tpu.vector_store %arg9[%c32, %c0_22], %61 {strides = array<i32>} : memref<288x128xbf16, #tpu.memory_space<vmem>>, vector<32x128xbf16>,
    %63 = vector.extract_strided_slice %58 {offsets = [0, 2], sizes = [32, 128], strides = [1, 1]} : vector<32x256xbf16> to vector<32x128xbf16>
    %c64 = arith.constant 64 : index
    %c0_23 = arith.constant 0 : index
    %64 = vector.load %arg9[%c64, %c0_23] : memref<288x128xbf16, #tpu.memory_space<vmem>>, vector<32x128xbf16>
    tpu.vector_store %arg9[%c64, %c0_23], %63 {strides = array<i32>} : memref<288x128xbf16, #tpu.memory_space<vmem>>, vector<32x128xbf16>,
    %65 = vector.extract_strided_slice %58 {offsets = [0, 10], sizes = [32, 128], strides = [1, 1]} : vector<32x256xbf16> to vector<32x128xbf16>
    %c96 = arith.constant 96 : index
    %c0_24 = arith.constant 0 : index
    %66 = vector.load %arg9[%c96, %c0_24] : memref<288x128xbf16, #tpu.memory_space<vmem>>, vector<32x128xbf16>
    tpu.vector_store %arg9[%c96, %c0_24], %65 {strides = array<i32>} : memref<288x128xbf16, #tpu.memory_space<vmem>>, vector<32x128xbf16>,
    %67 = vector.extract_strided_slice %58 {offsets = [0, 11], sizes = [32, 128], strides = [1, 1]} : vector<32x256xbf16> to vector<32x128xbf16>
    %c128 = arith.constant 128 : index
    %c0_25 = arith.constant 0 : index
    %68 = vector.load %arg9[%c128, %c0_25] : memref<288x128xbf16, #tpu.memory_space<vmem>>, vector<32x128xbf16>
    tpu.vector_store %arg9[%c128, %c0_25], %67 {strides = array<i32>} : memref<288x128xbf16, #tpu.memory_space<vmem>>, vector<32x128xbf16>,
    %69 = vector.extract_strided_slice %58 {offsets = [0, 12], sizes = [32, 128], strides = [1, 1]} : vector<32x256xbf16> to vector<32x128xbf16>
    %c160 = arith.constant 160 : index
    %c0_26 = arith.constant 0 : index
    %70 = vector.load %arg9[%c160, %c0_26] : memref<288x128xbf16, #tpu.memory_space<vmem>>, vector<32x128xbf16>
    tpu.vector_store %arg9[%c160, %c0_26], %69 {strides = array<i32>} : memref<288x128xbf16, #tpu.memory_space<vmem>>, vector<32x128xbf16>,
    %71 = vector.extract_strided_slice %58 {offsets = [0, 20], sizes = [32, 128], strides = [1, 1]} : vector<32x256xbf16> to vector<32x128xbf16>
    %c192 = arith.constant 192 : index
    %c0_27 = arith.constant 0 : index
    %72 = vector.load %arg9[%c192, %c0_27] : memref<288x128xbf16, #tpu.memory_space<vmem>>, vector<32x128xbf16>
    tpu.vector_store %arg9[%c192, %c0_27], %71 {strides = array<i32>} : memref<288x128xbf16, #tpu.memory_space<vmem>>, vector<32x128xbf16>,
    %73 = vector.extract_strided_slice %58 {offsets = [0, 21], sizes = [32, 128], strides = [1, 1]} : vector<32x256xbf16> to vector<32x128xbf16>
    %c224 = arith.constant 224 : index
    %c0_28 = arith.constant 0 : index
    %74 = vector.load %arg9[%c224, %c0_28] : memref<288x128xbf16, #tpu.memory_space<vmem>>, vector<32x128xbf16>
    tpu.vector_store %arg9[%c224, %c0_28], %73 {strides = array<i32>} : memref<288x128xbf16, #tpu.memory_space<vmem>>, vector<32x128xbf16>,
    %75 = vector.extract_strided_slice %58 {offsets = [0, 22], sizes = [32, 128], strides = [1, 1]} : vector<32x256xbf16> to vector<32x128xbf16>
    %c256 = arith.constant 256 : index
    %c0_29 = arith.constant 0 : index
    %76 = vector.load %arg9[%c256, %c0_29] : memref<288x128xbf16, #tpu.memory_space<vmem>>, vector<32x128xbf16>
    tpu.vector_store %arg9[%c256, %c0_29], %75 {strides = array<i32>} : memref<288x128xbf16, #tpu.memory_space<vmem>>, vector<32x128xbf16>,
    %c0_30 = arith.constant 0 : index
    %c0_31 = arith.constant 0 : index
    %77 = vector.load %arg4[%c0_30, %c0_31] : memref<64x288xbf16, #tpu.memory_space<vmem>>, vector<64x288xbf16>
    %c0_32 = arith.constant 0 : index
    %c0_33 = arith.constant 0 : index
    %78 = vector.load %arg9[%c0_32, %c0_33] : memref<288x128xbf16, #tpu.memory_space<vmem>>, vector<288x128xbf16>
    %cst_34 = arith.constant dense<0.000000e+00> : vector<64x128xf32>
    %79 = tpu.matmul %77, %78, %cst_34 {dimension_numbers = #tpu.dot_dimension_numbers<[1], [0], [0], [1], [0, 0, 1, 1], [], []>} : vector<64x288xbf16>, vector<288x128xbf16>, vector<64x128xf32> -> vector<64x128xf32>
    %c0_35 = arith.constant 0 : index
    %c0_36 = arith.constant 0 : index
    %80 = vector.load %arg5[%c0_35, %c0_36] : memref<64x1xf32, #tpu.memory_space<vmem>>, vector<64x1xf32>
    %81 = vector.broadcast %80 : vector<64x1xf32> to vector<64x128xf32>
    %82 = arith.addf %79, %81 : vector<64x128xf32>
    %c0_37 = arith.constant 0 : index
    %c0_38 = arith.constant 0 : index
    %83 = vector.load %arg7[%c0_37, %c0_38] : memref<64x32xbf16, #tpu.memory_space<vmem>>, vector<64x32xbf16>
    %c0_39 = arith.constant 0 : index
    %c0_40 = arith.constant 0 : index
    %c0_41 = arith.constant 0 : index
    %84 = vector.load %arg6[%c0_39, %c0_40, %c0_41] : memref<1x32x128xf32, #tpu.memory_space<vmem>>, vector<1x32x128xf32>
    %85 = vector.shape_cast %84 : vector<1x32x128xf32> to vector<32x128xf32>
    %86 = arith.truncf %85 : vector<32x128xf32> to vector<32x128xbf16>
    %cst_42 = arith.constant dense<0.000000e+00> : vector<64x128xf32>
    %87 = tpu.matmul %83, %86, %cst_42 {dimension_numbers = #tpu.dot_dimension_numbers<[1], [0], [0], [1], [0, 0, 1, 1], [], []>} : vector<64x32xbf16>, vector<32x128xbf16>, vector<64x128xf32> -> vector<64x128xf32>
    %88 = arith.addf %82, %87 : vector<64x128xf32>
    %cst_43 = arith.constant 0.707106769 : f32
    %89 = vector.broadcast %cst_43 : f32 to vector<64x128xf32>
    %90 = arith.mulf %88, %89 : vector<64x128xf32>
    %c0_44 = arith.constant 0 : index
    %c0_45 = arith.constant 0 : index
    %c0_46 = arith.constant 0 : index
    %91 = vector.load %arg8[%c0_44, %c0_45, %c0_46] : memref<1x64x128xf32, #tpu.memory_space<vmem>>, vector<1x64x128xf32>
    %92 = vector.shape_cast %91 : vector<1x64x128xf32> to vector<64x128xf32>
    %93 = vector.shape_cast %90 : vector<64x128xf32> to vector<1x64x128xf32>
    tpu.vector_store %arg8[%c0_44, %c0_45, %c0_46], %93 {strides = array<i32>} : memref<1x64x128xf32, #tpu.memory_space<vmem>>, vector<1x64x128xf32>,
    return
  }
  func.func @transform_0(%arg0: i32) -> (i32, i32, i32) {
    %c0_i32 = arith.constant 0 : i32
    %c0_i32_0 = arith.constant 0 : i32
    %c0_i32_1 = arith.constant 0 : i32
    return %arg0, %c0_i32, %c0_i32_0 : i32, i32, i32
  }
  func.func @transform_1(%arg0: i32) -> (i32, i32) {
    %c0_i32 = arith.constant 0 : i32
    %c0_i32_0 = arith.constant 0 : i32
    %c0_i32_1 = arith.constant 0 : i32
    return %c0_i32, %c0_i32_0 : i32, i32
  }
  func.func @transform_2(%arg0: i32) -> (i32, i32) {
    %c0_i32 = arith.constant 0 : i32
    %c0_i32_0 = arith.constant 0 : i32
    %c0_i32_1 = arith.constant 0 : i32
    return %c0_i32, %c0_i32_0 : i32, i32
  }
  func.func @transform_3(%arg0: i32) -> (i32, i32) {
    %c0_i32 = arith.constant 0 : i32
    %c0_i32_0 = arith.constant 0 : i32
    %c0_i32_1 = arith.constant 0 : i32
    return %c0_i32, %c0_i32_0 : i32, i32
  }
  func.func @transform_4(%arg0: i32) -> (i32, i32) {
    %c0_i32 = arith.constant 0 : i32
    %c0_i32_0 = arith.constant 0 : i32
    %c0_i32_1 = arith.constant 0 : i32
    return %c0_i32, %c0_i32_0 : i32, i32
  }
  func.func @transform_5(%arg0: i32) -> (i32, i32, i32) {
    %c0_i32 = arith.constant 0 : i32
    %c0_i32_0 = arith.constant 0 : i32
    %c0_i32_1 = arith.constant 0 : i32
    return %arg0, %c0_i32, %c0_i32_0 : i32, i32, i32
  }
  func.func @transform_6(%arg0: i32) -> (i32, i32) {
    %c0_i32 = arith.constant 0 : i32
    %c0_i32_0 = arith.constant 0 : i32
    %c0_i32_1 = arith.constant 0 : i32
    return %c0_i32, %c0_i32_0 : i32, i32
  }
  func.func @transform_7(%arg0: i32) -> (i32, i32, i32) {
    %c0_i32 = arith.constant 0 : i32
    %c0_i32_0 = arith.constant 0 : i32
    %c0_i32_1 = arith.constant 0 : i32
    return %arg0, %c0_i32, %c0_i32_0 : i32, i32, i32
  }
}

</mosaic_0001>

<llo_original>
// kernel: _lambda_.6
$region0: #{_lambda_.6}
  #allocation0 [shape = 'u32[]', space=smem, size = 0x4, offset = 0x4, fixed_abs, tag = 'smem constant byte address 0x4 - core index']
  #allocation1 [shape = 'u32[144,128]{1,0:T(1,128)}', space=vmem, size = 0x12000, scoped, tag = 'internal scratch']
  #allocation2 [shape = 'bf16[288,384]{1,0:T(16,128)(2,1)}', space=vmem, size = 0x36000, scoped, tag = 'scratch operand']
  %s0 = inlined_call_operand.vmem [shape: f32[2,32,512], index: 0, kind: input, shape index: {}]
  %s1 = inlined_call_operand.vmem [shape: bf16[32,288], index: 1, kind: input, shape index: {}]
  %s2 = inlined_call_operand.vmem [shape: f32[32,1], index: 2, kind: input, shape index: {}]
  %s3 = inlined_call_operand.vmem [shape: f32[2,32,384], index: 3, kind: output, shape index: {}]
  %s4 = sld [smem:[#allocation0]]
  $region45: #{_lambda_.6} parent=0
    _
  %s6 = ssub.s32 1, %s4
  %s7 = scalar_select 0, %s6, %s4
  loop: start=0, step=1, limit=4
  $region2: #{_lambda_.6} parent=0 // loop_pre_header
    _
  $region3: #{_lambda_.6} parent=0 // loop_header
    %s9 = sphi 0, %s13
    %p10 = scmp.ge.s32.totalorder %s9, 4
    %s19 = sphi 0, %s21
    %s22 = sphi 0, %s19
    %s23 = sphi 0, %s22
    %s39 = sphi 0, %s23
    %s43 = sphi 0, %s43
    %s45 = sphi 0, %s43
    %s46 = sphi 0, %s45
    %s60 = sphi 0, %s46
    %s64 = sphi 0, %s64
    %s66 = sphi 0, %s64
    %s67 = sphi 0, %s66
    %s81 = sphi 0, %s67
    %s87 = sphi 0, %s89
    %s90 = sphi 0, %s87
    %s91 = sphi 0, %s90
    %s107 = sphi 0, %s91
  $region4: #{_lambda_.6} parent=0 // loop_header_branch
    %12 = sbr.rel (%p10) target = $region8
  $region5: #{_lambda_.6} parent=0 // loop_body
    %s14 = ssub.s32 %s9, 1
    %s15 = ssub.s32 %s9, 2
    %s16 = sadd.s32 %s9, 1
    %s17 = ssub.s32 %s9, %s16
    %p18 = scmp.eq.s32.totalorder %s17, 0
    %s20 = sadd.s32 %s19, 1
    %s21 = scalar_select %p18, %s19, %s20
    %p24 = pneg %p18
    %p25 = scmp.eq.s32.totalorder %s9, 1
    %p26 = por %p24, %p25
    %p27 = scmp.ne.s32.totalorder %s19, %s22
    %p28 = scmp.eq.s32.totalorder %s9, 0
    %p29 = por %p27, %p28
    %p30 = scmp.ne.s32.totalorder %s19, %s22
    %p31 = scmp.eq.s32.totalorder %s14, 1
    %p32 = por %p30, %p31
    %p33 = scmp.ne.s32.totalorder %s22, %s23
    %p34 = scmp.eq.s32.totalorder %s14, 0
    %p35 = por %p33, %p34
    %p36 = scmp.ne.s32.totalorder %s22, %s23
    %p37 = scmp.eq.s32.totalorder %s15, 1
    %p38 = por %p36, %p37
    %p40 = scmp.ne.s32.totalorder %s23, %s39
    %p41 = scmp.eq.s32.totalorder %s15, 0
    %p42 = por %p40, %p41
    %s44 = sadd.s32 %s43, 1
    %p47 = scmp.eq.s32.totalorder %s9, 1
    %p48 = scmp.ne.s32.totalorder %s43, %s45
    %p49 = scmp.eq.s32.totalorder %s9, 0
    %p50 = por %p48, %p49
    %p51 = scmp.ne.s32.totalorder %s43, %s45
    %p52 = scmp.eq.s32.totalorder %s14, 1
    %p53 = por %p51, %p52
    %p54 = scmp.ne.s32.totalorder %s45, %s46
    %p55 = scmp.eq.s32.totalorder %s14, 0
    %p56 = por %p54, %p55
    %p57 = scmp.ne.s32.totalorder %s45, %s46
    %p58 = scmp.eq.s32.totalorder %s15, 1
    %p59 = por %p57, %p58
    %p61 = scmp.ne.s32.totalorder %s46, %s60
    %p62 = scmp.eq.s32.totalorder %s15, 0
    %p63 = por %p61, %p62
    %s65 = sadd.s32 %s64, 1
    %p68 = scmp.eq.s32.totalorder %s9, 1
    %p69 = scmp.ne.s32.totalorder %s64, %s66
    %p70 = scmp.eq.s32.totalorder %s9, 0
    %p71 = por %p69, %p70
    %p72 = scmp.ne.s32.totalorder %s64, %s66
    %p73 = scmp.eq.s32.totalorder %s14, 1
    %p74 = por %p72, %p73
    %p75 = scmp.ne.s32.totalorder %s66, %s67
    %p76 = scmp.eq.s32.totalorder %s14, 0
    %p77 = por %p75, %p76
    %p78 = scmp.ne.s32.totalorder %s66, %s67
    %p79 = scmp.eq.s32.totalorder %s15, 1
    %p80 = por %p78, %p79
    %p82 = scmp.ne.s32.totalorder %s67, %s81
    %p83 = scmp.eq.s32.totalorder %s15, 0
    %p84 = por %p82, %p83
    %s85 = ssub.s32 %s9, %s16
    %p86 = scmp.eq.s32.totalorder %s85, 0
    %s88 = sadd.s32 %s87, 1
    %s89 = scalar_select %p86, %s87, %s88
    %p92 = pneg %p86
    %p93 = scmp.eq.s32.totalorder %s9, 1
    %p94 = por %p92, %p93
    %p95 = scmp.ne.s32.totalorder %s87, %s90
    %p96 = scmp.eq.s32.totalorder %s9, 0
    %p97 = por %p95, %p96
    %p98 = scmp.ne.s32.totalorder %s87, %s90
    %p99 = scmp.eq.s32.totalorder %s14, 1
    %p100 = por %p98, %p99
    %p101 = scmp.ne.s32.totalorder %s90, %s91
    %p102 = scmp.eq.s32.totalorder %s14, 0
    %p103 = por %p101, %p102
    %p104 = scmp.ne.s32.totalorder %s90, %s91
    %p105 = scmp.eq.s32.totalorder %s15, 1
    %p106 = por %p104, %p105
    %p108 = scmp.ne.s32.totalorder %s91, %s107
    %p109 = scmp.eq.s32.totalorder %s15, 0
    %p110 = por %p108, %p109
    %p111 = scmp.le.s32.totalorder 1, %s9
    %p112 = scmp.lt.s32.totalorder %s9, 3
    %p113 = pnand %p111, %p112
    %p114 = pneg %p113
    // Predicated region
    $region9: #{_lambda_.6} parent=5 // pred_check
      _
    $region10: #{_lambda_.6} parent=5 // pred_check_branch
      %116 = sbr.rel (%p113) target = $region12
    $region11: #{_lambda_.6} parent=5 // pred_region
      %s117 = ssub.s32 %s9, 1
      // Predicated region
      $region13: #{_lambda_.6} parent=11 // pred_check
        %p118 = pneg %p56
      $region14: #{_lambda_.6} parent=11 // pred_check_branch
        %120 = sbr.rel (%p118) target = $region16
      $region15: #{_lambda_.6} parent=11 // pred_region
        _
      $region16: #{_lambda_.6} parent=11 // pred_fallthru
        _
      // Predicated region
      $region17: #{_lambda_.6} parent=11 // pred_check
        %p121 = pneg %p77
      $region18: #{_lambda_.6} parent=11 // pred_check_branch
        %123 = sbr.rel (%p121) target = $region20
      $region19: #{_lambda_.6} parent=11 // pred_region
        _
      $region20: #{_lambda_.6} parent=11 // pred_fallthru
        _
    $region12: #{_lambda_.6} parent=5 // pred_fallthru
      _
    %p124 = scmp.lt.s32.totalorder %s9, 2
    // Predicated region
    $region21: #{_lambda_.6} parent=5 // pred_check
      %p125 = pneg %p124
    $region22: #{_lambda_.6} parent=5 // pred_check_branch
      %127 = sbr.rel (%p125) target = $region24
    $region23: #{_lambda_.6} parent=5 // pred_region
      // Predicated region
      $region25: #{_lambda_.6} parent=23 // pred_check
        %p128 = pneg %p29
      $region26: #{_lambda_.6} parent=23 // pred_check_branch
        %130 = sbr.rel (%p128) target = $region28
      $region27: #{_lambda_.6} parent=23 // pred_region
        %p131 = scmp.lt.s32.totalorder %s9, 1
        %s132 = scalar_select %p131, %s9, 1
        %s133 = smul.addr %s132, 16
        %s134 = smul.addr %s133, 8
        %s135 = scalar_lea.vmem %s0, %s134
      $region28: #{_lambda_.6} parent=23 // pred_fallthru
        _
    $region24: #{_lambda_.6} parent=5 // pred_fallthru
      _
    %p136 = scmp.le.s32.totalorder 1, %s9
    %p137 = scmp.lt.s32.totalorder %s9, 3
    %p138 = pnand %p136, %p137
    %p139 = pneg %p138
    // Predicated region
    $region29: #{_lambda_.6} parent=5 // pred_check
      _
    $region30: #{_lambda_.6} parent=5 // pred_check_branch
      %141 = sbr.rel (%p138) target = $region32
    $region31: #{_lambda_.6} parent=5 // pred_region
      %s142 = ssub.s32 %s9, 1
      %p143 = scmp.lt.s32.totalorder %s14, 1
      %s144 = scalar_select %p143, %s14, 1
      %s145 = smul.addr %s144, 16
      %s146 = smul.addr %s145, 8
      %s147 = scalar_lea.vmem %s0, %s146
      %p148 = pneg %p35
      %p149 = pneg %p32
      %p150 = pneg %p56
      %p151 = pneg %p53
      %p152 = pneg %p77
      %p153 = pneg %p74
      %p154 = pneg %p103
      %p155 = pneg %p100
      %p156 = scmp.lt.s32.totalorder %s14, 1
      %s157 = scalar_select %p156, %s14, 1
      %s158 = smul.addr %s157, 12
      %s159 = smul.addr %s158, 8
      %s160 = scalar_lea.vmem %s3, %s159
      %p161 = scmp.lt.s32.totalorder %s14, 1
      %s162 = scalar_select %p161, %s14, 1
      %s163 = smul.addr %s162, 16
      %s164 = smul.addr %s163, 8
      %s165 = scalar_lea.vmem %s0, %s164
      %p166 = scmp.lt.s32.totalorder %s14, 1
      %s167 = scalar_select %p166, %s14, 1
      %s168 = smul.addr %s167, 12
      %s169 = smul.addr %s168, 8
      %s170 = scalar_lea.vmem %s3, %s169
      %v172 = vld [vmem:[%s165] sm:$0xff]
      %v173 = vld [vmem:[%s165 + $0x8] sm:$0xff]
      %v174 = vld [vmem:[%s165 + $0x10] sm:$0xff]
      %v175 = vld [vmem:[%s165 + $0x18] sm:$0xff]
      %v176 = vld [vmem:[%s165 + $0x20] sm:$0xff]
      %v177 = vld [vmem:[%s165 + $0x28] sm:$0xff]
      %v178 = vld [vmem:[%s165 + $0x30] sm:$0xff]
      %v179 = vld [vmem:[%s165 + $0x38] sm:$0xff]
      %v180 = vld [vmem:[%s165 + $0x40] sm:$0xff]
      %v181 = vld [vmem:[%s165 + $0x48] sm:$0xff]
      %v182 = vld [vmem:[%s165 + $0x50] sm:$0xff]
      %v183 = vld [vmem:[%s165 + $0x58] sm:$0xff]
      %v184 = vld [vmem:[%s165 + $0x60] sm:$0xff]
      %v185 = vld [vmem:[%s165 + $0x68] sm:$0xff]
      %v186 = vld [vmem:[%s165 + $0x70] sm:$0xff]
      %v187 = vld [vmem:[%s165 + $0x78] sm:$0xff]
      %vm188 = vcmp.ge.f32.partialorder %v172, 0.0
      %vm189 = vcmp.ge.f32.partialorder %v173, 0.0
      %vm190 = vcmp.ge.f32.partialorder %v174, 0.0
      %vm191 = vcmp.ge.f32.partialorder %v175, 0.0
      %vm192 = vcmp.ge.f32.partialorder %v176, 0.0
      %vm193 = vcmp.ge.f32.partialorder %v177, 0.0
      %vm194 = vcmp.ge.f32.partialorder %v178, 0.0
      %vm195 = vcmp.ge.f32.partialorder %v179, 0.0
      %vm196 = vcmp.ge.f32.partialorder %v180, 0.0
      %vm197 = vcmp.ge.f32.partialorder %v181, 0.0
      %vm198 = vcmp.ge.f32.partialorder %v182, 0.0
      %vm199 = vcmp.ge.f32.partialorder %v183, 0.0
      %vm200 = vcmp.ge.f32.partialorder %v184, 0.0
      %vm201 = vcmp.ge.f32.partialorder %v185, 0.0
      %vm202 = vcmp.ge.f32.partialorder %v186, 0.0
      %vm203 = vcmp.ge.f32.partialorder %v187, 0.0
      %v204 = vmul.f32 %v172, 0.2
      %v205 = vmul.f32 %v173, 0.2
      %v206 = vmul.f32 %v174, 0.2
      %v207 = vmul.f32 %v175, 0.2
      %v208 = vmul.f32 %v176, 0.2
      %v209 = vmul.f32 %v177, 0.2
      %v210 = vmul.f32 %v178, 0.2
      %v211 = vmul.f32 %v179, 0.2
      %v212 = vmul.f32 %v180, 0.2
      %v213 = vmul.f32 %v181, 0.2
      %v214 = vmul.f32 %v182, 0.2
      %v215 = vmul.f32 %v183, 0.2
      %v216 = vmul.f32 %v184, 0.2
      %v217 = vmul.f32 %v185, 0.2
      %v218 = vmul.f32 %v186, 0.2
      %v219 = vmul.f32 %v187, 0.2
      %v220 = vsel %vm188, %v172, %v204
      %v221 = vsel %vm189, %v173, %v205
      %v222 = vsel %vm190, %v174, %v206
      %v223 = vsel %vm191, %v175, %v207
      %v224 = vsel %vm192, %v176, %v208
      %v225 = vsel %vm193, %v177, %v209
      %v226 = vsel %vm194, %v178, %v210
      %v227 = vsel %vm195, %v179, %v211
      %v228 = vsel %vm196, %v180, %v212
      %v229 = vsel %vm197, %v181, %v213
      %v230 = vsel %vm198, %v182, %v214
      %v231 = vsel %vm199, %v183, %v215
      %v232 = vsel %vm200, %v184, %v216
      %v233 = vsel %vm201, %v185, %v217
      %v234 = vsel %vm202, %v186, %v218
      %v235 = vsel %vm203, %v187, %v219
      %v236 = vpack.c.bf16 %v224, %v220
      %v237 = vpack.c.bf16 %v225, %v221
      %v238 = vpack.c.bf16 %v226, %v222
      %v239 = vpack.c.bf16 %v227, %v223
      %v240 = vpack.c.bf16 %v232, %v228
      %v241 = vpack.c.bf16 %v233, %v229
      %v242 = vpack.c.bf16 %v234, %v230
      %v243 = vpack.c.bf16 %v235, %v231
      %244 = vst [vmem:[#allocation2] sm:$0xff] %v236
      %245 = vst [vmem:[#allocation2 + $0x8] sm:$0xff] %v237
      %246 = vst [vmem:[#allocation2 + $0x10] sm:$0xff] %v238
      %247 = vst [vmem:[#allocation2 + $0x18] sm:$0xff] %v240
      %248 = vst [vmem:[#allocation2 + $0x20] sm:$0xff] %v241
      %249 = vst [vmem:[#allocation2 + $0x28] sm:$0xff] %v242
      %258 = vrot.lane.b32.xlu0 %v236, 127
      %v259 = vpop.permute.xlu0 %258
      %260 = vrot.lane.b32.xlu0 %v237, 127
      %v261 = vpop.permute.xlu0 %260
      %262 = vrot.lane.b32.xlu0 %v238, 127
      %v263 = vpop.permute.xlu0 %262
      %264 = vrot.lane.b32.xlu0 %v239, 127
      %v265 = vpop.permute.xlu0 %264
      %266 = vrot.lane.b32.xlu0 %v240, 127
      %v267 = vpop.permute.xlu0 %266
      %268 = vrot.lane.b32.xlu0 %v241, 127
      %v269 = vpop.permute.xlu0 %268
      %270 = vrot.lane.b32.xlu0 %v242, 127
      %v271 = vpop.permute.xlu0 %270
      %272 = vrot.lane.b32.xlu0 %v243, 127
      %v273 = vpop.permute.xlu0 %272
      %vm274 = vcmask 1039360
      %v275 = vsel %vm274, %v259, %v261
      %v276 = vsel %vm274, %v261, %v263
      %v277 = vsel %vm274, %v263, %v265
      %v278 = vsel %vm274, %v267, %v269
      %v279 = vsel %vm274, %v269, %v271
      %v280 = vsel %vm274, %v271, %v273
      %287 = vst [vmem:[#allocation2 + $0x30] sm:$0xff] %v275
      %288 = vst [vmem:[#allocation2 + $0x38] sm:$0xff] %v276
      %289 = vst [vmem:[#allocation2 + $0x40] sm:$0xff] %v277
      %290 = vst [vmem:[#allocation2 + $0x48] sm:$0xff] %v278
      %291 = vst [vmem:[#allocation2 + $0x50] sm:$0xff] %v279
      %292 = vst [vmem:[#allocation2 + $0x58] sm:$0xff] %v280
      %293 = vrot.lane.b32.xlu0 %v236, 126
      %v294 = vpop.permute.xlu0 %293
      %295 = vrot.lane.b32.xlu0 %v237, 126
      %v296 = vpop.permute.xlu0 %295
      %297 = vrot.lane.b32.xlu0 %v238, 126
      %v298 = vpop.permute.xlu0 %297
      %299 = vrot.lane.b32.xlu0 %v239, 126
      %v300 = vpop.permute.xlu0 %299
      %301 = vrot.lane.b32.xlu0 %v240, 126
      %v302 = vpop.permute.xlu0 %301
      %303 = vrot.lane.b32.xlu0 %v241, 126
      %v304 = vpop.permute.xlu0 %303
      %305 = vrot.lane.b32.xlu0 %v242, 126
      %v306 = vpop.permute.xlu0 %305
      %307 = vrot.lane.b32.xlu0 %v243, 126
      %v308 = vpop.permute.xlu0 %307
      %vm309 = vcmask 1031168
      %v310 = vsel %vm309, %v294, %v296
      %v311 = vsel %vm309, %v296, %v298
      %v312 = vsel %vm309, %v298, %v300
      %v313 = vsel %vm309, %v302, %v304
      %v314 = vsel %vm309, %v304, %v306
      %v315 = vsel %vm309, %v306, %v308
      %322 = vst [vmem:[#allocation2 + $0x60] sm:$0xff] %v310
      %323 = vst [vmem:[#allocation2 + $0x68] sm:$0xff] %v311
      %324 = vst [vmem:[#allocation2 + $0x70] sm:$0xff] %v312
      %325 = vst [vmem:[#allocation2 + $0x78] sm:$0xff] %v313
      %326 = vst [vmem:[#allocation2 + $0x80] sm:$0xff] %v314
      %327 = vst [vmem:[#allocation2 + $0x88] sm:$0xff] %v315
      %328 = vrot.lane.b32.xlu0 %v236, 110
      %v329 = vpop.permute.xlu0 %328
      %330 = vrot.lane.b32.xlu0 %v237, 110
      %v331 = vpop.permute.xlu0 %330
      %332 = vrot.lane.b32.xlu0 %v238, 110
      %v333 = vpop.permute.xlu0 %332
      %334 = vrot.lane.b32.xlu0 %v239, 110
      %v335 = vpop.permute.xlu0 %334
      %336 = vrot.lane.b32.xlu0 %v240, 110
      %v337 = vpop.permute.xlu0 %336
      %338 = vrot.lane.b32.xlu0 %v241, 110
      %v339 = vpop.permute.xlu0 %338
      %340 = vrot.lane.b32.xlu0 %v242, 110
      %v341 = vpop.permute.xlu0 %340
      %342 = vrot.lane.b32.xlu0 %v243, 110
      %v343 = vpop.permute.xlu0 %342
      %vm344 = vcmask 900096
      %v345 = vsel %vm344, %v329, %v331
      %v346 = vsel %vm344, %v331, %v333
      %v347 = vsel %vm344, %v333, %v335
      %v348 = vsel %vm344, %v337, %v339
      %v349 = vsel %vm344, %v339, %v341
      %v350 = vsel %vm344, %v341, %v343
      %357 = vst [vmem:[#allocation2 + $0x90] sm:$0xff] %v345
      %358 = vst [vmem:[#allocation2 + $0x98] sm:$0xff] %v346
      %359 = vst [vmem:[#allocation2 + $0xa0] sm:$0xff] %v347
      %360 = vst [vmem:[#allocation2 + $0xa8] sm:$0xff] %v348
      %361 = vst [vmem:[#allocation2 + $0xb0] sm:$0xff] %v349
      %362 = vst [vmem:[#allocation2 + $0xb8] sm:$0xff] %v350
      %363 = vrot.lane.b32.xlu0 %v236, 109
      %v364 = vpop.permute.xlu0 %363
      %365 = vrot.lane.b32.xlu0 %v237, 109
      %v366 = vpop.permute.xlu0 %365
      %367 = vrot.lane.b32.xlu0 %v238, 109
      %v368 = vpop.permute.xlu0 %367
      %369 = vrot.lane.b32.xlu0 %v239, 109
      %v370 = vpop.permute.xlu0 %369
      %371 = vrot.lane.b32.xlu0 %v240, 109
      %v372 = vpop.permute.xlu0 %371
      %373 = vrot.lane.b32.xlu0 %v241, 109
      %v374 = vpop.permute.xlu0 %373
      %375 = vrot.lane.b32.xlu0 %v242, 109
      %v376 = vpop.permute.xlu0 %375
      %377 = vrot.lane.b32.xlu0 %v243, 109
      %v378 = vpop.permute.xlu0 %377
      %vm379 = vcmask 891904
      %v380 = vsel %vm379, %v364, %v366
      %v381 = vsel %vm379, %v366, %v368
      %v382 = vsel %vm379, %v368, %v370
      %v383 = vsel %vm379, %v372, %v374
      %v384 = vsel %vm379, %v374, %v376
      %v385 = vsel %vm379, %v376, %v378
      %392 = vst [vmem:[#allocation2 + $0xc0] sm:$0xff] %v380
      %393 = vst [vmem:[#allocation2 + $0xc8] sm:$0xff] %v381
      %394 = vst [vmem:[#allocation2 + $0xd0] sm:$0xff] %v382
      %395 = vst [vmem:[#allocation2 + $0xd8] sm:$0xff] %v383
      %396 = vst [vmem:[#allocation2 + $0xe0] sm:$0xff] %v384
      %397 = vst [vmem:[#allocation2 + $0xe8] sm:$0xff] %v385
      %398 = vrot.lane.b32.xlu0 %v236, 108
      %v399 = vpop.permute.xlu0 %398
      %400 = vrot.lane.b32.xlu0 %v237, 108
      %v401 = vpop.permute.xlu0 %400
      %402 = vrot.lane.b32.xlu0 %v238, 108
      %v403 = vpop.permute.xlu0 %402
      %404 = vrot.lane.b32.xlu0 %v239, 108
      %v405 = vpop.permute.xlu0 %404
      %406 = vrot.lane.b32.xlu0 %v240, 108
      %v407 = vpop.permute.xlu0 %406
      %408 = vrot.lane.b32.xlu0 %v241, 108
      %v409 = vpop.permute.xlu0 %408
      %410 = vrot.lane.b32.xlu0 %v242, 108
      %v411 = vpop.permute.xlu0 %410
      %412 = vrot.lane.b32.xlu0 %v243, 108
      %v413 = vpop.permute.xlu0 %412
      %vm414 = vcmask 883712
      %v415 = vsel %vm414, %v399, %v401
      %v416 = vsel %vm414, %v401, %v403
      %v417 = vsel %vm414, %v403, %v405
      %v418 = vsel %vm414, %v407, %v409
      %v419 = vsel %vm414, %v409, %v411
      %v420 = vsel %vm414, %v411, %v413
      %427 = vst [vmem:[#allocation2 + $0xf0] sm:$0xff] %v415
      %428 = vst [vmem:[#allocation2 + $0xf8] sm:$0xff] %v416
      %429 = vst [vmem:[#allocation2 + $0x100] sm:$0xff] %v417
      %430 = vst [vmem:[#allocation2 + $0x108] sm:$0xff] %v418
      %431 = vst [vmem:[#allocation2 + $0x110] sm:$0xff] %v419
      %432 = vst [vmem:[#allocation2 + $0x118] sm:$0xff] %v420
      %433 = vrot.lane.b32.xlu0 %v236, 92
      %v434 = vpop.permute.xlu0 %433
      %435 = vrot.lane.b32.xlu0 %v237, 92
      %v436 = vpop.permute.xlu0 %435
      %437 = vrot.lane.b32.xlu0 %v238, 92
      %v438 = vpop.permute.xlu0 %437
      %439 = vrot.lane.b32.xlu0 %v239, 92
      %v440 = vpop.permute.xlu0 %439
      %441 = vrot.lane.b32.xlu0 %v240, 92
      %v442 = vpop.permute.xlu0 %441
      %443 = vrot.lane.b32.xlu0 %v241, 92
      %v444 = vpop.permute.xlu0 %443
      %445 = vrot.lane.b32.xlu0 %v242, 92
      %v446 = vpop.permute.xlu0 %445
      %447 = vrot.lane.b32.xlu0 %v243, 92
      %v448 = vpop.permute.xlu0 %447
      %vm449 = vcmask 752640
      %v450 = vsel %vm449, %v434, %v436
      %v451 = vsel %vm449, %v436, %v438
      %v452 = vsel %vm449, %v438, %v440
      %v453 = vsel %vm449, %v442, %v444
      %v454 = vsel %vm449, %v444, %v446
      %v455 = vsel %vm449, %v446, %v448
      %462 = vst [vmem:[#allocation2 + $0x120] sm:$0xff] %v450
      %463 = vst [vmem:[#allocation2 + $0x128] sm:$0xff] %v451
      %464 = vst [vmem:[#allocation2 + $0x130] sm:$0xff] %v452
      %465 = vst [vmem:[#allocation2 + $0x138] sm:$0xff] %v453
      %466 = vst [vmem:[#allocation2 + $0x140] sm:$0xff] %v454
      %467 = vst [vmem:[#allocation2 + $0x148] sm:$0xff] %v455
      %468 = vrot.lane.b32.xlu0 %v236, 91
      %v469 = vpop.permute.xlu0 %468
      %470 = vrot.lane.b32.xlu0 %v237, 91
      %v471 = vpop.permute.xlu0 %470
      %472 = vrot.lane.b32.xlu0 %v238, 91
      %v473 = vpop.permute.xlu0 %472
      %474 = vrot.lane.b32.xlu0 %v239, 91
      %v475 = vpop.permute.xlu0 %474
      %476 = vrot.lane.b32.xlu0 %v240, 91
      %v477 = vpop.permute.xlu0 %476
      %478 = vrot.lane.b32.xlu0 %v241, 91
      %v479 = vpop.permute.xlu0 %478
      %480 = vrot.lane.b32.xlu0 %v242, 91
      %v481 = vpop.permute.xlu0 %480
      %482 = vrot.lane.b32.xlu0 %v243, 91
      %v483 = vpop.permute.xlu0 %482
      %vm484 = vcmask 744448
      %v485 = vsel %vm484, %v469, %v471
      %v486 = vsel %vm484, %v471, %v473
      %v487 = vsel %vm484, %v473, %v475
      %v488 = vsel %vm484, %v477, %v479
      %v489 = vsel %vm484, %v479, %v481
      %v490 = vsel %vm484, %v481, %v483
      %497 = vst [vmem:[#allocation2 + $0x150] sm:$0xff] %v485
      %498 = vst [vmem:[#allocation2 + $0x158] sm:$0xff] %v486
      %499 = vst [vmem:[#allocation2 + $0x160] sm:$0xff] %v487
      %500 = vst [vmem:[#allocation2 + $0x168] sm:$0xff] %v488
      %501 = vst [vmem:[#allocation2 + $0x170] sm:$0xff] %v489
      %502 = vst [vmem:[#allocation2 + $0x178] sm:$0xff] %v490
      %503 = vrot.lane.b32.xlu0 %v236, 90
      %v504 = vpop.permute.xlu0 %503
      %505 = vrot.lane.b32.xlu0 %v237, 90
      %v506 = vpop.permute.xlu0 %505
      %507 = vrot.lane.b32.xlu0 %v238, 90
      %v508 = vpop.permute.xlu0 %507
      %509 = vrot.lane.b32.xlu0 %v239, 90
      %v510 = vpop.permute.xlu0 %509
      %511 = vrot.lane.b32.xlu0 %v240, 90
      %v512 = vpop.permute.xlu0 %511
      %513 = vrot.lane.b32.xlu0 %v241, 90
      %v514 = vpop.permute.xlu0 %513
      %515 = vrot.lane.b32.xlu0 %v242, 90
      %v516 = vpop.permute.xlu0 %515
      %517 = vrot.lane.b32.xlu0 %v243, 90
      %v518 = vpop.permute.xlu0 %517
      %vm519 = vcmask 736256
      %v520 = vsel %vm519, %v504, %v506
      %v521 = vsel %vm519, %v506, %v508
      %v522 = vsel %vm519, %v508, %v510
      %v523 = vsel %vm519, %v512, %v514
      %v524 = vsel %vm519, %v514, %v516
      %v525 = vsel %vm519, %v516, %v518
      %532 = vst [vmem:[#allocation2 + $0x180] sm:$0xff] %v520
      %533 = vst [vmem:[#allocation2 + $0x188] sm:$0xff] %v521
      %534 = vst [vmem:[#allocation2 + $0x190] sm:$0xff] %v522
      %535 = vst [vmem:[#allocation2 + $0x198] sm:$0xff] %v523
      %536 = vst [vmem:[#allocation2 + $0x1a0] sm:$0xff] %v524
      %537 = vst [vmem:[#allocation2 + $0x1a8] sm:$0xff] %v525
      %v538 = vld [vmem:[%s1] sm:$0xff]
      %v539 = vld [vmem:[%s1 + $0x8] sm:$0xf]
      %v540 = vld [vmem:[%s1 + $0xc] sm:$0xff]
      %v541 = vld [vmem:[%s1 + $0x14] sm:$0xf]
      %v542 = vld [vmem:[%s1 + $0x18] sm:$0xff]
      %v543 = vld [vmem:[%s1 + $0x20] sm:$0xf]
      %v544 = vld [vmem:[%s1 + $0x24] sm:$0xff]
      %v545 = vld [vmem:[%s1 + $0x2c] sm:$0xf]
      %v546 = vld [vmem:[#allocation2] sm:$0xff]
      %v547 = vld [vmem:[#allocation2 + $0x8] sm:$0xff]
      %v548 = vld [vmem:[#allocation2 + $0x10] sm:$0xff]
      %v549 = vld [vmem:[#allocation2 + $0x18] sm:$0xff]
      %v550 = vld [vmem:[#allocation2 + $0x20] sm:$0xff]
      %v551 = vld [vmem:[#allocation2 + $0x28] sm:$0xff]
      %v552 = vld [vmem:[#allocation2 + $0x30] sm:$0xff]
      %v553 = vld [vmem:[#allocation2 + $0x38] sm:$0xff]
      %v554 = vld [vmem:[#allocation2 + $0x40] sm:$0xff]
      %v555 = vld [vmem:[#allocation2 + $0x48] sm:$0xff]
      %v556 = vld [vmem:[#allocation2 + $0x50] sm:$0xff]
      %v557 = vld [vmem:[#allocation2 + $0x58] sm:$0xff]
      %v558 = vld [vmem:[#allocation2 + $0x60] sm:$0xff]
      %v559 = vld [vmem:[#allocation2 + $0x68] sm:$0xff]
      %v560 = vld [vmem:[#allocation2 + $0x70] sm:$0xff]
      %v561 = vld [vmem:[#allocation2 + $0x78] sm:$0xff]
      %v562 = vld [vmem:[#allocation2 + $0x80] sm:$0xff]
      %v563 = vld [vmem:[#allocation2 + $0x88] sm:$0xff]
      %v564 = vld [vmem:[#allocation2 + $0x90] sm:$0xff]
      %v565 = vld [vmem:[#allocation2 + $0x98] sm:$0xff]
      %v566 = vld [vmem:[#allocation2 + $0xa0] sm:$0xff]
      %v567 = vld [vmem:[#allocation2 + $0xa8] sm:$0xff]
      %v568 = vld [vmem:[#allocation2 + $0xb0] sm:$0xff]
      %v569 = vld [vmem:[#allocation2 + $0xb8] sm:$0xff]
      %v570 = vld [vmem:[#allocation2 + $0xc0] sm:$0xff]
      %v571 = vld [vmem:[#allocation2 + $0xc8] sm:$0xff]
      %v572 = vld [vmem:[#allocation2 + $0xd0] sm:$0xff]
      %v573 = vld [vmem:[#allocation2 + $0xd8] sm:$0xff]
      %v574 = vld [vmem:[#allocation2 + $0xe0] sm:$0xff]
      %v575 = vld [vmem:[#allocation2 + $0xe8] sm:$0xff]
      %v576 = vld [vmem:[#allocation2 + $0xf0] sm:$0xff]
      %v577 = vld [vmem:[#allocation2 + $0xf8] sm:$0xff]
      %v578 = vld [vmem:[#allocation2 + $0x100] sm:$0xff]
      %v579 = vld [vmem:[#allocation2 + $0x108] sm:$0xff]
      %v580 = vld [vmem:[#allocation2 + $0x110] sm:$0xff]
      %v581 = vld [vmem:[#allocation2 + $0x118] sm:$0xff]
      %v582 = vld [vmem:[#allocation2 + $0x120] sm:$0xff]
      %v583 = vld [vmem:[#allocation2 + $0x128] sm:$0xff]
      %v584 = vld [vmem:[#allocation2 + $0x130] sm:$0xff]
      %v585 = vld [vmem:[#allocation2 + $0x138] sm:$0xff]
      %v586 = vld [vmem:[#allocation2 + $0x140] sm:$0xff]
      %v587 = vld [vmem:[#allocation2 + $0x148] sm:$0xff]
      %v588 = vld [vmem:[#allocation2 + $0x150] sm:$0xff]
      %v589 = vld [vmem:[#allocation2 + $0x158] sm:$0xff]
      %v590 = vld [vmem:[#allocation2 + $0x160] sm:$0xff]
      %v591 = vld [vmem:[#allocation2 + $0x168] sm:$0xff]
      %v592 = vld [vmem:[#allocation2 + $0x170] sm:$0xff]
      %v593 = vld [vmem:[#allocation2 + $0x178] sm:$0xff]
      %v594 = vld [vmem:[#allocation2 + $0x180] sm:$0xff]
      %v595 = vld [vmem:[#allocation2 + $0x188] sm:$0xff]
      %v596 = vld [vmem:[#allocation2 + $0x190] sm:$0xff]
      %v597 = vld [vmem:[#allocation2 + $0x198] sm:$0xff]
      %v598 = vld [vmem:[#allocation2 + $0x1a0] sm:$0xff]
      %v599 = vld [vmem:[#allocation2 + $0x1a8] sm:$0xff]
      %v600 = vld [vmem:[%s2] sm:$0xff]
      %v601 = vld [vmem:[%s2 + $0x8] sm:$0xff]
      %v602 = vld [vmem:[%s2 + $0x10] sm:$0xff]
      %v603 = vld [vmem:[%s2 + $0x18] sm:$0xff]
      %605 = vset.pattern.permute.xlu0 0
      %606 = vperm.xlu0 %605, %v600
      %v607 = vpop.permute.xlu0 %606
      %610 = vset.pattern.permute.xlu0 0
      %611 = vperm.xlu0 %610, %v601
      %v612 = vpop.permute.xlu0 %611
      %615 = vset.pattern.permute.xlu0 0
      %616 = vperm.xlu0 %615, %v602
      %v617 = vpop.permute.xlu0 %616
      %620 = vset.pattern.permute.xlu0 0
      %621 = vperm.xlu0 %620, %v603
      %v622 = vpop.permute.xlu0 %621
      %v632 = vunpack.c.l.b16 %v538
      %v633 = vunpack.c.h.b16 %v538
      %v634 = vunpack.c.l.b16 %v539
      %v635 = vunpack.c.l.b16 %v540
      %v636 = vunpack.c.h.b16 %v540
      %v637 = vunpack.c.l.b16 %v541
      %v638 = vunpack.c.l.b16 %v542
      %v639 = vunpack.c.h.b16 %v542
      %v640 = vunpack.c.l.b16 %v543
      %v641 = vunpack.c.l.b16 %v544
      %v642 = vunpack.c.h.b16 %v544
      %v643 = vunpack.c.l.b16 %v545
      %v644 = vpack.c.b16 %v635, %v632
      %v645 = vpack.c.b16 %v636, %v633
      %v646 = vpack.c.b16 %v637, %v634
      %v647 = vpack.c.b16 %v641, %v638
      %v648 = vpack.c.b16 %v642, %v639
      %v649 = vpack.c.b16 %v643, %v640
      %vm654 = vcmask 261120
      %v656 = vsel %vm654, %v646, 0
      %v659 = vsel %vm654, %v649, 0
      %661 = vmatprep.subr.bf16.mxu0 %v547
      %662 = vmatpush1.bf16.msra.mxu0 %v546
      %663 = vmatprep.subr.bf16.mxu0 %v550
      %664 = vmatpush1.bf16.msra.mxu0 %v549
      %665 = vmatprep.subr.bf16.mxu0 %v553
      %666 = vmatpush1.bf16.msra.mxu0 %v552
      %667 = vmatprep.subr.bf16.mxu0 %v556
      %668 = vmatpush1.bf16.msra.mxu0 %v555
      %669 = vmatprep.subr.bf16.mxu0 %v559
      %670 = vmatpush1.bf16.msra.mxu0 %v558
      %671 = vmatprep.subr.bf16.mxu0 %v562
      %672 = vmatpush1.bf16.msra.mxu0 %v561
      %673 = vmatprep.subr.bf16.mxu0 %v565
      %674 = vmatpush1.bf16.msra.mxu0 %v564
      %675 = vmatprep.subr.bf16.mxu0 %v568
      %676 = vmatpush1.bf16.msra.mxu0 %v567
      %677 = vmatprep.subr.bf16.mxu0 %v571
      %678 = vmatpush1.bf16.msra.mxu0 %v570
      %679 = vmatprep.subr.bf16.mxu0 %v574
      %680 = vmatpush1.bf16.msra.mxu0 %v573
      %681 = vmatprep.subr.bf16.mxu0 %v577
      %682 = vmatpush1.bf16.msra.mxu0 %v576
      %683 = vmatprep.subr.bf16.mxu0 %v580
      %684 = vmatpush1.bf16.msra.mxu0 %v579
      %685 = vmatprep.subr.bf16.mxu0 %v583
      %686 = vmatpush1.bf16.msra.mxu0 %v582
      %687 = vmatprep.subr.bf16.mxu0 %v586
      %688 = vmatpush1.bf16.msra.mxu0 %v585
      %689 = vmatprep.subr.bf16.mxu0 %v589
      %690 = vmatpush1.bf16.msra.mxu0 %v588
      %691 = vmatprep.subr.bf16.mxu0 %v592
      %692 = vmatpush1.bf16.msra.mxu0 %v591
      %693 = vmatprep.mubr.bf16.mxu0 %v645
      %694 = vmatmul.mubr.bf16.gmra.mrb[0].mxu0 %v644
      %v695 = vpop.f32.mrb[0].mxu0
      %v696 = vadd.f32 %v607, %v695
      %v697 = vpop.f32.mrb[0].mxu0
      %v698 = vadd.f32 %v607, %v697
      %v699 = vpop.f32.mrb[0].mxu0
      %v700 = vadd.f32 %v612, %v699
      %v701 = vpop.f32.mrb[0].mxu0
      %v702 = vadd.f32 %v612, %v701
      %703 = vmatprep.mubr.bf16.mxu0 %v648
      %704 = vmatmul.mubr.bf16.gmra.mrb[0].mxu0 %v647
      %v705 = vpop.f32.mrb[0].mxu0
      %v706 = vadd.f32 %v617, %v705
      %v707 = vpop.f32.mrb[0].mxu0
      %v708 = vadd.f32 %v617, %v707
      %v709 = vpop.f32.mrb[0].mxu0
      %v710 = vadd.f32 %v622, %v709
      %v711 = vpop.f32.mrb[0].mxu0
      %v712 = vadd.f32 %v622, %v711
      %713 = vdwg.mxu0
      %714 = vmatprep.subr.bf16.mxu0 %v595
      %715 = vmatpush1.bf16.msra.mxu0 %v594
      %716 = vmatprep.subr.bf16.mxu0 %v598
      %717 = vmatpush1.bf16.msra.mxu0 %v597
      %718 = vmatprep.subr.bf16.mxu0 0
      %719 = vmatpush1.bf16.msra.mxu0 0
      %720 = vmatprep.subr.bf16.mxu0 0
      %721 = vmatpush1.bf16.msra.mxu0 0
      %722 = vmatprep.subr.bf16.mxu0 0
      %723 = vmatpush1.bf16.msra.mxu0 0
      %724 = vmatprep.subr.bf16.mxu0 0
      %725 = vmatpush1.bf16.msra.mxu0 0
      %726 = vmatprep.subr.bf16.mxu0 0
      %727 = vmatpush1.bf16.msra.mxu0 0
      %728 = vmatprep.subr.bf16.mxu0 0
      %729 = vmatpush1.bf16.msra.mxu0 0
      %730 = vmatprep.subr.bf16.mxu0 0
      %731 = vmatpush1.bf16.msra.mxu0 0
      %732 = vmatprep.subr.bf16.mxu0 0
      %733 = vmatpush1.bf16.msra.mxu0 0
      %734 = vmatprep.subr.bf16.mxu0 0
      %735 = vmatpush1.bf16.msra.mxu0 0
      %736 = vmatprep.subr.bf16.mxu0 0
      %737 = vmatpush1.bf16.msra.mxu0 0
      %738 = vmatprep.subr.bf16.mxu0 0
      %739 = vmatpush1.bf16.msra.mxu0 0
      %740 = vmatprep.subr.bf16.mxu0 0
      %741 = vmatpush1.bf16.msra.mxu0 0
      %742 = vmatprep.subr.bf16.mxu0 0
      %743 = vmatpush1.bf16.msra.mxu0 0
      %744 = vmatprep.subr.bf16.mxu0 0
      %745 = vmatpush1.bf16.msra.mxu0 0
      %746 = vmatprep.mubr.bf16.mxu0 0
      %747 = vmatmul.mubr.bf16.gmra.mrb[0].mxu0 %v656
      %v748 = vpop.f32.mrb[0].mxu0
      %v749 = vadd.f32 %v696, %v748
      %v750 = vpop.f32.mrb[0].mxu0
      %v751 = vadd.f32 %v698, %v750
      %v752 = vpop.f32.mrb[0].mxu0
      %v753 = vadd.f32 %v700, %v752
      %v754 = vpop.f32.mrb[0].mxu0
      %v755 = vadd.f32 %v702, %v754
      %756 = vmatprep.mubr.bf16.mxu0 0
      %757 = vmatmul.mubr.bf16.gmra.mrb[0].mxu0 %v659
      %v758 = vpop.f32.mrb[0].mxu0
      %v759 = vadd.f32 %v706, %v758
      %v760 = vpop.f32.mrb[0].mxu0
      %v761 = vadd.f32 %v708, %v760
      %v762 = vpop.f32.mrb[0].mxu0
      %v763 = vadd.f32 %v710, %v762
      %v764 = vpop.f32.mrb[0].mxu0
      %v765 = vadd.f32 %v712, %v764
      %766 = vdwg.mxu0
      %767 = vmatprep.subr.bf16.mxu0 0
      %768 = vmatpush1.bf16.msra.mxu0 %v548
      %769 = vmatprep.subr.bf16.mxu0 0
      %770 = vmatpush1.bf16.msra.mxu0 %v551
      %771 = vmatprep.subr.bf16.mxu0 0
      %772 = vmatpush1.bf16.msra.mxu0 %v554
      %773 = vmatprep.subr.bf16.mxu0 0
      %774 = vmatpush1.bf16.msra.mxu0 %v557
      %775 = vmatprep.subr.bf16.mxu0 0
      %776 = vmatpush1.bf16.msra.mxu0 %v560
      %777 = vmatprep.subr.bf16.mxu0 0
      %778 = vmatpush1.bf16.msra.mxu0 %v563
      %779 = vmatprep.subr.bf16.mxu0 0
      %780 = vmatpush1.bf16.msra.mxu0 %v566
      %781 = vmatprep.subr.bf16.mxu0 0
      %782 = vmatpush1.bf16.msra.mxu0 %v569
      %783 = vmatprep.subr.bf16.mxu0 0
      %784 = vmatpush1.bf16.msra.mxu0 %v572
      %785 = vmatprep.subr.bf16.mxu0 0
      %786 = vmatpush1.bf16.msra.mxu0 %v575
      %787 = vmatprep.subr.bf16.mxu0 0
      %788 = vmatpush1.bf16.msra.mxu0 %v578
      %789 = vmatprep.subr.bf16.mxu0 0
      %790 = vmatpush1.bf16.msra.mxu0 %v581
      %791 = vmatprep.subr.bf16.mxu0 0
      %792 = vmatpush1.bf16.msra.mxu0 %v584
      %793 = vmatprep.subr.bf16.mxu0 0
      %794 = vmatpush1.bf16.msra.mxu0 %v587
      %795 = vmatprep.subr.bf16.mxu0 0
      %796 = vmatpush1.bf16.msra.mxu0 %v590
      %797 = vmatprep.subr.bf16.mxu0 0
      %798 = vmatpush1.bf16.msra.mxu0 %v593
      %799 = vmatprep.mubr.bf16.mxu0 %v645
      %800 = vmatmul.mubr.bf16.gmra.mrb[0].mxu0 %v644
      %v801 = vpop.f32.mrb[0].mxu0
      %v802 = vadd.f32 %v607, %v801
      %v803 = vpop.f32.mrb[0].mxu0
      %v804 = vpop.f32.mrb[0].mxu0
      %v805 = vadd.f32 %v612, %v804
      %v806 = vpop.f32.mrb[0].mxu0
      %807 = vmatprep.mubr.bf16.mxu0 %v648
      %808 = vmatmul.mubr.bf16.gmra.mrb[0].mxu0 %v647
      %v809 = vpop.f32.mrb[0].mxu0
      %v810 = vadd.f32 %v617, %v809
      %v811 = vpop.f32.mrb[0].mxu0
      %v812 = vpop.f32.mrb[0].mxu0
      %v813 = vadd.f32 %v622, %v812
      %v814 = vpop.f32.mrb[0].mxu0
      %815 = vdwg.mxu0
      %816 = vmatprep.subr.bf16.mxu0 0
      %817 = vmatpush1.bf16.msra.mxu0 %v596
      %818 = vmatprep.subr.bf16.mxu0 0
      %819 = vmatpush1.bf16.msra.mxu0 %v599
      %820 = vmatprep.subr.bf16.mxu0 0
      %821 = vmatpush1.bf16.msra.mxu0 0
      %822 = vmatprep.subr.bf16.mxu0 0
      %823 = vmatpush1.bf16.msra.mxu0 0
      %824 = vmatprep.subr.bf16.mxu0 0
      %825 = vmatpush1.bf16.msra.mxu0 0
      %826 = vmatprep.subr.bf16.mxu0 0
      %827 = vmatpush1.bf16.msra.mxu0 0
      %828 = vmatprep.subr.bf16.mxu0 0
      %829 = vmatpush1.bf16.msra.mxu0 0
      %830 = vmatprep.subr.bf16.mxu0 0
      %831 = vmatpush1.bf16.msra.mxu0 0
      %832 = vmatprep.subr.bf16.mxu0 0
      %833 = vmatpush1.bf16.msra.mxu0 0
      %834 = vmatprep.subr.bf16.mxu0 0
      %835 = vmatpush1.bf16.msra.mxu0 0
      %836 = vmatprep.subr.bf16.mxu0 0
      %837 = vmatpush1.bf16.msra.mxu0 0
      %838 = vmatprep.subr.bf16.mxu0 0
      %839 = vmatpush1.bf16.msra.mxu0 0
      %840 = vmatprep.subr.bf16.mxu0 0
      %841 = vmatpush1.bf16.msra.mxu0 0
      %842 = vmatprep.subr.bf16.mxu0 0
      %843 = vmatpush1.bf16.msra.mxu0 0
      %844 = vmatprep.subr.bf16.mxu0 0
      %845 = vmatpush1.bf16.msra.mxu0 0
      %846 = vmatprep.subr.bf16.mxu0 0
      %847 = vmatpush1.bf16.msra.mxu0 0
      %848 = vmatprep.mubr.bf16.mxu0 0
      %849 = vmatmul.mubr.bf16.gmra.mrb[0].mxu0 %v656
      %v850 = vpop.f32.mrb[0].mxu0
      %v851 = vadd.f32 %v802, %v850
      %v852 = vpop.f32.mrb[0].mxu0
      %v853 = vpop.f32.mrb[0].mxu0
      %v854 = vadd.f32 %v805, %v853
      %v855 = vpop.f32.mrb[0].mxu0
      %856 = vmatprep.mubr.bf16.mxu0 0
      %857 = vmatmul.mubr.bf16.gmra.mrb[0].mxu0 %v659
      %v858 = vpop.f32.mrb[0].mxu0
      %v859 = vadd.f32 %v810, %v858
      %v860 = vpop.f32.mrb[0].mxu0
      %v861 = vpop.f32.mrb[0].mxu0
      %v862 = vadd.f32 %v813, %v861
      %v863 = vpop.f32.mrb[0].mxu0
      %864 = vdwg.mxu0
      %865 = vst [vmem:[%s170] sm:$0xff] %v749
      %866 = vst [vmem:[%s170 + $0x8] sm:$0xff] %v751
      %867 = vst [vmem:[%s170 + $0x10] sm:$0xff] %v851
      %868 = vst [vmem:[%s170 + $0x18] sm:$0xff] %v753
      %869 = vst [vmem:[%s170 + $0x20] sm:$0xff] %v755
      %870 = vst [vmem:[%s170 + $0x28] sm:$0xff] %v854
      %871 = vst [vmem:[%s170 + $0x30] sm:$0xff] %v759
      %872 = vst [vmem:[%s170 + $0x38] sm:$0xff] %v761
      %873 = vst [vmem:[%s170 + $0x40] sm:$0xff] %v859
      %874 = vst [vmem:[%s170 + $0x48] sm:$0xff] %v763
      %875 = vst [vmem:[%s170 + $0x50] sm:$0xff] %v765
      %876 = vst [vmem:[%s170 + $0x58] sm:$0xff] %v862
      %p877 = scmp.lt.s32.totalorder %s14, 1
      %s878 = scalar_select %p877, %s14, 1
      %s879 = smul.addr %s878, 12
      %s880 = smul.addr %s879, 8
      %s881 = scalar_lea.vmem %s3, %s880
      // Predicated region
      $region33: #{_lambda_.6} parent=31 // pred_check
        %p882 = pneg %p100
      $region34: #{_lambda_.6} parent=31 // pred_check_branch
        %884 = sbr.rel (%p882) target = $region36
      $region35: #{_lambda_.6} parent=31 // pred_region
        _
      $region36: #{_lambda_.6} parent=31 // pred_fallthru
        _
    $region32: #{_lambda_.6} parent=5 // pred_fallthru
      _
    %p885 = scmp.le.s32.totalorder 2, %s9
    // Predicated region
    $region37: #{_lambda_.6} parent=5 // pred_check
      %p886 = pneg %p885
    $region38: #{_lambda_.6} parent=5 // pred_check_branch
      %888 = sbr.rel (%p886) target = $region40
    $region39: #{_lambda_.6} parent=5 // pred_region
      %s889 = ssub.s32 %s9, 2
      // Predicated region
      $region41: #{_lambda_.6} parent=39 // pred_check
        %p890 = pneg %p106
      $region42: #{_lambda_.6} parent=39 // pred_check_branch
        %892 = sbr.rel (%p890) target = $region44
      $region43: #{_lambda_.6} parent=39 // pred_region
        %p893 = scmp.lt.s32.totalorder %s15, 1
        %s894 = scalar_select %p893, %s15, 1
        %s895 = smul.addr %s894, 12
        %s896 = smul.addr %s895, 8
        %s897 = scalar_lea.vmem %s3, %s896
      $region44: #{_lambda_.6} parent=39 // pred_fallthru
        _
    $region40: #{_lambda_.6} parent=5 // pred_fallthru
      _
  $region6: #{_lambda_.6} parent=0 // loop_footer
    %s13 = sadd.s32 1, %s9
  $region7: #{_lambda_.6} parent=0 // loop_footer_branch
    %8 = sbr.rel target = $region3
  $region8: #{_lambda_.6} parent=0 // loop_exit
    _

// kernel: _lambda_.4
$region0: #{_lambda_.4}
  #allocation0 [shape = 'u32[]', space=smem, size = 0x4, offset = 0x4, fixed_abs, tag = 'smem constant byte address 0x4 - core index']
  #allocation1 [shape = 'u32[144,128]{1,0:T(1,128)}', space=vmem, size = 0x12000, scoped, tag = 'internal scratch']
  #allocation2 [shape = 'bf16[288,384]{1,0:T(16,128)(2,1)}', space=vmem, size = 0x36000, scoped, tag = 'scratch operand']
  %s0 = inlined_call_operand.vmem [shape: f32[2,32,512], index: 0, kind: input, shape index: {}]
  %s1 = inlined_call_operand.vmem [shape: f32[32,1], index: 1, kind: input, shape index: {}]
  %s2 = inlined_call_operand.vmem [shape: f32[32,1], index: 2, kind: input, shape index: {}]
  %s3 = inlined_call_operand.vmem [shape: bf16[32,288], index: 3, kind: input, shape index: {}]
  %s4 = inlined_call_operand.vmem [shape: f32[32,1], index: 4, kind: input, shape index: {}]
  %s5 = inlined_call_operand.vmem [shape: f32[2,32,384], index: 5, kind: output, shape index: {}]
  %s6 = sld [smem:[#allocation0]]
  $region53: #{_lambda_.4} parent=0
    _
  %s8 = ssub.s32 1, %s6
  %s9 = scalar_select 0, %s8, %s6
  loop: start=0, step=1, limit=4
  $region2: #{_lambda_.4} parent=0 // loop_pre_header
    _
  $region3: #{_lambda_.4} parent=0 // loop_header
    %s11 = sphi 0, %s15
    %p12 = scmp.ge.s32.totalorder %s11, 4
    %s21 = sphi 0, %s23
    %s24 = sphi 0, %s21
    %s25 = sphi 0, %s24
    %s41 = sphi 0, %s25
    %s45 = sphi 0, %s45
    %s47 = sphi 0, %s45
    %s48 = sphi 0, %s47
    %s62 = sphi 0, %s48
    %s66 = sphi 0, %s66
    %s68 = sphi 0, %s66
    %s69 = sphi 0, %s68
    %s83 = sphi 0, %s69
    %s87 = sphi 0, %s87
    %s89 = sphi 0, %s87
    %s90 = sphi 0, %s89
    %s104 = sphi 0, %s90
    %s108 = sphi 0, %s108
    %s110 = sphi 0, %s108
    %s111 = sphi 0, %s110
    %s125 = sphi 0, %s111
    %s131 = sphi 0, %s133
    %s134 = sphi 0, %s131
    %s135 = sphi 0, %s134
    %s151 = sphi 0, %s135
  $region4: #{_lambda_.4} parent=0 // loop_header_branch
    %14 = sbr.rel (%p12) target = $region8
  $region5: #{_lambda_.4} parent=0 // loop_body
    %s16 = ssub.s32 %s11, 1
    %s17 = ssub.s32 %s11, 2
    %s18 = sadd.s32 %s11, 1
    %s19 = ssub.s32 %s11, %s18
    %p20 = scmp.eq.s32.totalorder %s19, 0
    %s22 = sadd.s32 %s21, 1
    %s23 = scalar_select %p20, %s21, %s22
    %p26 = pneg %p20
    %p27 = scmp.eq.s32.totalorder %s11, 1
    %p28 = por %p26, %p27
    %p29 = scmp.ne.s32.totalorder %s21, %s24
    %p30 = scmp.eq.s32.totalorder %s11, 0
    %p31 = por %p29, %p30
    %p32 = scmp.ne.s32.totalorder %s21, %s24
    %p33 = scmp.eq.s32.totalorder %s16, 1
    %p34 = por %p32, %p33
    %p35 = scmp.ne.s32.totalorder %s24, %s25
    %p36 = scmp.eq.s32.totalorder %s16, 0
    %p37 = por %p35, %p36
    %p38 = scmp.ne.s32.totalorder %s24, %s25
    %p39 = scmp.eq.s32.totalorder %s17, 1
    %p40 = por %p38, %p39
    %p42 = scmp.ne.s32.totalorder %s25, %s41
    %p43 = scmp.eq.s32.totalorder %s17, 0
    %p44 = por %p42, %p43
    %s46 = sadd.s32 %s45, 1
    %p49 = scmp.eq.s32.totalorder %s11, 1
    %p50 = scmp.ne.s32.totalorder %s45, %s47
    %p51 = scmp.eq.s32.totalorder %s11, 0
    %p52 = por %p50, %p51
    %p53 = scmp.ne.s32.totalorder %s45, %s47
    %p54 = scmp.eq.s32.totalorder %s16, 1
    %p55 = por %p53, %p54
    %p56 = scmp.ne.s32.totalorder %s47, %s48
    %p57 = scmp.eq.s32.totalorder %s16, 0
    %p58 = por %p56, %p57
    %p59 = scmp.ne.s32.totalorder %s47, %s48
    %p60 = scmp.eq.s32.totalorder %s17, 1
    %p61 = por %p59, %p60
    %p63 = scmp.ne.s32.totalorder %s48, %s62
    %p64 = scmp.eq.s32.totalorder %s17, 0
    %p65 = por %p63, %p64
    %s67 = sadd.s32 %s66, 1
    %p70 = scmp.eq.s32.totalorder %s11, 1
    %p71 = scmp.ne.s32.totalorder %s66, %s68
    %p72 = scmp.eq.s32.totalorder %s11, 0
    %p73 = por %p71, %p72
    %p74 = scmp.ne.s32.totalorder %s66, %s68
    %p75 = scmp.eq.s32.totalorder %s16, 1
    %p76 = por %p74, %p75
    %p77 = scmp.ne.s32.totalorder %s68, %s69
    %p78 = scmp.eq.s32.totalorder %s16, 0
    %p79 = por %p77, %p78
    %p80 = scmp.ne.s32.totalorder %s68, %s69
    %p81 = scmp.eq.s32.totalorder %s17, 1
    %p82 = por %p80, %p81
    %p84 = scmp.ne.s32.totalorder %s69, %s83
    %p85 = scmp.eq.s32.totalorder %s17, 0
    %p86 = por %p84, %p85
    %s88 = sadd.s32 %s87, 1
    %p91 = scmp.eq.s32.totalorder %s11, 1
    %p92 = scmp.ne.s32.totalorder %s87, %s89
    %p93 = scmp.eq.s32.totalorder %s11, 0
    %p94 = por %p92, %p93
    %p95 = scmp.ne.s32.totalorder %s87, %s89
    %p96 = scmp.eq.s32.totalorder %s16, 1
    %p97 = por %p95, %p96
    %p98 = scmp.ne.s32.totalorder %s89, %s90
    %p99 = scmp.eq.s32.totalorder %s16, 0
    %p100 = por %p98, %p99
    %p101 = scmp.ne.s32.totalorder %s89, %s90
    %p102 = scmp.eq.s32.totalorder %s17, 1
    %p103 = por %p101, %p102
    %p105 = scmp.ne.s32.totalorder %s90, %s104
    %p106 = scmp.eq.s32.totalorder %s17, 0
    %p107 = por %p105, %p106
    %s109 = sadd.s32 %s108, 1
    %p112 = scmp.eq.s32.totalorder %s11, 1
    %p113 = scmp.ne.s32.totalorder %s108, %s110
    %p114 = scmp.eq.s32.totalorder %s11, 0
    %p115 = por %p113, %p114
    %p116 = scmp.ne.s32.totalorder %s108, %s110
    %p117 = scmp.eq.s32.totalorder %s16, 1
    %p118 = por %p116, %p117
    %p119 = scmp.ne.s32.totalorder %s110, %s111
    %p120 = scmp.eq.s32.totalorder %s16, 0
    %p121 = por %p119, %p120
    %p122 = scmp.ne.s32.totalorder %s110, %s111
    %p123 = scmp.eq.s32.totalorder %s17, 1
    %p124 = por %p122, %p123
    %p126 = scmp.ne.s32.totalorder %s111, %s125
    %p127 = scmp.eq.s32.totalorder %s17, 0
    %p128 = por %p126, %p127
    %s129 = ssub.s32 %s11, %s18
    %p130 = scmp.eq.s32.totalorder %s129, 0
    %s132 = sadd.s32 %s131, 1
    %s133 = scalar_select %p130, %s131, %s132
    %p136 = pneg %p130
    %p137 = scmp.eq.s32.totalorder %s11, 1
    %p138 = por %p136, %p137
    %p139 = scmp.ne.s32.totalorder %s131, %s134
    %p140 = scmp.eq.s32.totalorder %s11, 0
    %p141 = por %p139, %p140
    %p142 = scmp.ne.s32.totalorder %s131, %s134
    %p143 = scmp.eq.s32.totalorder %s16, 1
    %p144 = por %p142, %p143
    %p145 = scmp.ne.s32.totalorder %s134, %s135
    %p146 = scmp.eq.s32.totalorder %s16, 0
    %p147 = por %p145, %p146
    %p148 = scmp.ne.s32.totalorder %s134, %s135
    %p149 = scmp.eq.s32.totalorder %s17, 1
    %p150 = por %p148, %p149
    %p152 = scmp.ne.s32.totalorder %s135, %s151
    %p153 = scmp.eq.s32.totalorder %s17, 0
    %p154 = por %p152, %p153
    %p155 = scmp.le.s32.totalorder 1, %s11
    %p156 = scmp.lt.s32.totalorder %s11, 3
    %p157 = pnand %p155, %p156
    %p158 = pneg %p157
    // Predicated region
    $region9: #{_lambda_.4} parent=5 // pred_check
      _
    $region10: #{_lambda_.4} parent=5 // pred_check_branch
      %160 = sbr.rel (%p157) target = $region12
    $region11: #{_lambda_.4} parent=5 // pred_region
      %s161 = ssub.s32 %s11, 1
      // Predicated region
      $region13: #{_lambda_.4} parent=11 // pred_check
        %p162 = pneg %p58
      $region14: #{_lambda_.4} parent=11 // pred_check_branch
        %164 = sbr.rel (%p162) target = $region16
      $region15: #{_lambda_.4} parent=11 // pred_region
        _
      $region16: #{_lambda_.4} parent=11 // pred_fallthru
        _
      // Predicated region
      $region17: #{_lambda_.4} parent=11 // pred_check
        %p165 = pneg %p79
      $region18: #{_lambda_.4} parent=11 // pred_check_branch
        %167 = sbr.rel (%p165) target = $region20
      $region19: #{_lambda_.4} parent=11 // pred_region
        _
      $region20: #{_lambda_.4} parent=11 // pred_fallthru
        _
      // Predicated region
      $region21: #{_lambda_.4} parent=11 // pred_check
        %p168 = pneg %p100
      $region22: #{_lambda_.4} parent=11 // pred_check_branch
        %170 = sbr.rel (%p168) target = $region24
      $region23: #{_lambda_.4} parent=11 // pred_region
        _
      $region24: #{_lambda_.4} parent=11 // pred_fallthru
        _
      // Predicated region
      $region25: #{_lambda_.4} parent=11 // pred_check
        %p171 = pneg %p121
      $region26: #{_lambda_.4} parent=11 // pred_check_branch
        %173 = sbr.rel (%p171) target = $region28
      $region27: #{_lambda_.4} parent=11 // pred_region
        _
      $region28: #{_lambda_.4} parent=11 // pred_fallthru
        _
    $region12: #{_lambda_.4} parent=5 // pred_fallthru
      _
    %p174 = scmp.lt.s32.totalorder %s11, 2
    // Predicated region
    $region29: #{_lambda_.4} parent=5 // pred_check
      %p175 = pneg %p174
    $region30: #{_lambda_.4} parent=5 // pred_check_branch
      %177 = sbr.rel (%p175) target = $region32
    $region31: #{_lambda_.4} parent=5 // pred_region
      // Predicated region
      $region33: #{_lambda_.4} parent=31 // pred_check
        %p178 = pneg %p31
      $region34: #{_lambda_.4} parent=31 // pred_check_branch
        %180 = sbr.rel (%p178) target = $region36
      $region35: #{_lambda_.4} parent=31 // pred_region
        %p181 = scmp.lt.s32.totalorder %s11, 1
        %s182 = scalar_select %p181, %s11, 1
        %s183 = smul.addr %s182, 16
        %s184 = smul.addr %s183, 8
        %s185 = scalar_lea.vmem %s0, %s184
      $region36: #{_lambda_.4} parent=31 // pred_fallthru
        _
    $region32: #{_lambda_.4} parent=5 // pred_fallthru
      _
    %p186 = scmp.le.s32.totalorder 1, %s11
    %p187 = scmp.lt.s32.totalorder %s11, 3
    %p188 = pnand %p186, %p187
    %p189 = pneg %p188
    // Predicated region
    $region37: #{_lambda_.4} parent=5 // pred_check
      _
    $region38: #{_lambda_.4} parent=5 // pred_check_branch
      %191 = sbr.rel (%p188) target = $region40
    $region39: #{_lambda_.4} parent=5 // pred_region
      %s192 = ssub.s32 %s11, 1
      %p193 = scmp.lt.s32.totalorder %s16, 1
      %s194 = scalar_select %p193, %s16, 1
      %s195 = smul.addr %s194, 16
      %s196 = smul.addr %s195, 8
      %s197 = scalar_lea.vmem %s0, %s196
      %p198 = pneg %p37
      %p199 = pneg %p34
      %p200 = pneg %p58
      %p201 = pneg %p55
      %p202 = pneg %p79
      %p203 = pneg %p76
      %p204 = pneg %p100
      %p205 = pneg %p97
      %p206 = pneg %p121
      %p207 = pneg %p118
      %p208 = pneg %p147
      %p209 = pneg %p144
      %p210 = scmp.lt.s32.totalorder %s16, 1
      %s211 = scalar_select %p210, %s16, 1
      %s212 = smul.addr %s211, 12
      %s213 = smul.addr %s212, 8
      %s214 = scalar_lea.vmem %s5, %s213
      %p215 = scmp.lt.s32.totalorder %s16, 1
      %s216 = scalar_select %p215, %s16, 1
      %s217 = smul.addr %s216, 16
      %s218 = smul.addr %s217, 8
      %s219 = scalar_lea.vmem %s0, %s218
      %p220 = scmp.lt.s32.totalorder %s16, 1
      %s221 = scalar_select %p220, %s16, 1
      %s222 = smul.addr %s221, 12
      %s223 = smul.addr %s222, 8
      %s224 = scalar_lea.vmem %s5, %s223
      %v226 = vld [vmem:[%s219] sm:$0xff]
      %v227 = vld [vmem:[%s219 + $0x8] sm:$0xff]
      %v228 = vld [vmem:[%s219 + $0x10] sm:$0xff]
      %v229 = vld [vmem:[%s219 + $0x18] sm:$0xff]
      %v230 = vld [vmem:[%s219 + $0x20] sm:$0xff]
      %v231 = vld [vmem:[%s219 + $0x28] sm:$0xff]
      %v232 = vld [vmem:[%s219 + $0x30] sm:$0xff]
      %v233 = vld [vmem:[%s219 + $0x38] sm:$0xff]
      %v234 = vld [vmem:[%s219 + $0x40] sm:$0xff]
      %v235 = vld [vmem:[%s219 + $0x48] sm:$0xff]
      %v236 = vld [vmem:[%s219 + $0x50] sm:$0xff]
      %v237 = vld [vmem:[%s219 + $0x58] sm:$0xff]
      %v238 = vld [vmem:[%s219 + $0x60] sm:$0xff]
      %v239 = vld [vmem:[%s219 + $0x68] sm:$0xff]
      %v240 = vld [vmem:[%s219 + $0x70] sm:$0xff]
      %v241 = vld [vmem:[%s219 + $0x78] sm:$0xff]
      %v242 = vadd.f32 %v226, %v227
      %v243 = vadd.f32 %v242, %v228
      %v244 = vadd.f32 %v243, %v229
      %245 = vadd.xlane.f32.xlu0 %v244
      %v246 = vpop.xlane.xlu0 %245
      %v247 = vadd.f32 %v230, %v231
      %v248 = vadd.f32 %v247, %v232
      %v249 = vadd.f32 %v248, %v233
      %250 = vadd.xlane.f32.xlu0 %v249
      %v251 = vpop.xlane.xlu0 %250
      %v252 = vadd.f32 %v234, %v235
      %v253 = vadd.f32 %v252, %v236
      %v254 = vadd.f32 %v253, %v237
      %255 = vadd.xlane.f32.xlu0 %v254
      %v256 = vpop.xlane.xlu0 %255
      %v257 = vadd.f32 %v238, %v239
      %v258 = vadd.f32 %v257, %v240
      %v259 = vadd.f32 %v258, %v241
      %260 = vadd.xlane.f32.xlu0 %v259
      %v261 = vpop.xlane.xlu0 %260
      %v262 = vmul.f32 %v246, 0.00390625
      %v263 = vmul.f32 %v251, 0.00390625
      %v264 = vmul.f32 %v256, 0.00390625
      %v265 = vmul.f32 %v261, 0.00390625
      %v266 = vmul.f32 %v226, %v226
      %v267 = vmul.f32 %v227, %v227
      %v268 = vmul.f32 %v228, %v228
      %v269 = vmul.f32 %v229, %v229
      %v270 = vmul.f32 %v230, %v230
      %v271 = vmul.f32 %v231, %v231
      %v272 = vmul.f32 %v232, %v232
      %v273 = vmul.f32 %v233, %v233
      %v274 = vmul.f32 %v234, %v234
      %v275 = vmul.f32 %v235, %v235
      %v276 = vmul.f32 %v236, %v236
      %v277 = vmul.f32 %v237, %v237
      %v278 = vmul.f32 %v238, %v238
      %v279 = vmul.f32 %v239, %v239
      %v280 = vmul.f32 %v240, %v240
      %v281 = vmul.f32 %v241, %v241
      %v282 = vadd.f32 %v266, %v267
      %v283 = vadd.f32 %v282, %v268
      %v284 = vadd.f32 %v283, %v269
      %285 = vadd.xlane.f32.xlu0 %v284
      %v286 = vpop.xlane.xlu0 %285
      %v287 = vadd.f32 %v270, %v271
      %v288 = vadd.f32 %v287, %v272
      %v289 = vadd.f32 %v288, %v273
      %290 = vadd.xlane.f32.xlu0 %v289
      %v291 = vpop.xlane.xlu0 %290
      %v292 = vadd.f32 %v274, %v275
      %v293 = vadd.f32 %v292, %v276
      %v294 = vadd.f32 %v293, %v277
      %295 = vadd.xlane.f32.xlu0 %v294
      %v296 = vpop.xlane.xlu0 %295
      %v297 = vadd.f32 %v278, %v279
      %v298 = vadd.f32 %v297, %v280
      %v299 = vadd.f32 %v298, %v281
      %300 = vadd.xlane.f32.xlu0 %v299
      %v301 = vpop.xlane.xlu0 %300
      %v302 = vmul.f32 %v286, 0.00390625
      %v303 = vmul.f32 %v291, 0.00390625
      %v304 = vmul.f32 %v296, 0.00390625
      %v305 = vmul.f32 %v301, 0.00390625
      %v306 = vmul.f32 %v262, %v262
      %v307 = vmul.f32 %v263, %v263
      %v308 = vmul.f32 %v264, %v264
      %v309 = vmul.f32 %v265, %v265
      %v310 = vsub.f32 %v302, %v306
      %v311 = vsub.f32 %v303, %v307
      %v312 = vsub.f32 %v304, %v308
      %v313 = vsub.f32 %v305, %v309
      %v314 = vmax.f32 %v310, 0.0
      %v315 = vmax.f32 %v311, 0.0
      %v316 = vmax.f32 %v312, 0.0
      %v317 = vmax.f32 %v313, 0.0
      %v318 = vsub.f32 %v226, %v262
      %v319 = vsub.f32 %v227, %v262
      %v320 = vsub.f32 %v228, %v262
      %v321 = vsub.f32 %v229, %v262
      %v322 = vsub.f32 %v230, %v263
      %v323 = vsub.f32 %v231, %v263
      %v324 = vsub.f32 %v232, %v263
      %v325 = vsub.f32 %v233, %v263
      %v326 = vsub.f32 %v234, %v264
      %v327 = vsub.f32 %v235, %v264
      %v328 = vsub.f32 %v236, %v264
      %v329 = vsub.f32 %v237, %v264
      %v330 = vsub.f32 %v238, %v265
      %v331 = vsub.f32 %v239, %v265
      %v332 = vsub.f32 %v240, %v265
      %v333 = vsub.f32 %v241, %v265
      %v334 = vadd.f32 %v314, 1e-05
      %v335 = vadd.f32 %v315, 1e-05
      %v336 = vadd.f32 %v316, 1e-05
      %v337 = vadd.f32 %v317, 1e-05
      %v338 = vrsqrt.pop %v334
      %v339 = vrsqrt.pop %v335
      %v340 = vrsqrt.pop %v336
      %v341 = vrsqrt.pop %v337
      %v342 = vmul.f32 %v318, %v338
      %v343 = vmul.f32 %v319, %v338
      %v344 = vmul.f32 %v320, %v338
      %v345 = vmul.f32 %v321, %v338
      %v346 = vmul.f32 %v322, %v339
      %v347 = vmul.f32 %v323, %v339
      %v348 = vmul.f32 %v324, %v339
      %v349 = vmul.f32 %v325, %v339
      %v350 = vmul.f32 %v326, %v340
      %v351 = vmul.f32 %v327, %v340
      %v352 = vmul.f32 %v328, %v340
      %v353 = vmul.f32 %v329, %v340
      %v354 = vmul.f32 %v330, %v341
      %v355 = vmul.f32 %v331, %v341
      %v356 = vmul.f32 %v332, %v341
      %v357 = vmul.f32 %v333, %v341
      %v358 = vld [vmem:[%s1] sm:$0xff]
      %v359 = vld [vmem:[%s1 + $0x8] sm:$0xff]
      %v360 = vld [vmem:[%s1 + $0x10] sm:$0xff]
      %v361 = vld [vmem:[%s1 + $0x18] sm:$0xff]
      %363 = vset.pattern.permute.xlu0 0
      %364 = vperm.xlu0 %363, %v358
      %v365 = vpop.permute.xlu0 %364
      %368 = vset.pattern.permute.xlu0 0
      %369 = vperm.xlu0 %368, %v359
      %v370 = vpop.permute.xlu0 %369
      %373 = vset.pattern.permute.xlu0 0
      %374 = vperm.xlu0 %373, %v360
      %v375 = vpop.permute.xlu0 %374
      %378 = vset.pattern.permute.xlu0 0
      %379 = vperm.xlu0 %378, %v361
      %v380 = vpop.permute.xlu0 %379
      %v382 = vmul.f32 %v342, %v365
      %v383 = vmul.f32 %v343, %v365
      %v384 = vmul.f32 %v344, %v365
      %v385 = vmul.f32 %v345, %v365
      %v386 = vmul.f32 %v346, %v370
      %v387 = vmul.f32 %v347, %v370
      %v388 = vmul.f32 %v348, %v370
      %v389 = vmul.f32 %v349, %v370
      %v390 = vmul.f32 %v350, %v375
      %v391 = vmul.f32 %v351, %v375
      %v392 = vmul.f32 %v352, %v375
      %v393 = vmul.f32 %v353, %v375
      %v394 = vmul.f32 %v354, %v380
      %v395 = vmul.f32 %v355, %v380
      %v396 = vmul.f32 %v356, %v380
      %v397 = vmul.f32 %v357, %v380
      %v398 = vld [vmem:[%s2] sm:$0xff]
      %v399 = vld [vmem:[%s2 + $0x8] sm:$0xff]
      %v400 = vld [vmem:[%s2 + $0x10] sm:$0xff]
      %v401 = vld [vmem:[%s2 + $0x18] sm:$0xff]
      %403 = vset.pattern.permute.xlu0 0
      %404 = vperm.xlu0 %403, %v398
      %v405 = vpop.permute.xlu0 %404
      %408 = vset.pattern.permute.xlu0 0
      %409 = vperm.xlu0 %408, %v399
      %v410 = vpop.permute.xlu0 %409
      %413 = vset.pattern.permute.xlu0 0
      %414 = vperm.xlu0 %413, %v400
      %v415 = vpop.permute.xlu0 %414
      %418 = vset.pattern.permute.xlu0 0
      %419 = vperm.xlu0 %418, %v401
      %v420 = vpop.permute.xlu0 %419
      %v422 = vadd.f32 %v382, %v405
      %v423 = vadd.f32 %v383, %v405
      %v424 = vadd.f32 %v384, %v405
      %v425 = vadd.f32 %v385, %v405
      %v426 = vadd.f32 %v386, %v410
      %v427 = vadd.f32 %v387, %v410
      %v428 = vadd.f32 %v388, %v410
      %v429 = vadd.f32 %v389, %v410
      %v430 = vadd.f32 %v390, %v415
      %v431 = vadd.f32 %v391, %v415
      %v432 = vadd.f32 %v392, %v415
      %v433 = vadd.f32 %v393, %v415
      %v434 = vadd.f32 %v394, %v420
      %v435 = vadd.f32 %v395, %v420
      %v436 = vadd.f32 %v396, %v420
      %v437 = vadd.f32 %v397, %v420
      %vm438 = vcmp.ge.f32.partialorder %v422, 0.0
      %vm439 = vcmp.ge.f32.partialorder %v423, 0.0
      %vm440 = vcmp.ge.f32.partialorder %v424, 0.0
      %vm441 = vcmp.ge.f32.partialorder %v425, 0.0
      %vm442 = vcmp.ge.f32.partialorder %v426, 0.0
      %vm443 = vcmp.ge.f32.partialorder %v427, 0.0
      %vm444 = vcmp.ge.f32.partialorder %v428, 0.0
      %vm445 = vcmp.ge.f32.partialorder %v429, 0.0
      %vm446 = vcmp.ge.f32.partialorder %v430, 0.0
      %vm447 = vcmp.ge.f32.partialorder %v431, 0.0
      %vm448 = vcmp.ge.f32.partialorder %v432, 0.0
      %vm449 = vcmp.ge.f32.partialorder %v433, 0.0
      %vm450 = vcmp.ge.f32.partialorder %v434, 0.0
      %vm451 = vcmp.ge.f32.partialorder %v435, 0.0
      %vm452 = vcmp.ge.f32.partialorder %v436, 0.0
      %vm453 = vcmp.ge.f32.partialorder %v437, 0.0
      %v454 = vmul.f32 %v422, 0.2
      %v455 = vmul.f32 %v423, 0.2
      %v456 = vmul.f32 %v424, 0.2
      %v457 = vmul.f32 %v425, 0.2
      %v458 = vmul.f32 %v426, 0.2
      %v459 = vmul.f32 %v427, 0.2
      %v460 = vmul.f32 %v428, 0.2
      %v461 = vmul.f32 %v429, 0.2
      %v462 = vmul.f32 %v430, 0.2
      %v463 = vmul.f32 %v431, 0.2
      %v464 = vmul.f32 %v432, 0.2
      %v465 = vmul.f32 %v433, 0.2
      %v466 = vmul.f32 %v434, 0.2
      %v467 = vmul.f32 %v435, 0.2
      %v468 = vmul.f32 %v436, 0.2
      %v469 = vmul.f32 %v437, 0.2
      %v470 = vsel %vm438, %v422, %v454
      %v471 = vsel %vm439, %v423, %v455
      %v472 = vsel %vm440, %v424, %v456
      %v473 = vsel %vm441, %v425, %v457
      %v474 = vsel %vm442, %v426, %v458
      %v475 = vsel %vm443, %v427, %v459
      %v476 = vsel %vm444, %v428, %v460
      %v477 = vsel %vm445, %v429, %v461
      %v478 = vsel %vm446, %v430, %v462
      %v479 = vsel %vm447, %v431, %v463
      %v480 = vsel %vm448, %v432, %v464
      %v481 = vsel %vm449, %v433, %v465
      %v482 = vsel %vm450, %v434, %v466
      %v483 = vsel %vm451, %v435, %v467
      %v484 = vsel %vm452, %v436, %v468
      %v485 = vsel %vm453, %v437, %v469
      %v486 = vlaneseq
      %v487 = vand.u32 %v486, 127
      %v488 = vadd.s32 %v487, 128
      %v489 = vadd.s32 %v487, 256
      %v490 = vadd.s32 %v487, 384
      %v491 = vcvt.s32.f32 %v487
      %v492 = vcvt.s32.f32 %v488
      %v493 = vcvt.s32.f32 %v489
      %v494 = vcvt.s32.f32 %v490
      %v495 = vadd.f32 %v491, 0.5
      %v496 = vadd.f32 %v492, 0.5
      %v497 = vadd.f32 %v493, 0.5
      %v498 = vadd.f32 %v494, 0.5
      %v499 = vmul.f32 %v495, 0.055555556
      %v500 = vmul.f32 %v496, 0.055555556
      %v501 = vmul.f32 %v497, 0.055555556
      %v502 = vmul.f32 %v498, 0.055555556
      %v503 = vfloor.f32 %v499
      %v504 = vfloor.f32 %v500
      %v505 = vfloor.f32 %v501
      %v506 = vfloor.f32 %v502
      %v507 = vmul.f32 %v503, 18.0
      %v508 = vmul.f32 %v504, 18.0
      %v509 = vmul.f32 %v505, 18.0
      %v510 = vmul.f32 %v506, 18.0
      %v511 = vsub.f32 %v491, %v507
      %v512 = vsub.f32 %v492, %v508
      %v513 = vsub.f32 %v493, %v509
      %v514 = vsub.f32 %v494, %v510
      %vm515 = vcmp.ge.f32.partialorder %v503, 1.0
      %vm516 = vcmp.ge.f32.partialorder %v504, 1.0
      %vm517 = vcmp.ge.f32.partialorder %v505, 1.0
      %vm518 = vcmp.ge.f32.partialorder %v506, 1.0
      %vm519 = vcmp.le.f32.partialorder %v503, 16.0
      %vm520 = vcmp.le.f32.partialorder %v504, 16.0
      %vm521 = vcmp.le.f32.partialorder %v505, 16.0
      %vm522 = vcmp.le.f32.partialorder %v506, 16.0
      %vm523 = vmand %vm515, %vm519
      %vm524 = vmand %vm516, %vm520
      %vm525 = vmand %vm517, %vm521
      %vm526 = vmand %vm518, %vm522
      %vm527 = vcmp.ge.f32.partialorder %v511, 1.0
      %vm528 = vcmp.ge.f32.partialorder %v512, 1.0
      %vm529 = vcmp.ge.f32.partialorder %v513, 1.0
      %vm530 = vcmp.ge.f32.partialorder %v514, 1.0
      %vm531 = vmand %vm523, %vm527
      %vm532 = vmand %vm524, %vm528
      %vm533 = vmand %vm525, %vm529
      %vm534 = vmand %vm526, %vm530
      %vm535 = vcmp.le.f32.partialorder %v511, 16.0
      %vm536 = vcmp.le.f32.partialorder %v512, 16.0
      %vm537 = vcmp.le.f32.partialorder %v513, 16.0
      %vm538 = vcmp.le.f32.partialorder %v514, 16.0
      %vm539 = vmand %vm531, %vm535
      %vm540 = vmand %vm532, %vm536
      %vm541 = vmand %vm533, %vm537
      %vm542 = vmand %vm534, %vm538
      %v543 = vsel %vm539, 1, 0
      %v544 = vsel %vm540, 1, 0
      %v545 = vsel %vm541, 1, 0
      %v546 = vsel %vm542, 1, 0
      %v547 = vcvt.s32.f32 %v543
      %v548 = vcvt.s32.f32 %v544
      %v549 = vcvt.s32.f32 %v545
      %v550 = vcvt.s32.f32 %v546
      %v551 = vmul.f32 %v470, %v547
      %v552 = vmul.f32 %v471, %v548
      %v553 = vmul.f32 %v472, %v549
      %v554 = vmul.f32 %v473, %v550
      %v555 = vmul.f32 %v474, %v547
      %v556 = vmul.f32 %v475, %v548
      %v557 = vmul.f32 %v476, %v549
      %v558 = vmul.f32 %v477, %v550
      %v559 = vmul.f32 %v478, %v547
      %v560 = vmul.f32 %v479, %v548
      %v561 = vmul.f32 %v480, %v549
      %v562 = vmul.f32 %v481, %v550
      %v563 = vmul.f32 %v482, %v547
      %v564 = vmul.f32 %v483, %v548
      %v565 = vmul.f32 %v484, %v549
      %v566 = vmul.f32 %v485, %v550
      %v567 = vpack.c.bf16 %v555, %v551
      %v568 = vpack.c.bf16 %v556, %v552
      %v569 = vpack.c.bf16 %v557, %v553
      %v570 = vpack.c.bf16 %v558, %v554
      %v571 = vpack.c.bf16 %v563, %v559
      %v572 = vpack.c.bf16 %v564, %v560
      %v573 = vpack.c.bf16 %v565, %v561
      %v574 = vpack.c.bf16 %v566, %v562
      %575 = vst [vmem:[#allocation2] sm:$0xff] %v567
      %576 = vst [vmem:[#allocation2 + $0x8] sm:$0xff] %v568
      %577 = vst [vmem:[#allocation2 + $0x10] sm:$0xff] %v569
      %578 = vst [vmem:[#allocation2 + $0x18] sm:$0xff] %v571
      %579 = vst [vmem:[#allocation2 + $0x20] sm:$0xff] %v572
      %580 = vst [vmem:[#allocation2 + $0x28] sm:$0xff] %v573
      %589 = vrot.lane.b32.xlu0 %v567, 127
      %v590 = vpop.permute.xlu0 %589
      %591 = vrot.lane.b32.xlu0 %v568, 127
      %v592 = vpop.permute.xlu0 %591
      %593 = vrot.lane.b32.xlu0 %v569, 127
      %v594 = vpop.permute.xlu0 %593
      %595 = vrot.lane.b32.xlu0 %v570, 127
      %v596 = vpop.permute.xlu0 %595
      %597 = vrot.lane.b32.xlu0 %v571, 127
      %v598 = vpop.permute.xlu0 %597
      %599 = vrot.lane.b32.xlu0 %v572, 127
      %v600 = vpop.permute.xlu0 %599
      %601 = vrot.lane.b32.xlu0 %v573, 127
      %v602 = vpop.permute.xlu0 %601
      %603 = vrot.lane.b32.xlu0 %v574, 127
      %v604 = vpop.permute.xlu0 %603
      %vm605 = vcmask 1039360
      %v606 = vsel %vm605, %v590, %v592
      %v607 = vsel %vm605, %v592, %v594
      %v608 = vsel %vm605, %v594, %v596
      %v609 = vsel %vm605, %v598, %v600
      %v610 = vsel %vm605, %v600, %v602
      %v611 = vsel %vm605, %v602, %v604
      %618 = vst [vmem:[#allocation2 + $0x30] sm:$0xff] %v606
      %619 = vst [vmem:[#allocation2 + $0x38] sm:$0xff] %v607
      %620 = vst [vmem:[#allocation2 + $0x40] sm:$0xff] %v608
      %621 = vst [vmem:[#allocation2 + $0x48] sm:$0xff] %v609
      %622 = vst [vmem:[#allocation2 + $0x50] sm:$0xff] %v610
      %623 = vst [vmem:[#allocation2 + $0x58] sm:$0xff] %v611
      %624 = vrot.lane.b32.xlu0 %v567, 126
      %v625 = vpop.permute.xlu0 %624
      %626 = vrot.lane.b32.xlu0 %v568, 126
      %v627 = vpop.permute.xlu0 %626
      %628 = vrot.lane.b32.xlu0 %v569, 126
      %v629 = vpop.permute.xlu0 %628
      %630 = vrot.lane.b32.xlu0 %v570, 126
      %v631 = vpop.permute.xlu0 %630
      %632 = vrot.lane.b32.xlu0 %v571, 126
      %v633 = vpop.permute.xlu0 %632
      %634 = vrot.lane.b32.xlu0 %v572, 126
      %v635 = vpop.permute.xlu0 %634
      %636 = vrot.lane.b32.xlu0 %v573, 126
      %v637 = vpop.permute.xlu0 %636
      %638 = vrot.lane.b32.xlu0 %v574, 126
      %v639 = vpop.permute.xlu0 %638
      %vm640 = vcmask 1031168
      %v641 = vsel %vm640, %v625, %v627
      %v642 = vsel %vm640, %v627, %v629
      %v643 = vsel %vm640, %v629, %v631
      %v644 = vsel %vm640, %v633, %v635
      %v645 = vsel %vm640, %v635, %v637
      %v646 = vsel %vm640, %v637, %v639
      %653 = vst [vmem:[#allocation2 + $0x60] sm:$0xff] %v641
      %654 = vst [vmem:[#allocation2 + $0x68] sm:$0xff] %v642
      %655 = vst [vmem:[#allocation2 + $0x70] sm:$0xff] %v643
      %656 = vst [vmem:[#allocation2 + $0x78] sm:$0xff] %v644
      %657 = vst [vmem:[#allocation2 + $0x80] sm:$0xff] %v645
      %658 = vst [vmem:[#allocation2 + $0x88] sm:$0xff] %v646
      %659 = vrot.lane.b32.xlu0 %v567, 110
      %v660 = vpop.permute.xlu0 %659
      %661 = vrot.lane.b32.xlu0 %v568, 110
      %v662 = vpop.permute.xlu0 %661
      %663 = vrot.lane.b32.xlu0 %v569, 110
      %v664 = vpop.permute.xlu0 %663
      %665 = vrot.lane.b32.xlu0 %v570, 110
      %v666 = vpop.permute.xlu0 %665
      %667 = vrot.lane.b32.xlu0 %v571, 110
      %v668 = vpop.permute.xlu0 %667
      %669 = vrot.lane.b32.xlu0 %v572, 110
      %v670 = vpop.permute.xlu0 %669
      %671 = vrot.lane.b32.xlu0 %v573, 110
      %v672 = vpop.permute.xlu0 %671
      %673 = vrot.lane.b32.xlu0 %v574, 110
      %v674 = vpop.permute.xlu0 %673
      %vm675 = vcmask 900096
      %v676 = vsel %vm675, %v660, %v662
      %v677 = vsel %vm675, %v662, %v664
      %v678 = vsel %vm675, %v664, %v666
      %v679 = vsel %vm675, %v668, %v670
      %v680 = vsel %vm675, %v670, %v672
      %v681 = vsel %vm675, %v672, %v674
      %688 = vst [vmem:[#allocation2 + $0x90] sm:$0xff] %v676
      %689 = vst [vmem:[#allocation2 + $0x98] sm:$0xff] %v677
      %690 = vst [vmem:[#allocation2 + $0xa0] sm:$0xff] %v678
      %691 = vst [vmem:[#allocation2 + $0xa8] sm:$0xff] %v679
      %692 = vst [vmem:[#allocation2 + $0xb0] sm:$0xff] %v680
      %693 = vst [vmem:[#allocation2 + $0xb8] sm:$0xff] %v681
      %694 = vrot.lane.b32.xlu0 %v567, 109
      %v695 = vpop.permute.xlu0 %694
      %696 = vrot.lane.b32.xlu0 %v568, 109
      %v697 = vpop.permute.xlu0 %696
      %698 = vrot.lane.b32.xlu0 %v569, 109
      %v699 = vpop.permute.xlu0 %698
      %700 = vrot.lane.b32.xlu0 %v570, 109
      %v701 = vpop.permute.xlu0 %700
      %702 = vrot.lane.b32.xlu0 %v571, 109
      %v703 = vpop.permute.xlu0 %702
      %704 = vrot.lane.b32.xlu0 %v572, 109
      %v705 = vpop.permute.xlu0 %704
      %706 = vrot.lane.b32.xlu0 %v573, 109
      %v707 = vpop.permute.xlu0 %706
      %708 = vrot.lane.b32.xlu0 %v574, 109
      %v709 = vpop.permute.xlu0 %708
      %vm710 = vcmask 891904
      %v711 = vsel %vm710, %v695, %v697
      %v712 = vsel %vm710, %v697, %v699
      %v713 = vsel %vm710, %v699, %v701
      %v714 = vsel %vm710, %v703, %v705
      %v715 = vsel %vm710, %v705, %v707
      %v716 = vsel %vm710, %v707, %v709
      %723 = vst [vmem:[#allocation2 + $0xc0] sm:$0xff] %v711
      %724 = vst [vmem:[#allocation2 + $0xc8] sm:$0xff] %v712
      %725 = vst [vmem:[#allocation2 + $0xd0] sm:$0xff] %v713
      %726 = vst [vmem:[#allocation2 + $0xd8] sm:$0xff] %v714
      %727 = vst [vmem:[#allocation2 + $0xe0] sm:$0xff] %v715
      %728 = vst [vmem:[#allocation2 + $0xe8] sm:$0xff] %v716
      %729 = vrot.lane.b32.xlu0 %v567, 108
      %v730 = vpop.permute.xlu0 %729
      %731 = vrot.lane.b32.xlu0 %v568, 108
      %v732 = vpop.permute.xlu0 %731
      %733 = vrot.lane.b32.xlu0 %v569, 108
      %v734 = vpop.permute.xlu0 %733
      %735 = vrot.lane.b32.xlu0 %v570, 108
      %v736 = vpop.permute.xlu0 %735
      %737 = vrot.lane.b32.xlu0 %v571, 108
      %v738 = vpop.permute.xlu0 %737
      %739 = vrot.lane.b32.xlu0 %v572, 108
      %v740 = vpop.permute.xlu0 %739
      %741 = vrot.lane.b32.xlu0 %v573, 108
      %v742 = vpop.permute.xlu0 %741
      %743 = vrot.lane.b32.xlu0 %v574, 108
      %v744 = vpop.permute.xlu0 %743
      %vm745 = vcmask 883712
      %v746 = vsel %vm745, %v730, %v732
      %v747 = vsel %vm745, %v732, %v734
      %v748 = vsel %vm745, %v734, %v736
      %v749 = vsel %vm745, %v738, %v740
      %v750 = vsel %vm745, %v740, %v742
      %v751 = vsel %vm745, %v742, %v744
      %758 = vst [vmem:[#allocation2 + $0xf0] sm:$0xff] %v746
      %759 = vst [vmem:[#allocation2 + $0xf8] sm:$0xff] %v747
      %760 = vst [vmem:[#allocation2 + $0x100] sm:$0xff] %v748
      %761 = vst [vmem:[#allocation2 + $0x108] sm:$0xff] %v749
      %762 = vst [vmem:[#allocation2 + $0x110] sm:$0xff] %v750
      %763 = vst [vmem:[#allocation2 + $0x118] sm:$0xff] %v751
      %764 = vrot.lane.b32.xlu0 %v567, 92
      %v765 = vpop.permute.xlu0 %764
      %766 = vrot.lane.b32.xlu0 %v568, 92
      %v767 = vpop.permute.xlu0 %766
      %768 = vrot.lane.b32.xlu0 %v569, 92
      %v769 = vpop.permute.xlu0 %768
      %770 = vrot.lane.b32.xlu0 %v570, 92
      %v771 = vpop.permute.xlu0 %770
      %772 = vrot.lane.b32.xlu0 %v571, 92
      %v773 = vpop.permute.xlu0 %772
      %774 = vrot.lane.b32.xlu0 %v572, 92
      %v775 = vpop.permute.xlu0 %774
      %776 = vrot.lane.b32.xlu0 %v573, 92
      %v777 = vpop.permute.xlu0 %776
      %778 = vrot.lane.b32.xlu0 %v574, 92
      %v779 = vpop.permute.xlu0 %778
      %vm780 = vcmask 752640
      %v781 = vsel %vm780, %v765, %v767
      %v782 = vsel %vm780, %v767, %v769
      %v783 = vsel %vm780, %v769, %v771
      %v784 = vsel %vm780, %v773, %v775
      %v785 = vsel %vm780, %v775, %v777
      %v786 = vsel %vm780, %v777, %v779
      %793 = vst [vmem:[#allocation2 + $0x120] sm:$0xff] %v781
      %794 = vst [vmem:[#allocation2 + $0x128] sm:$0xff] %v782
      %795 = vst [vmem:[#allocation2 + $0x130] sm:$0xff] %v783
      %796 = vst [vmem:[#allocation2 + $0x138] sm:$0xff] %v784
      %797 = vst [vmem:[#allocation2 + $0x140] sm:$0xff] %v785
      %798 = vst [vmem:[#allocation2 + $0x148] sm:$0xff] %v786
      %799 = vrot.lane.b32.xlu0 %v567, 91
      %v800 = vpop.permute.xlu0 %799
      %801 = vrot.lane.b32.xlu0 %v568, 91
      %v802 = vpop.permute.xlu0 %801
      %803 = vrot.lane.b32.xlu0 %v569, 91
      %v804 = vpop.permute.xlu0 %803
      %805 = vrot.lane.b32.xlu0 %v570, 91
      %v806 = vpop.permute.xlu0 %805
      %807 = vrot.lane.b32.xlu0 %v571, 91
      %v808 = vpop.permute.xlu0 %807
      %809 = vrot.lane.b32.xlu0 %v572, 91
      %v810 = vpop.permute.xlu0 %809
      %811 = vrot.lane.b32.xlu0 %v573, 91
      %v812 = vpop.permute.xlu0 %811
      %813 = vrot.lane.b32.xlu0 %v574, 91
      %v814 = vpop.permute.xlu0 %813
      %vm815 = vcmask 744448
      %v816 = vsel %vm815, %v800, %v802
      %v817 = vsel %vm815, %v802, %v804
      %v818 = vsel %vm815, %v804, %v806
      %v819 = vsel %vm815, %v808, %v810
      %v820 = vsel %vm815, %v810, %v812
      %v821 = vsel %vm815, %v812, %v814
      %828 = vst [vmem:[#allocation2 + $0x150] sm:$0xff] %v816
      %829 = vst [vmem:[#allocation2 + $0x158] sm:$0xff] %v817
      %830 = vst [vmem:[#allocation2 + $0x160] sm:$0xff] %v818
      %831 = vst [vmem:[#allocation2 + $0x168] sm:$0xff] %v819
      %832 = vst [vmem:[#allocation2 + $0x170] sm:$0xff] %v820
      %833 = vst [vmem:[#allocation2 + $0x178] sm:$0xff] %v821
      %834 = vrot.lane.b32.xlu0 %v567, 90
      %v835 = vpop.permute.xlu0 %834
      %836 = vrot.lane.b32.xlu0 %v568, 90
      %v837 = vpop.permute.xlu0 %836
      %838 = vrot.lane.b32.xlu0 %v569, 90
      %v839 = vpop.permute.xlu0 %838
      %840 = vrot.lane.b32.xlu0 %v570, 90
      %v841 = vpop.permute.xlu0 %840
      %842 = vrot.lane.b32.xlu0 %v571, 90
      %v843 = vpop.permute.xlu0 %842
      %844 = vrot.lane.b32.xlu0 %v572, 90
      %v845 = vpop.permute.xlu0 %844
      %846 = vrot.lane.b32.xlu0 %v573, 90
      %v847 = vpop.permute.xlu0 %846
      %848 = vrot.lane.b32.xlu0 %v574, 90
      %v849 = vpop.permute.xlu0 %848
      %vm850 = vcmask 736256
      %v851 = vsel %vm850, %v835, %v837
      %v852 = vsel %vm850, %v837, %v839
      %v853 = vsel %vm850, %v839, %v841
      %v854 = vsel %vm850, %v843, %v845
      %v855 = vsel %vm850, %v845, %v847
      %v856 = vsel %vm850, %v847, %v849
      %863 = vst [vmem:[#allocation2 + $0x180] sm:$0xff] %v851
      %864 = vst [vmem:[#allocation2 + $0x188] sm:$0xff] %v852
      %865 = vst [vmem:[#allocation2 + $0x190] sm:$0xff] %v853
      %866 = vst [vmem:[#allocation2 + $0x198] sm:$0xff] %v854
      %867 = vst [vmem:[#allocation2 + $0x1a0] sm:$0xff] %v855
      %868 = vst [vmem:[#allocation2 + $0x1a8] sm:$0xff] %v856
      %v869 = vld [vmem:[%s3] sm:$0xff]
      %v870 = vld [vmem:[%s3 + $0x8] sm:$0xf]
      %v871 = vld [vmem:[%s3 + $0xc] sm:$0xff]
      %v872 = vld [vmem:[%s3 + $0x14] sm:$0xf]
      %v873 = vld [vmem:[%s3 + $0x18] sm:$0xff]
      %v874 = vld [vmem:[%s3 + $0x20] sm:$0xf]
      %v875 = vld [vmem:[%s3 + $0x24] sm:$0xff]
      %v876 = vld [vmem:[%s3 + $0x2c] sm:$0xf]
      %v877 = vld [vmem:[#allocation2] sm:$0xff]
      %v878 = vld [vmem:[#allocation2 + $0x8] sm:$0xff]
      %v879 = vld [vmem:[#allocation2 + $0x10] sm:$0xff]
      %v880 = vld [vmem:[#allocation2 + $0x18] sm:$0xff]
      %v881 = vld [vmem:[#allocation2 + $0x20] sm:$0xff]
      %v882 = vld [vmem:[#allocation2 + $0x28] sm:$0xff]
      %v883 = vld [vmem:[#allocation2 + $0x30] sm:$0xff]
      %v884 = vld [vmem:[#allocation2 + $0x38] sm:$0xff]
      %v885 = vld [vmem:[#allocation2 + $0x40] sm:$0xff]
      %v886 = vld [vmem:[#allocation2 + $0x48] sm:$0xff]
      %v887 = vld [vmem:[#allocation2 + $0x50] sm:$0xff]
      %v888 = vld [vmem:[#allocation2 + $0x58] sm:$0xff]
      %v889 = vld [vmem:[#allocation2 + $0x60] sm:$0xff]
      %v890 = vld [vmem:[#allocation2 + $0x68] sm:$0xff]
      %v891 = vld [vmem:[#allocation2 + $0x70] sm:$0xff]
      %v892 = vld [vmem:[#allocation2 + $0x78] sm:$0xff]
      %v893 = vld [vmem:[#allocation2 + $0x80] sm:$0xff]
      %v894 = vld [vmem:[#allocation2 + $0x88] sm:$0xff]
      %v895 = vld [vmem:[#allocation2 + $0x90] sm:$0xff]
      %v896 = vld [vmem:[#allocation2 + $0x98] sm:$0xff]
      %v897 = vld [vmem:[#allocation2 + $0xa0] sm:$0xff]
      %v898 = vld [vmem:[#allocation2 + $0xa8] sm:$0xff]
      %v899 = vld [vmem:[#allocation2 + $0xb0] sm:$0xff]
      %v900 = vld [vmem:[#allocation2 + $0xb8] sm:$0xff]
      %v901 = vld [vmem:[#allocation2 + $0xc0] sm:$0xff]
      %v902 = vld [vmem:[#allocation2 + $0xc8] sm:$0xff]
      %v903 = vld [vmem:[#allocation2 + $0xd0] sm:$0xff]
      %v904 = vld [vmem:[#allocation2 + $0xd8] sm:$0xff]
      %v905 = vld [vmem:[#allocation2 + $0xe0] sm:$0xff]
      %v906 = vld [vmem:[#allocation2 + $0xe8] sm:$0xff]
      %v907 = vld [vmem:[#allocation2 + $0xf0] sm:$0xff]
      %v908 = vld [vmem:[#allocation2 + $0xf8] sm:$0xff]
      %v909 = vld [vmem:[#allocation2 + $0x100] sm:$0xff]
      %v910 = vld [vmem:[#allocation2 + $0x108] sm:$0xff]
      %v911 = vld [vmem:[#allocation2 + $0x110] sm:$0xff]
      %v912 = vld [vmem:[#allocation2 + $0x118] sm:$0xff]
      %v913 = vld [vmem:[#allocation2 + $0x120] sm:$0xff]
      %v914 = vld [vmem:[#allocation2 + $0x128] sm:$0xff]
      %v915 = vld [vmem:[#allocation2 + $0x130] sm:$0xff]
      %v916 = vld [vmem:[#allocation2 + $0x138] sm:$0xff]
      %v917 = vld [vmem:[#allocation2 + $0x140] sm:$0xff]
      %v918 = vld [vmem:[#allocation2 + $0x148] sm:$0xff]
      %v919 = vld [vmem:[#allocation2 + $0x150] sm:$0xff]
      %v920 = vld [vmem:[#allocation2 + $0x158] sm:$0xff]
      %v921 = vld [vmem:[#allocation2 + $0x160] sm:$0xff]
      %v922 = vld [vmem:[#allocation2 + $0x168] sm:$0xff]
      %v923 = vld [vmem:[#allocation2 + $0x170] sm:$0xff]
      %v924 = vld [vmem:[#allocation2 + $0x178] sm:$0xff]
      %v925 = vld [vmem:[#allocation2 + $0x180] sm:$0xff]
      %v926 = vld [vmem:[#allocation2 + $0x188] sm:$0xff]
      %v927 = vld [vmem:[#allocation2 + $0x190] sm:$0xff]
      %v928 = vld [vmem:[#allocation2 + $0x198] sm:$0xff]
      %v929 = vld [vmem:[#allocation2 + $0x1a0] sm:$0xff]
      %v930 = vld [vmem:[#allocation2 + $0x1a8] sm:$0xff]
      %v931 = vld [vmem:[%s4] sm:$0xff]
      %v932 = vld [vmem:[%s4 + $0x8] sm:$0xff]
      %v933 = vld [vmem:[%s4 + $0x10] sm:$0xff]
      %v934 = vld [vmem:[%s4 + $0x18] sm:$0xff]
      %936 = vset.pattern.permute.xlu0 0
      %937 = vperm.xlu0 %936, %v931
      %v938 = vpop.permute.xlu0 %937
      %941 = vset.pattern.permute.xlu0 0
      %942 = vperm.xlu0 %941, %v932
      %v943 = vpop.permute.xlu0 %942
      %946 = vset.pattern.permute.xlu0 0
      %947 = vperm.xlu0 %946, %v933
      %v948 = vpop.permute.xlu0 %947
      %951 = vset.pattern.permute.xlu0 0
      %952 = vperm.xlu0 %951, %v934
      %v953 = vpop.permute.xlu0 %952
      %v963 = vunpack.c.l.b16 %v869
      %v964 = vunpack.c.h.b16 %v869
      %v965 = vunpack.c.l.b16 %v870
      %v966 = vunpack.c.l.b16 %v871
      %v967 = vunpack.c.h.b16 %v871
      %v968 = vunpack.c.l.b16 %v872
      %v969 = vunpack.c.l.b16 %v873
      %v970 = vunpack.c.h.b16 %v873
      %v971 = vunpack.c.l.b16 %v874
      %v972 = vunpack.c.l.b16 %v875
      %v973 = vunpack.c.h.b16 %v875
      %v974 = vunpack.c.l.b16 %v876
      %v975 = vpack.c.b16 %v966, %v963
      %v976 = vpack.c.b16 %v967, %v964
      %v977 = vpack.c.b16 %v968, %v965
      %v978 = vpack.c.b16 %v972, %v969
      %v979 = vpack.c.b16 %v973, %v970
      %v980 = vpack.c.b16 %v974, %v971
      %vm985 = vcmask 261120
      %v987 = vsel %vm985, %v977, 0
      %v990 = vsel %vm985, %v980, 0
      %992 = vmatprep.subr.bf16.mxu0 %v878
      %993 = vmatpush1.bf16.msra.mxu0 %v877
      %994 = vmatprep.subr.bf16.mxu0 %v881
      %995 = vmatpush1.bf16.msra.mxu0 %v880
      %996 = vmatprep.subr.bf16.mxu0 %v884
      %997 = vmatpush1.bf16.msra.mxu0 %v883
      %998 = vmatprep.subr.bf16.mxu0 %v887
      %999 = vmatpush1.bf16.msra.mxu0 %v886
      %1000 = vmatprep.subr.bf16.mxu0 %v890
      %1001 = vmatpush1.bf16.msra.mxu0 %v889
      %1002 = vmatprep.subr.bf16.mxu0 %v893
      %1003 = vmatpush1.bf16.msra.mxu0 %v892
      %1004 = vmatprep.subr.bf16.mxu0 %v896
      %1005 = vmatpush1.bf16.msra.mxu0 %v895
      %1006 = vmatprep.subr.bf16.mxu0 %v899
      %1007 = vmatpush1.bf16.msra.mxu0 %v898
      %1008 = vmatprep.subr.bf16.mxu0 %v902
      %1009 = vmatpush1.bf16.msra.mxu0 %v901
      %1010 = vmatprep.subr.bf16.mxu0 %v905
      %1011 = vmatpush1.bf16.msra.mxu0 %v904
      %1012 = vmatprep.subr.bf16.mxu0 %v908
      %1013 = vmatpush1.bf16.msra.mxu0 %v907
      %1014 = vmatprep.subr.bf16.mxu0 %v911
      %1015 = vmatpush1.bf16.msra.mxu0 %v910
      %1016 = vmatprep.subr.bf16.mxu0 %v914
      %1017 = vmatpush1.bf16.msra.mxu0 %v913
      %1018 = vmatprep.subr.bf16.mxu0 %v917
      %1019 = vmatpush1.bf16.msra.mxu0 %v916
      %1020 = vmatprep.subr.bf16.mxu0 %v920
      %1021 = vmatpush1.bf16.msra.mxu0 %v919
      %1022 = vmatprep.subr.bf16.mxu0 %v923
      %1023 = vmatpush1.bf16.msra.mxu0 %v922
      %1024 = vmatprep.mubr.bf16.mxu0 %v976
      %1025 = vmatmul.mubr.bf16.gmra.mrb[0].mxu0 %v975
      %v1026 = vpop.f32.mrb[0].mxu0
      %v1027 = vadd.f32 %v938, %v1026
      %v1028 = vpop.f32.mrb[0].mxu0
      %v1029 = vadd.f32 %v938, %v1028
      %v1030 = vpop.f32.mrb[0].mxu0
      %v1031 = vadd.f32 %v943, %v1030
      %v1032 = vpop.f32.mrb[0].mxu0
      %v1033 = vadd.f32 %v943, %v1032
      %1034 = vmatprep.mubr.bf16.mxu0 %v979
      %1035 = vmatmul.mubr.bf16.gmra.mrb[0].mxu0 %v978
      %v1036 = vpop.f32.mrb[0].mxu0
      %v1037 = vadd.f32 %v948, %v1036
      %v1038 = vpop.f32.mrb[0].mxu0
      %v1039 = vadd.f32 %v948, %v1038
      %v1040 = vpop.f32.mrb[0].mxu0
      %v1041 = vadd.f32 %v953, %v1040
      %v1042 = vpop.f32.mrb[0].mxu0
      %v1043 = vadd.f32 %v953, %v1042
      %1044 = vdwg.mxu0
      %1045 = vmatprep.subr.bf16.mxu0 %v926
      %1046 = vmatpush1.bf16.msra.mxu0 %v925
      %1047 = vmatprep.subr.bf16.mxu0 %v929
      %1048 = vmatpush1.bf16.msra.mxu0 %v928
      %1049 = vmatprep.subr.bf16.mxu0 0
      %1050 = vmatpush1.bf16.msra.mxu0 0
      %1051 = vmatprep.subr.bf16.mxu0 0
      %1052 = vmatpush1.bf16.msra.mxu0 0
      %1053 = vmatprep.subr.bf16.mxu0 0
      %1054 = vmatpush1.bf16.msra.mxu0 0
      %1055 = vmatprep.subr.bf16.mxu0 0
      %1056 = vmatpush1.bf16.msra.mxu0 0
      %1057 = vmatprep.subr.bf16.mxu0 0
      %1058 = vmatpush1.bf16.msra.mxu0 0
      %1059 = vmatprep.subr.bf16.mxu0 0
      %1060 = vmatpush1.bf16.msra.mxu0 0
      %1061 = vmatprep.subr.bf16.mxu0 0
      %1062 = vmatpush1.bf16.msra.mxu0 0
      %1063 = vmatprep.subr.bf16.mxu0 0
      %1064 = vmatpush1.bf16.msra.mxu0 0
      %1065 = vmatprep.subr.bf16.mxu0 0
      %1066 = vmatpush1.bf16.msra.mxu0 0
      %1067 = vmatprep.subr.bf16.mxu0 0
      %1068 = vmatpush1.bf16.msra.mxu0 0
      %1069 = vmatprep.subr.bf16.mxu0 0
      %1070 = vmatpush1.bf16.msra.mxu0 0
      %1071 = vmatprep.subr.bf16.mxu0 0
      %1072 = vmatpush1.bf16.msra.mxu0 0
      %1073 = vmatprep.subr.bf16.mxu0 0
      %1074 = vmatpush1.bf16.msra.mxu0 0
      %1075 = vmatprep.subr.bf16.mxu0 0
      %1076 = vmatpush1.bf16.msra.mxu0 0
      %1077 = vmatprep.mubr.bf16.mxu0 0
      %1078 = vmatmul.mubr.bf16.gmra.mrb[0].mxu0 %v987
      %v1079 = vpop.f32.mrb[0].mxu0
      %v1080 = vadd.f32 %v1027, %v1079
      %v1081 = vpop.f32.mrb[0].mxu0
      %v1082 = vadd.f32 %v1029, %v1081
      %v1083 = vpop.f32.mrb[0].mxu0
      %v1084 = vadd.f32 %v1031, %v1083
      %v1085 = vpop.f32.mrb[0].mxu0
      %v1086 = vadd.f32 %v1033, %v1085
      %1087 = vmatprep.mubr.bf16.mxu0 0
      %1088 = vmatmul.mubr.bf16.gmra.mrb[0].mxu0 %v990
      %v1089 = vpop.f32.mrb[0].mxu0
      %v1090 = vadd.f32 %v1037, %v1089
      %v1091 = vpop.f32.mrb[0].mxu0
      %v1092 = vadd.f32 %v1039, %v1091
      %v1093 = vpop.f32.mrb[0].mxu0
      %v1094 = vadd.f32 %v1041, %v1093
      %v1095 = vpop.f32.mrb[0].mxu0
      %v1096 = vadd.f32 %v1043, %v1095
      %1097 = vdwg.mxu0
      %1098 = vmatprep.subr.bf16.mxu0 0
      %1099 = vmatpush1.bf16.msra.mxu0 %v879
      %1100 = vmatprep.subr.bf16.mxu0 0
      %1101 = vmatpush1.bf16.msra.mxu0 %v882
      %1102 = vmatprep.subr.bf16.mxu0 0
      %1103 = vmatpush1.bf16.msra.mxu0 %v885
      %1104 = vmatprep.subr.bf16.mxu0 0
      %1105 = vmatpush1.bf16.msra.mxu0 %v888
      %1106 = vmatprep.subr.bf16.mxu0 0
      %1107 = vmatpush1.bf16.msra.mxu0 %v891
      %1108 = vmatprep.subr.bf16.mxu0 0
      %1109 = vmatpush1.bf16.msra.mxu0 %v894
      %1110 = vmatprep.subr.bf16.mxu0 0
      %1111 = vmatpush1.bf16.msra.mxu0 %v897
      %1112 = vmatprep.subr.bf16.mxu0 0
      %1113 = vmatpush1.bf16.msra.mxu0 %v900
      %1114 = vmatprep.subr.bf16.mxu0 0
      %1115 = vmatpush1.bf16.msra.mxu0 %v903
      %1116 = vmatprep.subr.bf16.mxu0 0
      %1117 = vmatpush1.bf16.msra.mxu0 %v906
      %1118 = vmatprep.subr.bf16.mxu0 0
      %1119 = vmatpush1.bf16.msra.mxu0 %v909
      %1120 = vmatprep.subr.bf16.mxu0 0
      %1121 = vmatpush1.bf16.msra.mxu0 %v912
      %1122 = vmatprep.subr.bf16.mxu0 0
      %1123 = vmatpush1.bf16.msra.mxu0 %v915
      %1124 = vmatprep.subr.bf16.mxu0 0
      %1125 = vmatpush1.bf16.msra.mxu0 %v918
      %1126 = vmatprep.subr.bf16.mxu0 0
      %1127 = vmatpush1.bf16.msra.mxu0 %v921
      %1128 = vmatprep.subr.bf16.mxu0 0
      %1129 = vmatpush1.bf16.msra.mxu0 %v924
      %1130 = vmatprep.mubr.bf16.mxu0 %v976
      %1131 = vmatmul.mubr.bf16.gmra.mrb[0].mxu0 %v975
      %v1132 = vpop.f32.mrb[0].mxu0
      %v1133 = vadd.f32 %v938, %v1132
      %v1134 = vpop.f32.mrb[0].mxu0
      %v1135 = vpop.f32.mrb[0].mxu0
      %v1136 = vadd.f32 %v943, %v1135
      %v1137 = vpop.f32.mrb[0].mxu0
      %1138 = vmatprep.mubr.bf16.mxu0 %v979
      %1139 = vmatmul.mubr.bf16.gmra.mrb[0].mxu0 %v978
      %v1140 = vpop.f32.mrb[0].mxu0
      %v1141 = vadd.f32 %v948, %v1140
      %v1142 = vpop.f32.mrb[0].mxu0
      %v1143 = vpop.f32.mrb[0].mxu0
      %v1144 = vadd.f32 %v953, %v1143
      %v1145 = vpop.f32.mrb[0].mxu0
      %1146 = vdwg.mxu0
      %1147 = vmatprep.subr.bf16.mxu0 0
      %1148 = vmatpush1.bf16.msra.mxu0 %v927
      %1149 = vmatprep.subr.bf16.mxu0 0
      %1150 = vmatpush1.bf16.msra.mxu0 %v930
      %1151 = vmatprep.subr.bf16.mxu0 0
      %1152 = vmatpush1.bf16.msra.mxu0 0
      %1153 = vmatprep.subr.bf16.mxu0 0
      %1154 = vmatpush1.bf16.msra.mxu0 0
      %1155 = vmatprep.subr.bf16.mxu0 0
      %1156 = vmatpush1.bf16.msra.mxu0 0
      %1157 = vmatprep.subr.bf16.mxu0 0
      %1158 = vmatpush1.bf16.msra.mxu0 0
      %1159 = vmatprep.subr.bf16.mxu0 0
      %1160 = vmatpush1.bf16.msra.mxu0 0
      %1161 = vmatprep.subr.bf16.mxu0 0
      %1162 = vmatpush1.bf16.msra.mxu0 0
      %1163 = vmatprep.subr.bf16.mxu0 0
      %1164 = vmatpush1.bf16.msra.mxu0 0
      %1165 = vmatprep.subr.bf16.mxu0 0
      %1166 = vmatpush1.bf16.msra.mxu0 0
      %1167 = vmatprep.subr.bf16.mxu0 0
      %1168 = vmatpush1.bf16.msra.mxu0 0
      %1169 = vmatprep.subr.bf16.mxu0 0
      %1170 = vmatpush1.bf16.msra.mxu0 0
      %1171 = vmatprep.subr.bf16.mxu0 0
      %1172 = vmatpush1.bf16.msra.mxu0 0
      %1173 = vmatprep.subr.bf16.mxu0 0
      %1174 = vmatpush1.bf16.msra.mxu0 0
      %1175 = vmatprep.subr.bf16.mxu0 0
      %1176 = vmatpush1.bf16.msra.mxu0 0
      %1177 = vmatprep.subr.bf16.mxu0 0
      %1178 = vmatpush1.bf16.msra.mxu0 0
      %1179 = vmatprep.mubr.bf16.mxu0 0
      %1180 = vmatmul.mubr.bf16.gmra.mrb[0].mxu0 %v987
      %v1181 = vpop.f32.mrb[0].mxu0
      %v1182 = vadd.f32 %v1133, %v1181
      %v1183 = vpop.f32.mrb[0].mxu0
      %v1184 = vpop.f32.mrb[0].mxu0
      %v1185 = vadd.f32 %v1136, %v1184
      %v1186 = vpop.f32.mrb[0].mxu0
      %1187 = vmatprep.mubr.bf16.mxu0 0
      %1188 = vmatmul.mubr.bf16.gmra.mrb[0].mxu0 %v990
      %v1189 = vpop.f32.mrb[0].mxu0
      %v1190 = vadd.f32 %v1141, %v1189
      %v1191 = vpop.f32.mrb[0].mxu0
      %v1192 = vpop.f32.mrb[0].mxu0
      %v1193 = vadd.f32 %v1144, %v1192
      %v1194 = vpop.f32.mrb[0].mxu0
      %1195 = vdwg.mxu0
      %1196 = vst [vmem:[%s224] sm:$0xff] %v1080
      %1197 = vst [vmem:[%s224 + $0x8] sm:$0xff] %v1082
      %1198 = vst [vmem:[%s224 + $0x10] sm:$0xff] %v1182
      %1199 = vst [vmem:[%s224 + $0x18] sm:$0xff] %v1084
      %1200 = vst [vmem:[%s224 + $0x20] sm:$0xff] %v1086
      %1201 = vst [vmem:[%s224 + $0x28] sm:$0xff] %v1185
      %1202 = vst [vmem:[%s224 + $0x30] sm:$0xff] %v1090
      %1203 = vst [vmem:[%s224 + $0x38] sm:$0xff] %v1092
      %1204 = vst [vmem:[%s224 + $0x40] sm:$0xff] %v1190
      %1205 = vst [vmem:[%s224 + $0x48] sm:$0xff] %v1094
      %1206 = vst [vmem:[%s224 + $0x50] sm:$0xff] %v1096
      %1207 = vst [vmem:[%s224 + $0x58] sm:$0xff] %v1193
      %p1208 = scmp.lt.s32.totalorder %s16, 1
      %s1209 = scalar_select %p1208, %s16, 1
      %s1210 = smul.addr %s1209, 12
      %s1211 = smul.addr %s1210, 8
      %s1212 = scalar_lea.vmem %s5, %s1211
      // Predicated region
      $region41: #{_lambda_.4} parent=39 // pred_check
        %p1213 = pneg %p144
      $region42: #{_lambda_.4} parent=39 // pred_check_branch
        %1215 = sbr.rel (%p1213) target = $region44
      $region43: #{_lambda_.4} parent=39 // pred_region
        _
      $region44: #{_lambda_.4} parent=39 // pred_fallthru
        _
    $region40: #{_lambda_.4} parent=5 // pred_fallthru
      _
    %p1216 = scmp.le.s32.totalorder 2, %s11
    // Predicated region
    $region45: #{_lambda_.4} parent=5 // pred_check
      %p1217 = pneg %p1216
    $region46: #{_lambda_.4} parent=5 // pred_check_branch
      %1219 = sbr.rel (%p1217) target = $region48
    $region47: #{_lambda_.4} parent=5 // pred_region
      %s1220 = ssub.s32 %s11, 2
      // Predicated region
      $region49: #{_lambda_.4} parent=47 // pred_check
        %p1221 = pneg %p150
      $region50: #{_lambda_.4} parent=47 // pred_check_branch
        %1223 = sbr.rel (%p1221) target = $region52
      $region51: #{_lambda_.4} parent=47 // pred_region
        %p1224 = scmp.lt.s32.totalorder %s17, 1
        %s1225 = scalar_select %p1224, %s17, 1
        %s1226 = smul.addr %s1225, 12
        %s1227 = smul.addr %s1226, 8
        %s1228 = scalar_lea.vmem %s5, %s1227
      $region52: #{_lambda_.4} parent=47 // pred_fallthru
        _
    $region48: #{_lambda_.4} parent=5 // pred_fallthru
      _
  $region6: #{_lambda_.4} parent=0 // loop_footer
    %s15 = sadd.s32 1, %s11
  $region7: #{_lambda_.4} parent=0 // loop_footer_branch
    %10 = sbr.rel target = $region3
  $region8: #{_lambda_.4} parent=0 // loop_exit
    _

// kernel: _lambda_.7
$region0: #{_lambda_.7}
  #allocation0 [shape = 'u32[]', space=smem, size = 0x4, offset = 0x4, fixed_abs, tag = 'smem constant byte address 0x4 - core index']
  #allocation1 [shape = 'u32[144,128]{1,0:T(1,128)}', space=vmem, size = 0x12000, scoped, tag = 'internal scratch']
  #allocation2 [shape = 'bf16[288,384]{1,0:T(16,128)(2,1)}', space=vmem, size = 0x36000, scoped, tag = 'scratch operand']
  %s0 = inlined_call_operand.vmem [shape: f32[2,32,512], index: 0, kind: input, shape index: {}]
  %s1 = inlined_call_operand.vmem [shape: bf16[32,288], index: 1, kind: input, shape index: {}]
  %s2 = inlined_call_operand.vmem [shape: f32[32,1], index: 2, kind: input, shape index: {}]
  %s3 = inlined_call_operand.vmem [shape: f32[2,32,384], index: 3, kind: input, shape index: {}]
  %s4 = inlined_call_operand.vmem [shape: f32[2,32,384], index: 4, kind: output, shape index: {}]
  %s5 = sld [smem:[#allocation0]]
  $region49: #{_lambda_.7} parent=0
    _
  %s7 = ssub.s32 1, %s5
  %s8 = scalar_select 0, %s7, %s5
  loop: start=0, step=1, limit=4
  $region2: #{_lambda_.7} parent=0 // loop_pre_header
    _
  $region3: #{_lambda_.7} parent=0 // loop_header
    %s10 = sphi 0, %s14
    %p11 = scmp.ge.s32.totalorder %s10, 4
    %s20 = sphi 0, %s22
    %s23 = sphi 0, %s20
    %s24 = sphi 0, %s23
    %s40 = sphi 0, %s24
    %s44 = sphi 0, %s44
    %s46 = sphi 0, %s44
    %s47 = sphi 0, %s46
    %s61 = sphi 0, %s47
    %s65 = sphi 0, %s65
    %s67 = sphi 0, %s65
    %s68 = sphi 0, %s67
    %s82 = sphi 0, %s68
    %s88 = sphi 0, %s90
    %s91 = sphi 0, %s88
    %s92 = sphi 0, %s91
    %s108 = sphi 0, %s92
    %s114 = sphi 0, %s116
    %s117 = sphi 0, %s114
    %s118 = sphi 0, %s117
    %s134 = sphi 0, %s118
  $region4: #{_lambda_.7} parent=0 // loop_header_branch
    %13 = sbr.rel (%p11) target = $region8
  $region5: #{_lambda_.7} parent=0 // loop_body
    %s15 = ssub.s32 %s10, 1
    %s16 = ssub.s32 %s10, 2
    %s17 = sadd.s32 %s10, 1
    %s18 = ssub.s32 %s10, %s17
    %p19 = scmp.eq.s32.totalorder %s18, 0
    %s21 = sadd.s32 %s20, 1
    %s22 = scalar_select %p19, %s20, %s21
    %p25 = pneg %p19
    %p26 = scmp.eq.s32.totalorder %s10, 1
    %p27 = por %p25, %p26
    %p28 = scmp.ne.s32.totalorder %s20, %s23
    %p29 = scmp.eq.s32.totalorder %s10, 0
    %p30 = por %p28, %p29
    %p31 = scmp.ne.s32.totalorder %s20, %s23
    %p32 = scmp.eq.s32.totalorder %s15, 1
    %p33 = por %p31, %p32
    %p34 = scmp.ne.s32.totalorder %s23, %s24
    %p35 = scmp.eq.s32.totalorder %s15, 0
    %p36 = por %p34, %p35
    %p37 = scmp.ne.s32.totalorder %s23, %s24
    %p38 = scmp.eq.s32.totalorder %s16, 1
    %p39 = por %p37, %p38
    %p41 = scmp.ne.s32.totalorder %s24, %s40
    %p42 = scmp.eq.s32.totalorder %s16, 0
    %p43 = por %p41, %p42
    %s45 = sadd.s32 %s44, 1
    %p48 = scmp.eq.s32.totalorder %s10, 1
    %p49 = scmp.ne.s32.totalorder %s44, %s46
    %p50 = scmp.eq.s32.totalorder %s10, 0
    %p51 = por %p49, %p50
    %p52 = scmp.ne.s32.totalorder %s44, %s46
    %p53 = scmp.eq.s32.totalorder %s15, 1
    %p54 = por %p52, %p53
    %p55 = scmp.ne.s32.totalorder %s46, %s47
    %p56 = scmp.eq.s32.totalorder %s15, 0
    %p57 = por %p55, %p56
    %p58 = scmp.ne.s32.totalorder %s46, %s47
    %p59 = scmp.eq.s32.totalorder %s16, 1
    %p60 = por %p58, %p59
    %p62 = scmp.ne.s32.totalorder %s47, %s61
    %p63 = scmp.eq.s32.totalorder %s16, 0
    %p64 = por %p62, %p63
    %s66 = sadd.s32 %s65, 1
    %p69 = scmp.eq.s32.totalorder %s10, 1
    %p70 = scmp.ne.s32.totalorder %s65, %s67
    %p71 = scmp.eq.s32.totalorder %s10, 0
    %p72 = por %p70, %p71
    %p73 = scmp.ne.s32.totalorder %s65, %s67
    %p74 = scmp.eq.s32.totalorder %s15, 1
    %p75 = por %p73, %p74
    %p76 = scmp.ne.s32.totalorder %s67, %s68
    %p77 = scmp.eq.s32.totalorder %s15, 0
    %p78 = por %p76, %p77
    %p79 = scmp.ne.s32.totalorder %s67, %s68
    %p80 = scmp.eq.s32.totalorder %s16, 1
    %p81 = por %p79, %p80
    %p83 = scmp.ne.s32.totalorder %s68, %s82
    %p84 = scmp.eq.s32.totalorder %s16, 0
    %p85 = por %p83, %p84
    %s86 = ssub.s32 %s10, %s17
    %p87 = scmp.eq.s32.totalorder %s86, 0
    %s89 = sadd.s32 %s88, 1
    %s90 = scalar_select %p87, %s88, %s89
    %p93 = pneg %p87
    %p94 = scmp.eq.s32.totalorder %s10, 1
    %p95 = por %p93, %p94
    %p96 = scmp.ne.s32.totalorder %s88, %s91
    %p97 = scmp.eq.s32.totalorder %s10, 0
    %p98 = por %p96, %p97
    %p99 = scmp.ne.s32.totalorder %s88, %s91
    %p100 = scmp.eq.s32.totalorder %s15, 1
    %p101 = por %p99, %p100
    %p102 = scmp.ne.s32.totalorder %s91, %s92
    %p103 = scmp.eq.s32.totalorder %s15, 0
    %p104 = por %p102, %p103
    %p105 = scmp.ne.s32.totalorder %s91, %s92
    %p106 = scmp.eq.s32.totalorder %s16, 1
    %p107 = por %p105, %p106
    %p109 = scmp.ne.s32.totalorder %s92, %s108
    %p110 = scmp.eq.s32.totalorder %s16, 0
    %p111 = por %p109, %p110
    %s112 = ssub.s32 %s10, %s17
    %p113 = scmp.eq.s32.totalorder %s112, 0
    %s115 = sadd.s32 %s114, 1
    %s116 = scalar_select %p113, %s114, %s115
    %p119 = pneg %p113
    %p120 = scmp.eq.s32.totalorder %s10, 1
    %p121 = por %p119, %p120
    %p122 = scmp.ne.s32.totalorder %s114, %s117
    %p123 = scmp.eq.s32.totalorder %s10, 0
    %p124 = por %p122, %p123
    %p125 = scmp.ne.s32.totalorder %s114, %s117
    %p126 = scmp.eq.s32.totalorder %s15, 1
    %p127 = por %p125, %p126
    %p128 = scmp.ne.s32.totalorder %s117, %s118
    %p129 = scmp.eq.s32.totalorder %s15, 0
    %p130 = por %p128, %p129
    %p131 = scmp.ne.s32.totalorder %s117, %s118
    %p132 = scmp.eq.s32.totalorder %s16, 1
    %p133 = por %p131, %p132
    %p135 = scmp.ne.s32.totalorder %s118, %s134
    %p136 = scmp.eq.s32.totalorder %s16, 0
    %p137 = por %p135, %p136
    %p138 = scmp.le.s32.totalorder 1, %s10
    %p139 = scmp.lt.s32.totalorder %s10, 3
    %p140 = pnand %p138, %p139
    %p141 = pneg %p140
    // Predicated region
    $region9: #{_lambda_.7} parent=5 // pred_check
      _
    $region10: #{_lambda_.7} parent=5 // pred_check_branch
      %143 = sbr.rel (%p140) target = $region12
    $region11: #{_lambda_.7} parent=5 // pred_region
      %s144 = ssub.s32 %s10, 1
      // Predicated region
      $region13: #{_lambda_.7} parent=11 // pred_check
        %p145 = pneg %p57
      $region14: #{_lambda_.7} parent=11 // pred_check_branch
        %147 = sbr.rel (%p145) target = $region16
      $region15: #{_lambda_.7} parent=11 // pred_region
        _
      $region16: #{_lambda_.7} parent=11 // pred_fallthru
        _
      // Predicated region
      $region17: #{_lambda_.7} parent=11 // pred_check
        %p148 = pneg %p78
      $region18: #{_lambda_.7} parent=11 // pred_check_branch
        %150 = sbr.rel (%p148) target = $region20
      $region19: #{_lambda_.7} parent=11 // pred_region
        _
      $region20: #{_lambda_.7} parent=11 // pred_fallthru
        _
    $region12: #{_lambda_.7} parent=5 // pred_fallthru
      _
    %p151 = scmp.lt.s32.totalorder %s10, 2
    // Predicated region
    $region21: #{_lambda_.7} parent=5 // pred_check
      %p152 = pneg %p151
    $region22: #{_lambda_.7} parent=5 // pred_check_branch
      %154 = sbr.rel (%p152) target = $region24
    $region23: #{_lambda_.7} parent=5 // pred_region
      // Predicated region
      $region25: #{_lambda_.7} parent=23 // pred_check
        %p155 = pneg %p30
      $region26: #{_lambda_.7} parent=23 // pred_check_branch
        %157 = sbr.rel (%p155) target = $region28
      $region27: #{_lambda_.7} parent=23 // pred_region
        %p158 = scmp.lt.s32.totalorder %s10, 1
        %s159 = scalar_select %p158, %s10, 1
        %s160 = smul.addr %s159, 16
        %s161 = smul.addr %s160, 8
        %s162 = scalar_lea.vmem %s0, %s161
      $region28: #{_lambda_.7} parent=23 // pred_fallthru
        _
      // Predicated region
      $region29: #{_lambda_.7} parent=23 // pred_check
        %p163 = pneg %p98
      $region30: #{_lambda_.7} parent=23 // pred_check_branch
        %165 = sbr.rel (%p163) target = $region32
      $region31: #{_lambda_.7} parent=23 // pred_region
        %p166 = scmp.lt.s32.totalorder %s10, 1
        %s167 = scalar_select %p166, %s10, 1
        %s168 = smul.addr %s167, 12
        %s169 = smul.addr %s168, 8
        %s170 = scalar_lea.vmem %s3, %s169
      $region32: #{_lambda_.7} parent=23 // pred_fallthru
        _
    $region24: #{_lambda_.7} parent=5 // pred_fallthru
      _
    %p171 = scmp.le.s32.totalorder 1, %s10
    %p172 = scmp.lt.s32.totalorder %s10, 3
    %p173 = pnand %p171, %p172
    %p174 = pneg %p173
    // Predicated region
    $region33: #{_lambda_.7} parent=5 // pred_check
      _
    $region34: #{_lambda_.7} parent=5 // pred_check_branch
      %176 = sbr.rel (%p173) target = $region36
    $region35: #{_lambda_.7} parent=5 // pred_region
      %s177 = ssub.s32 %s10, 1
      %p178 = scmp.lt.s32.totalorder %s15, 1
      %s179 = scalar_select %p178, %s15, 1
      %s180 = smul.addr %s179, 16
      %s181 = smul.addr %s180, 8
      %s182 = scalar_lea.vmem %s0, %s181
      %p183 = pneg %p36
      %p184 = pneg %p33
      %p185 = pneg %p57
      %p186 = pneg %p54
      %p187 = pneg %p78
      %p188 = pneg %p75
      %p189 = scmp.lt.s32.totalorder %s15, 1
      %s190 = scalar_select %p189, %s15, 1
      %s191 = smul.addr %s190, 12
      %s192 = smul.addr %s191, 8
      %s193 = scalar_lea.vmem %s3, %s192
      %p194 = pneg %p104
      %p195 = pneg %p101
      %p196 = pneg %p130
      %p197 = pneg %p127
      %p198 = scmp.lt.s32.totalorder %s15, 1
      %s199 = scalar_select %p198, %s15, 1
      %s200 = smul.addr %s199, 12
      %s201 = smul.addr %s200, 8
      %s202 = scalar_lea.vmem %s4, %s201
      %p203 = scmp.lt.s32.totalorder %s15, 1
      %s204 = scalar_select %p203, %s15, 1
      %s205 = smul.addr %s204, 16
      %s206 = smul.addr %s205, 8
      %s207 = scalar_lea.vmem %s0, %s206
      %p208 = scmp.lt.s32.totalorder %s15, 1
      %s209 = scalar_select %p208, %s15, 1
      %s210 = smul.addr %s209, 12
      %s211 = smul.addr %s210, 8
      %s212 = scalar_lea.vmem %s3, %s211
      %p213 = scmp.lt.s32.totalorder %s15, 1
      %s214 = scalar_select %p213, %s15, 1
      %s215 = smul.addr %s214, 12
      %s216 = smul.addr %s215, 8
      %s217 = scalar_lea.vmem %s4, %s216
      %v219 = vld [vmem:[%s207] sm:$0xff]
      %v220 = vld [vmem:[%s207 + $0x8] sm:$0xff]
      %v221 = vld [vmem:[%s207 + $0x10] sm:$0xff]
      %v222 = vld [vmem:[%s207 + $0x18] sm:$0xff]
      %v223 = vld [vmem:[%s207 + $0x20] sm:$0xff]
      %v224 = vld [vmem:[%s207 + $0x28] sm:$0xff]
      %v225 = vld [vmem:[%s207 + $0x30] sm:$0xff]
      %v226 = vld [vmem:[%s207 + $0x38] sm:$0xff]
      %v227 = vld [vmem:[%s207 + $0x40] sm:$0xff]
      %v228 = vld [vmem:[%s207 + $0x48] sm:$0xff]
      %v229 = vld [vmem:[%s207 + $0x50] sm:$0xff]
      %v230 = vld [vmem:[%s207 + $0x58] sm:$0xff]
      %v231 = vld [vmem:[%s207 + $0x60] sm:$0xff]
      %v232 = vld [vmem:[%s207 + $0x68] sm:$0xff]
      %v233 = vld [vmem:[%s207 + $0x70] sm:$0xff]
      %v234 = vld [vmem:[%s207 + $0x78] sm:$0xff]
      %vm235 = vcmp.ge.f32.partialorder %v219, 0.0
      %vm236 = vcmp.ge.f32.partialorder %v220, 0.0
      %vm237 = vcmp.ge.f32.partialorder %v221, 0.0
      %vm238 = vcmp.ge.f32.partialorder %v222, 0.0
      %vm239 = vcmp.ge.f32.partialorder %v223, 0.0
      %vm240 = vcmp.ge.f32.partialorder %v224, 0.0
      %vm241 = vcmp.ge.f32.partialorder %v225, 0.0
      %vm242 = vcmp.ge.f32.partialorder %v226, 0.0
      %vm243 = vcmp.ge.f32.partialorder %v227, 0.0
      %vm244 = vcmp.ge.f32.partialorder %v228, 0.0
      %vm245 = vcmp.ge.f32.partialorder %v229, 0.0
      %vm246 = vcmp.ge.f32.partialorder %v230, 0.0
      %vm247 = vcmp.ge.f32.partialorder %v231, 0.0
      %vm248 = vcmp.ge.f32.partialorder %v232, 0.0
      %vm249 = vcmp.ge.f32.partialorder %v233, 0.0
      %vm250 = vcmp.ge.f32.partialorder %v234, 0.0
      %v251 = vmul.f32 %v219, 0.2
      %v252 = vmul.f32 %v220, 0.2
      %v253 = vmul.f32 %v221, 0.2
      %v254 = vmul.f32 %v222, 0.2
      %v255 = vmul.f32 %v223, 0.2
      %v256 = vmul.f32 %v224, 0.2
      %v257 = vmul.f32 %v225, 0.2
      %v258 = vmul.f32 %v226, 0.2
      %v259 = vmul.f32 %v227, 0.2
      %v260 = vmul.f32 %v228, 0.2
      %v261 = vmul.f32 %v229, 0.2
      %v262 = vmul.f32 %v230, 0.2
      %v263 = vmul.f32 %v231, 0.2
      %v264 = vmul.f32 %v232, 0.2
      %v265 = vmul.f32 %v233, 0.2
      %v266 = vmul.f32 %v234, 0.2
      %v267 = vsel %vm235, %v219, %v251
      %v268 = vsel %vm236, %v220, %v252
      %v269 = vsel %vm237, %v221, %v253
      %v270 = vsel %vm238, %v222, %v254
      %v271 = vsel %vm239, %v223, %v255
      %v272 = vsel %vm240, %v224, %v256
      %v273 = vsel %vm241, %v225, %v257
      %v274 = vsel %vm242, %v226, %v258
      %v275 = vsel %vm243, %v227, %v259
      %v276 = vsel %vm244, %v228, %v260
      %v277 = vsel %vm245, %v229, %v261
      %v278 = vsel %vm246, %v230, %v262
      %v279 = vsel %vm247, %v231, %v263
      %v280 = vsel %vm248, %v232, %v264
      %v281 = vsel %vm249, %v233, %v265
      %v282 = vsel %vm250, %v234, %v266
      %v283 = vpack.c.bf16 %v271, %v267
      %v284 = vpack.c.bf16 %v272, %v268
      %v285 = vpack.c.bf16 %v273, %v269
      %v286 = vpack.c.bf16 %v274, %v270
      %v287 = vpack.c.bf16 %v279, %v275
      %v288 = vpack.c.bf16 %v280, %v276
      %v289 = vpack.c.bf16 %v281, %v277
      %v290 = vpack.c.bf16 %v282, %v278
      %291 = vst [vmem:[#allocation2] sm:$0xff] %v283
      %292 = vst [vmem:[#allocation2 + $0x8] sm:$0xff] %v284
      %293 = vst [vmem:[#allocation2 + $0x10] sm:$0xff] %v285
      %294 = vst [vmem:[#allocation2 + $0x18] sm:$0xff] %v287
      %295 = vst [vmem:[#allocation2 + $0x20] sm:$0xff] %v288
      %296 = vst [vmem:[#allocation2 + $0x28] sm:$0xff] %v289
      %305 = vrot.lane.b32.xlu0 %v283, 127
      %v306 = vpop.permute.xlu0 %305
      %307 = vrot.lane.b32.xlu0 %v284, 127
      %v308 = vpop.permute.xlu0 %307
      %309 = vrot.lane.b32.xlu0 %v285, 127
      %v310 = vpop.permute.xlu0 %309
      %311 = vrot.lane.b32.xlu0 %v286, 127
      %v312 = vpop.permute.xlu0 %311
      %313 = vrot.lane.b32.xlu0 %v287, 127
      %v314 = vpop.permute.xlu0 %313
      %315 = vrot.lane.b32.xlu0 %v288, 127
      %v316 = vpop.permute.xlu0 %315
      %317 = vrot.lane.b32.xlu0 %v289, 127
      %v318 = vpop.permute.xlu0 %317
      %319 = vrot.lane.b32.xlu0 %v290, 127
      %v320 = vpop.permute.xlu0 %319
      %vm321 = vcmask 1039360
      %v322 = vsel %vm321, %v306, %v308
      %v323 = vsel %vm321, %v308, %v310
      %v324 = vsel %vm321, %v310, %v312
      %v325 = vsel %vm321, %v314, %v316
      %v326 = vsel %vm321, %v316, %v318
      %v327 = vsel %vm321, %v318, %v320
      %334 = vst [vmem:[#allocation2 + $0x30] sm:$0xff] %v322
      %335 = vst [vmem:[#allocation2 + $0x38] sm:$0xff] %v323
      %336 = vst [vmem:[#allocation2 + $0x40] sm:$0xff] %v324
      %337 = vst [vmem:[#allocation2 + $0x48] sm:$0xff] %v325
      %338 = vst [vmem:[#allocation2 + $0x50] sm:$0xff] %v326
      %339 = vst [vmem:[#allocation2 + $0x58] sm:$0xff] %v327
      %340 = vrot.lane.b32.xlu0 %v283, 126
      %v341 = vpop.permute.xlu0 %340
      %342 = vrot.lane.b32.xlu0 %v284, 126
      %v343 = vpop.permute.xlu0 %342
      %344 = vrot.lane.b32.xlu0 %v285, 126
      %v345 = vpop.permute.xlu0 %344
      %346 = vrot.lane.b32.xlu0 %v286, 126
      %v347 = vpop.permute.xlu0 %346
      %348 = vrot.lane.b32.xlu0 %v287, 126
      %v349 = vpop.permute.xlu0 %348
      %350 = vrot.lane.b32.xlu0 %v288, 126
      %v351 = vpop.permute.xlu0 %350
      %352 = vrot.lane.b32.xlu0 %v289, 126
      %v353 = vpop.permute.xlu0 %352
      %354 = vrot.lane.b32.xlu0 %v290, 126
      %v355 = vpop.permute.xlu0 %354
      %vm356 = vcmask 1031168
      %v357 = vsel %vm356, %v341, %v343
      %v358 = vsel %vm356, %v343, %v345
      %v359 = vsel %vm356, %v345, %v347
      %v360 = vsel %vm356, %v349, %v351
      %v361 = vsel %vm356, %v351, %v353
      %v362 = vsel %vm356, %v353, %v355
      %369 = vst [vmem:[#allocation2 + $0x60] sm:$0xff] %v357
      %370 = vst [vmem:[#allocation2 + $0x68] sm:$0xff] %v358
      %371 = vst [vmem:[#allocation2 + $0x70] sm:$0xff] %v359
      %372 = vst [vmem:[#allocation2 + $0x78] sm:$0xff] %v360
      %373 = vst [vmem:[#allocation2 + $0x80] sm:$0xff] %v361
      %374 = vst [vmem:[#allocation2 + $0x88] sm:$0xff] %v362
      %375 = vrot.lane.b32.xlu0 %v283, 110
      %v376 = vpop.permute.xlu0 %375
      %377 = vrot.lane.b32.xlu0 %v284, 110
      %v378 = vpop.permute.xlu0 %377
      %379 = vrot.lane.b32.xlu0 %v285, 110
      %v380 = vpop.permute.xlu0 %379
      %381 = vrot.lane.b32.xlu0 %v286, 110
      %v382 = vpop.permute.xlu0 %381
      %383 = vrot.lane.b32.xlu0 %v287, 110
      %v384 = vpop.permute.xlu0 %383
      %385 = vrot.lane.b32.xlu0 %v288, 110
      %v386 = vpop.permute.xlu0 %385
      %387 = vrot.lane.b32.xlu0 %v289, 110
      %v388 = vpop.permute.xlu0 %387
      %389 = vrot.lane.b32.xlu0 %v290, 110
      %v390 = vpop.permute.xlu0 %389
      %vm391 = vcmask 900096
      %v392 = vsel %vm391, %v376, %v378
      %v393 = vsel %vm391, %v378, %v380
      %v394 = vsel %vm391, %v380, %v382
      %v395 = vsel %vm391, %v384, %v386
      %v396 = vsel %vm391, %v386, %v388
      %v397 = vsel %vm391, %v388, %v390
      %404 = vst [vmem:[#allocation2 + $0x90] sm:$0xff] %v392
      %405 = vst [vmem:[#allocation2 + $0x98] sm:$0xff] %v393
      %406 = vst [vmem:[#allocation2 + $0xa0] sm:$0xff] %v394
      %407 = vst [vmem:[#allocation2 + $0xa8] sm:$0xff] %v395
      %408 = vst [vmem:[#allocation2 + $0xb0] sm:$0xff] %v396
      %409 = vst [vmem:[#allocation2 + $0xb8] sm:$0xff] %v397
      %410 = vrot.lane.b32.xlu0 %v283, 109
      %v411 = vpop.permute.xlu0 %410
      %412 = vrot.lane.b32.xlu0 %v284, 109
      %v413 = vpop.permute.xlu0 %412
      %414 = vrot.lane.b32.xlu0 %v285, 109
      %v415 = vpop.permute.xlu0 %414
      %416 = vrot.lane.b32.xlu0 %v286, 109
      %v417 = vpop.permute.xlu0 %416
      %418 = vrot.lane.b32.xlu0 %v287, 109
      %v419 = vpop.permute.xlu0 %418
      %420 = vrot.lane.b32.xlu0 %v288, 109
      %v421 = vpop.permute.xlu0 %420
      %422 = vrot.lane.b32.xlu0 %v289, 109
      %v423 = vpop.permute.xlu0 %422
      %424 = vrot.lane.b32.xlu0 %v290, 109
      %v425 = vpop.permute.xlu0 %424
      %vm426 = vcmask 891904
      %v427 = vsel %vm426, %v411, %v413
      %v428 = vsel %vm426, %v413, %v415
      %v429 = vsel %vm426, %v415, %v417
      %v430 = vsel %vm426, %v419, %v421
      %v431 = vsel %vm426, %v421, %v423
      %v432 = vsel %vm426, %v423, %v425
      %439 = vst [vmem:[#allocation2 + $0xc0] sm:$0xff] %v427
      %440 = vst [vmem:[#allocation2 + $0xc8] sm:$0xff] %v428
      %441 = vst [vmem:[#allocation2 + $0xd0] sm:$0xff] %v429
      %442 = vst [vmem:[#allocation2 + $0xd8] sm:$0xff] %v430
      %443 = vst [vmem:[#allocation2 + $0xe0] sm:$0xff] %v431
      %444 = vst [vmem:[#allocation2 + $0xe8] sm:$0xff] %v432
      %445 = vrot.lane.b32.xlu0 %v283, 108
      %v446 = vpop.permute.xlu0 %445
      %447 = vrot.lane.b32.xlu0 %v284, 108
      %v448 = vpop.permute.xlu0 %447
      %449 = vrot.lane.b32.xlu0 %v285, 108
      %v450 = vpop.permute.xlu0 %449
      %451 = vrot.lane.b32.xlu0 %v286, 108
      %v452 = vpop.permute.xlu0 %451
      %453 = vrot.lane.b32.xlu0 %v287, 108
      %v454 = vpop.permute.xlu0 %453
      %455 = vrot.lane.b32.xlu0 %v288, 108
      %v456 = vpop.permute.xlu0 %455
      %457 = vrot.lane.b32.xlu0 %v289, 108
      %v458 = vpop.permute.xlu0 %457
      %459 = vrot.lane.b32.xlu0 %v290, 108
      %v460 = vpop.permute.xlu0 %459
      %vm461 = vcmask 883712
      %v462 = vsel %vm461, %v446, %v448
      %v463 = vsel %vm461, %v448, %v450
      %v464 = vsel %vm461, %v450, %v452
      %v465 = vsel %vm461, %v454, %v456
      %v466 = vsel %vm461, %v456, %v458
      %v467 = vsel %vm461, %v458, %v460
      %474 = vst [vmem:[#allocation2 + $0xf0] sm:$0xff] %v462
      %475 = vst [vmem:[#allocation2 + $0xf8] sm:$0xff] %v463
      %476 = vst [vmem:[#allocation2 + $0x100] sm:$0xff] %v464
      %477 = vst [vmem:[#allocation2 + $0x108] sm:$0xff] %v465
      %478 = vst [vmem:[#allocation2 + $0x110] sm:$0xff] %v466
      %479 = vst [vmem:[#allocation2 + $0x118] sm:$0xff] %v467
      %480 = vrot.lane.b32.xlu0 %v283, 92
      %v481 = vpop.permute.xlu0 %480
      %482 = vrot.lane.b32.xlu0 %v284, 92
      %v483 = vpop.permute.xlu0 %482
      %484 = vrot.lane.b32.xlu0 %v285, 92
      %v485 = vpop.permute.xlu0 %484
      %486 = vrot.lane.b32.xlu0 %v286, 92
      %v487 = vpop.permute.xlu0 %486
      %488 = vrot.lane.b32.xlu0 %v287, 92
      %v489 = vpop.permute.xlu0 %488
      %490 = vrot.lane.b32.xlu0 %v288, 92
      %v491 = vpop.permute.xlu0 %490
      %492 = vrot.lane.b32.xlu0 %v289, 92
      %v493 = vpop.permute.xlu0 %492
      %494 = vrot.lane.b32.xlu0 %v290, 92
      %v495 = vpop.permute.xlu0 %494
      %vm496 = vcmask 752640
      %v497 = vsel %vm496, %v481, %v483
      %v498 = vsel %vm496, %v483, %v485
      %v499 = vsel %vm496, %v485, %v487
      %v500 = vsel %vm496, %v489, %v491
      %v501 = vsel %vm496, %v491, %v493
      %v502 = vsel %vm496, %v493, %v495
      %509 = vst [vmem:[#allocation2 + $0x120] sm:$0xff] %v497
      %510 = vst [vmem:[#allocation2 + $0x128] sm:$0xff] %v498
      %511 = vst [vmem:[#allocation2 + $0x130] sm:$0xff] %v499
      %512 = vst [vmem:[#allocation2 + $0x138] sm:$0xff] %v500
      %513 = vst [vmem:[#allocation2 + $0x140] sm:$0xff] %v501
      %514 = vst [vmem:[#allocation2 + $0x148] sm:$0xff] %v502
      %515 = vrot.lane.b32.xlu0 %v283, 91
      %v516 = vpop.permute.xlu0 %515
      %517 = vrot.lane.b32.xlu0 %v284, 91
      %v518 = vpop.permute.xlu0 %517
      %519 = vrot.lane.b32.xlu0 %v285, 91
      %v520 = vpop.permute.xlu0 %519
      %521 = vrot.lane.b32.xlu0 %v286, 91
      %v522 = vpop.permute.xlu0 %521
      %523 = vrot.lane.b32.xlu0 %v287, 91
      %v524 = vpop.permute.xlu0 %523
      %525 = vrot.lane.b32.xlu0 %v288, 91
      %v526 = vpop.permute.xlu0 %525
      %527 = vrot.lane.b32.xlu0 %v289, 91
      %v528 = vpop.permute.xlu0 %527
      %529 = vrot.lane.b32.xlu0 %v290, 91
      %v530 = vpop.permute.xlu0 %529
      %vm531 = vcmask 744448
      %v532 = vsel %vm531, %v516, %v518
      %v533 = vsel %vm531, %v518, %v520
      %v534 = vsel %vm531, %v520, %v522
      %v535 = vsel %vm531, %v524, %v526
      %v536 = vsel %vm531, %v526, %v528
      %v537 = vsel %vm531, %v528, %v530
      %544 = vst [vmem:[#allocation2 + $0x150] sm:$0xff] %v532
      %545 = vst [vmem:[#allocation2 + $0x158] sm:$0xff] %v533
      %546 = vst [vmem:[#allocation2 + $0x160] sm:$0xff] %v534
      %547 = vst [vmem:[#allocation2 + $0x168] sm:$0xff] %v535
      %548 = vst [vmem:[#allocation2 + $0x170] sm:$0xff] %v536
      %549 = vst [vmem:[#allocation2 + $0x178] sm:$0xff] %v537
      %550 = vrot.lane.b32.xlu0 %v283, 90
      %v551 = vpop.permute.xlu0 %550
      %552 = vrot.lane.b32.xlu0 %v284, 90
      %v553 = vpop.permute.xlu0 %552
      %554 = vrot.lane.b32.xlu0 %v285, 90
      %v555 = vpop.permute.xlu0 %554
      %556 = vrot.lane.b32.xlu0 %v286, 90
      %v557 = vpop.permute.xlu0 %556
      %558 = vrot.lane.b32.xlu0 %v287, 90
      %v559 = vpop.permute.xlu0 %558
      %560 = vrot.lane.b32.xlu0 %v288, 90
      %v561 = vpop.permute.xlu0 %560
      %562 = vrot.lane.b32.xlu0 %v289, 90
      %v563 = vpop.permute.xlu0 %562
      %564 = vrot.lane.b32.xlu0 %v290, 90
      %v565 = vpop.permute.xlu0 %564
      %vm566 = vcmask 736256
      %v567 = vsel %vm566, %v551, %v553
      %v568 = vsel %vm566, %v553, %v555
      %v569 = vsel %vm566, %v555, %v557
      %v570 = vsel %vm566, %v559, %v561
      %v571 = vsel %vm566, %v561, %v563
      %v572 = vsel %vm566, %v563, %v565
      %579 = vst [vmem:[#allocation2 + $0x180] sm:$0xff] %v567
      %580 = vst [vmem:[#allocation2 + $0x188] sm:$0xff] %v568
      %581 = vst [vmem:[#allocation2 + $0x190] sm:$0xff] %v569
      %582 = vst [vmem:[#allocation2 + $0x198] sm:$0xff] %v570
      %583 = vst [vmem:[#allocation2 + $0x1a0] sm:$0xff] %v571
      %584 = vst [vmem:[#allocation2 + $0x1a8] sm:$0xff] %v572
      %v585 = vld [vmem:[%s1] sm:$0xff]
      %v586 = vld [vmem:[%s1 + $0x8] sm:$0xf]
      %v587 = vld [vmem:[%s1 + $0xc] sm:$0xff]
      %v588 = vld [vmem:[%s1 + $0x14] sm:$0xf]
      %v589 = vld [vmem:[%s1 + $0x18] sm:$0xff]
      %v590 = vld [vmem:[%s1 + $0x20] sm:$0xf]
      %v591 = vld [vmem:[%s1 + $0x24] sm:$0xff]
      %v592 = vld [vmem:[%s1 + $0x2c] sm:$0xf]
      %v593 = vld [vmem:[#allocation2] sm:$0xff]
      %v594 = vld [vmem:[#allocation2 + $0x8] sm:$0xff]
      %v595 = vld [vmem:[#allocation2 + $0x10] sm:$0xff]
      %v596 = vld [vmem:[#allocation2 + $0x18] sm:$0xff]
      %v597 = vld [vmem:[#allocation2 + $0x20] sm:$0xff]
      %v598 = vld [vmem:[#allocation2 + $0x28] sm:$0xff]
      %v599 = vld [vmem:[#allocation2 + $0x30] sm:$0xff]
      %v600 = vld [vmem:[#allocation2 + $0x38] sm:$0xff]
      %v601 = vld [vmem:[#allocation2 + $0x40] sm:$0xff]
      %v602 = vld [vmem:[#allocation2 + $0x48] sm:$0xff]
      %v603 = vld [vmem:[#allocation2 + $0x50] sm:$0xff]
      %v604 = vld [vmem:[#allocation2 + $0x58] sm:$0xff]
      %v605 = vld [vmem:[#allocation2 + $0x60] sm:$0xff]
      %v606 = vld [vmem:[#allocation2 + $0x68] sm:$0xff]
      %v607 = vld [vmem:[#allocation2 + $0x70] sm:$0xff]
      %v608 = vld [vmem:[#allocation2 + $0x78] sm:$0xff]
      %v609 = vld [vmem:[#allocation2 + $0x80] sm:$0xff]
      %v610 = vld [vmem:[#allocation2 + $0x88] sm:$0xff]
      %v611 = vld [vmem:[#allocation2 + $0x90] sm:$0xff]
      %v612 = vld [vmem:[#allocation2 + $0x98] sm:$0xff]
      %v613 = vld [vmem:[#allocation2 + $0xa0] sm:$0xff]
      %v614 = vld [vmem:[#allocation2 + $0xa8] sm:$0xff]
      %v615 = vld [vmem:[#allocation2 + $0xb0] sm:$0xff]
      %v616 = vld [vmem:[#allocation2 + $0xb8] sm:$0xff]
      %v617 = vld [vmem:[#allocation2 + $0xc0] sm:$0xff]
      %v618 = vld [vmem:[#allocation2 + $0xc8] sm:$0xff]
      %v619 = vld [vmem:[#allocation2 + $0xd0] sm:$0xff]
      %v620 = vld [vmem:[#allocation2 + $0xd8] sm:$0xff]
      %v621 = vld [vmem:[#allocation2 + $0xe0] sm:$0xff]
      %v622 = vld [vmem:[#allocation2 + $0xe8] sm:$0xff]
      %v623 = vld [vmem:[#allocation2 + $0xf0] sm:$0xff]
      %v624 = vld [vmem:[#allocation2 + $0xf8] sm:$0xff]
      %v625 = vld [vmem:[#allocation2 + $0x100] sm:$0xff]
      %v626 = vld [vmem:[#allocation2 + $0x108] sm:$0xff]
      %v627 = vld [vmem:[#allocation2 + $0x110] sm:$0xff]
      %v628 = vld [vmem:[#allocation2 + $0x118] sm:$0xff]
      %v629 = vld [vmem:[#allocation2 + $0x120] sm:$0xff]
      %v630 = vld [vmem:[#allocation2 + $0x128] sm:$0xff]
      %v631 = vld [vmem:[#allocation2 + $0x130] sm:$0xff]
      %v632 = vld [vmem:[#allocation2 + $0x138] sm:$0xff]
      %v633 = vld [vmem:[#allocation2 + $0x140] sm:$0xff]
      %v634 = vld [vmem:[#allocation2 + $0x148] sm:$0xff]
      %v635 = vld [vmem:[#allocation2 + $0x150] sm:$0xff]
      %v636 = vld [vmem:[#allocation2 + $0x158] sm:$0xff]
      %v637 = vld [vmem:[#allocation2 + $0x160] sm:$0xff]
      %v638 = vld [vmem:[#allocation2 + $0x168] sm:$0xff]
      %v639 = vld [vmem:[#allocation2 + $0x170] sm:$0xff]
      %v640 = vld [vmem:[#allocation2 + $0x178] sm:$0xff]
      %v641 = vld [vmem:[#allocation2 + $0x180] sm:$0xff]
      %v642 = vld [vmem:[#allocation2 + $0x188] sm:$0xff]
      %v643 = vld [vmem:[#allocation2 + $0x190] sm:$0xff]
      %v644 = vld [vmem:[#allocation2 + $0x198] sm:$0xff]
      %v645 = vld [vmem:[#allocation2 + $0x1a0] sm:$0xff]
      %v646 = vld [vmem:[#allocation2 + $0x1a8] sm:$0xff]
      %v647 = vld [vmem:[%s2] sm:$0xff]
      %v648 = vld [vmem:[%s2 + $0x8] sm:$0xff]
      %v649 = vld [vmem:[%s2 + $0x10] sm:$0xff]
      %v650 = vld [vmem:[%s2 + $0x18] sm:$0xff]
      %652 = vset.pattern.permute.xlu0 0
      %653 = vperm.xlu0 %652, %v647
      %v654 = vpop.permute.xlu0 %653
      %657 = vset.pattern.permute.xlu0 0
      %658 = vperm.xlu0 %657, %v648
      %v659 = vpop.permute.xlu0 %658
      %662 = vset.pattern.permute.xlu0 0
      %663 = vperm.xlu0 %662, %v649
      %v664 = vpop.permute.xlu0 %663
      %667 = vset.pattern.permute.xlu0 0
      %668 = vperm.xlu0 %667, %v650
      %v669 = vpop.permute.xlu0 %668
      %v679 = vunpack.c.l.b16 %v585
      %v680 = vunpack.c.h.b16 %v585
      %v681 = vunpack.c.l.b16 %v586
      %v682 = vunpack.c.l.b16 %v587
      %v683 = vunpack.c.h.b16 %v587
      %v684 = vunpack.c.l.b16 %v588
      %v685 = vunpack.c.l.b16 %v589
      %v686 = vunpack.c.h.b16 %v589
      %v687 = vunpack.c.l.b16 %v590
      %v688 = vunpack.c.l.b16 %v591
      %v689 = vunpack.c.h.b16 %v591
      %v690 = vunpack.c.l.b16 %v592
      %v691 = vpack.c.b16 %v682, %v679
      %v692 = vpack.c.b16 %v683, %v680
      %v693 = vpack.c.b16 %v684, %v681
      %v694 = vpack.c.b16 %v688, %v685
      %v695 = vpack.c.b16 %v689, %v686
      %v696 = vpack.c.b16 %v690, %v687
      %vm701 = vcmask 261120
      %v703 = vsel %vm701, %v693, 0
      %v706 = vsel %vm701, %v696, 0
      %708 = vmatprep.subr.bf16.mxu0 %v594
      %709 = vmatpush1.bf16.msra.mxu0 %v593
      %710 = vmatprep.subr.bf16.mxu0 %v597
      %711 = vmatpush1.bf16.msra.mxu0 %v596
      %712 = vmatprep.subr.bf16.mxu0 %v600
      %713 = vmatpush1.bf16.msra.mxu0 %v599
      %714 = vmatprep.subr.bf16.mxu0 %v603
      %715 = vmatpush1.bf16.msra.mxu0 %v602
      %716 = vmatprep.subr.bf16.mxu0 %v606
      %717 = vmatpush1.bf16.msra.mxu0 %v605
      %718 = vmatprep.subr.bf16.mxu0 %v609
      %719 = vmatpush1.bf16.msra.mxu0 %v608
      %720 = vmatprep.subr.bf16.mxu0 %v612
      %721 = vmatpush1.bf16.msra.mxu0 %v611
      %722 = vmatprep.subr.bf16.mxu0 %v615
      %723 = vmatpush1.bf16.msra.mxu0 %v614
      %724 = vmatprep.subr.bf16.mxu0 %v618
      %725 = vmatpush1.bf16.msra.mxu0 %v617
      %726 = vmatprep.subr.bf16.mxu0 %v621
      %727 = vmatpush1.bf16.msra.mxu0 %v620
      %728 = vmatprep.subr.bf16.mxu0 %v624
      %729 = vmatpush1.bf16.msra.mxu0 %v623
      %730 = vmatprep.subr.bf16.mxu0 %v627
      %731 = vmatpush1.bf16.msra.mxu0 %v626
      %732 = vmatprep.subr.bf16.mxu0 %v630
      %733 = vmatpush1.bf16.msra.mxu0 %v629
      %734 = vmatprep.subr.bf16.mxu0 %v633
      %735 = vmatpush1.bf16.msra.mxu0 %v632
      %736 = vmatprep.subr.bf16.mxu0 %v636
      %737 = vmatpush1.bf16.msra.mxu0 %v635
      %738 = vmatprep.subr.bf16.mxu0 %v639
      %739 = vmatpush1.bf16.msra.mxu0 %v638
      %740 = vmatprep.mubr.bf16.mxu0 %v692
      %741 = vmatmul.mubr.bf16.gmra.mrb[0].mxu0 %v691
      %v742 = vpop.f32.mrb[0].mxu0
      %v743 = vadd.f32 %v654, %v742
      %v744 = vpop.f32.mrb[0].mxu0
      %v745 = vadd.f32 %v654, %v744
      %v746 = vpop.f32.mrb[0].mxu0
      %v747 = vadd.f32 %v659, %v746
      %v748 = vpop.f32.mrb[0].mxu0
      %v749 = vadd.f32 %v659, %v748
      %750 = vmatprep.mubr.bf16.mxu0 %v695
      %751 = vmatmul.mubr.bf16.gmra.mrb[0].mxu0 %v694
      %v752 = vpop.f32.mrb[0].mxu0
      %v753 = vadd.f32 %v664, %v752
      %v754 = vpop.f32.mrb[0].mxu0
      %v755 = vadd.f32 %v664, %v754
      %v756 = vpop.f32.mrb[0].mxu0
      %v757 = vadd.f32 %v669, %v756
      %v758 = vpop.f32.mrb[0].mxu0
      %v759 = vadd.f32 %v669, %v758
      %760 = vdwg.mxu0
      %761 = vmatprep.subr.bf16.mxu0 %v642
      %762 = vmatpush1.bf16.msra.mxu0 %v641
      %763 = vmatprep.subr.bf16.mxu0 %v645
      %764 = vmatpush1.bf16.msra.mxu0 %v644
      %765 = vmatprep.subr.bf16.mxu0 0
      %766 = vmatpush1.bf16.msra.mxu0 0
      %767 = vmatprep.subr.bf16.mxu0 0
      %768 = vmatpush1.bf16.msra.mxu0 0
      %769 = vmatprep.subr.bf16.mxu0 0
      %770 = vmatpush1.bf16.msra.mxu0 0
      %771 = vmatprep.subr.bf16.mxu0 0
      %772 = vmatpush1.bf16.msra.mxu0 0
      %773 = vmatprep.subr.bf16.mxu0 0
      %774 = vmatpush1.bf16.msra.mxu0 0
      %775 = vmatprep.subr.bf16.mxu0 0
      %776 = vmatpush1.bf16.msra.mxu0 0
      %777 = vmatprep.subr.bf16.mxu0 0
      %778 = vmatpush1.bf16.msra.mxu0 0
      %779 = vmatprep.subr.bf16.mxu0 0
      %780 = vmatpush1.bf16.msra.mxu0 0
      %781 = vmatprep.subr.bf16.mxu0 0
      %782 = vmatpush1.bf16.msra.mxu0 0
      %783 = vmatprep.subr.bf16.mxu0 0
      %784 = vmatpush1.bf16.msra.mxu0 0
      %785 = vmatprep.subr.bf16.mxu0 0
      %786 = vmatpush1.bf16.msra.mxu0 0
      %787 = vmatprep.subr.bf16.mxu0 0
      %788 = vmatpush1.bf16.msra.mxu0 0
      %789 = vmatprep.subr.bf16.mxu0 0
      %790 = vmatpush1.bf16.msra.mxu0 0
      %791 = vmatprep.subr.bf16.mxu0 0
      %792 = vmatpush1.bf16.msra.mxu0 0
      %793 = vmatprep.mubr.bf16.mxu0 0
      %794 = vmatmul.mubr.bf16.gmra.mrb[0].mxu0 %v703
      %v795 = vpop.f32.mrb[0].mxu0
      %v796 = vadd.f32 %v743, %v795
      %v797 = vpop.f32.mrb[0].mxu0
      %v798 = vadd.f32 %v745, %v797
      %v799 = vpop.f32.mrb[0].mxu0
      %v800 = vadd.f32 %v747, %v799
      %v801 = vpop.f32.mrb[0].mxu0
      %v802 = vadd.f32 %v749, %v801
      %803 = vmatprep.mubr.bf16.mxu0 0
      %804 = vmatmul.mubr.bf16.gmra.mrb[0].mxu0 %v706
      %v805 = vpop.f32.mrb[0].mxu0
      %v806 = vadd.f32 %v753, %v805
      %v807 = vpop.f32.mrb[0].mxu0
      %v808 = vadd.f32 %v755, %v807
      %v809 = vpop.f32.mrb[0].mxu0
      %v810 = vadd.f32 %v757, %v809
      %v811 = vpop.f32.mrb[0].mxu0
      %v812 = vadd.f32 %v759, %v811
      %813 = vdwg.mxu0
      %814 = vmatprep.subr.bf16.mxu0 0
      %815 = vmatpush1.bf16.msra.mxu0 %v595
      %816 = vmatprep.subr.bf16.mxu0 0
      %817 = vmatpush1.bf16.msra.mxu0 %v598
      %818 = vmatprep.subr.bf16.mxu0 0
      %819 = vmatpush1.bf16.msra.mxu0 %v601
      %820 = vmatprep.subr.bf16.mxu0 0
      %821 = vmatpush1.bf16.msra.mxu0 %v604
      %822 = vmatprep.subr.bf16.mxu0 0
      %823 = vmatpush1.bf16.msra.mxu0 %v607
      %824 = vmatprep.subr.bf16.mxu0 0
      %825 = vmatpush1.bf16.msra.mxu0 %v610
      %826 = vmatprep.subr.bf16.mxu0 0
      %827 = vmatpush1.bf16.msra.mxu0 %v613
      %828 = vmatprep.subr.bf16.mxu0 0
      %829 = vmatpush1.bf16.msra.mxu0 %v616
      %830 = vmatprep.subr.bf16.mxu0 0
      %831 = vmatpush1.bf16.msra.mxu0 %v619
      %832 = vmatprep.subr.bf16.mxu0 0
      %833 = vmatpush1.bf16.msra.mxu0 %v622
      %834 = vmatprep.subr.bf16.mxu0 0
      %835 = vmatpush1.bf16.msra.mxu0 %v625
      %836 = vmatprep.subr.bf16.mxu0 0
      %837 = vmatpush1.bf16.msra.mxu0 %v628
      %838 = vmatprep.subr.bf16.mxu0 0
      %839 = vmatpush1.bf16.msra.mxu0 %v631
      %840 = vmatprep.subr.bf16.mxu0 0
      %841 = vmatpush1.bf16.msra.mxu0 %v634
      %842 = vmatprep.subr.bf16.mxu0 0
      %843 = vmatpush1.bf16.msra.mxu0 %v637
      %844 = vmatprep.subr.bf16.mxu0 0
      %845 = vmatpush1.bf16.msra.mxu0 %v640
      %846 = vmatprep.mubr.bf16.mxu0 %v692
      %847 = vmatmul.mubr.bf16.gmra.mrb[0].mxu0 %v691
      %v848 = vpop.f32.mrb[0].mxu0
      %v849 = vadd.f32 %v654, %v848
      %v850 = vpop.f32.mrb[0].mxu0
      %v851 = vpop.f32.mrb[0].mxu0
      %v852 = vadd.f32 %v659, %v851
      %v853 = vpop.f32.mrb[0].mxu0
      %854 = vmatprep.mubr.bf16.mxu0 %v695
      %855 = vmatmul.mubr.bf16.gmra.mrb[0].mxu0 %v694
      %v856 = vpop.f32.mrb[0].mxu0
      %v857 = vadd.f32 %v664, %v856
      %v858 = vpop.f32.mrb[0].mxu0
      %v859 = vpop.f32.mrb[0].mxu0
      %v860 = vadd.f32 %v669, %v859
      %v861 = vpop.f32.mrb[0].mxu0
      %862 = vdwg.mxu0
      %863 = vmatprep.subr.bf16.mxu0 0
      %864 = vmatpush1.bf16.msra.mxu0 %v643
      %865 = vmatprep.subr.bf16.mxu0 0
      %866 = vmatpush1.bf16.msra.mxu0 %v646
      %867 = vmatprep.subr.bf16.mxu0 0
      %868 = vmatpush1.bf16.msra.mxu0 0
      %869 = vmatprep.subr.bf16.mxu0 0
      %870 = vmatpush1.bf16.msra.mxu0 0
      %871 = vmatprep.subr.bf16.mxu0 0
      %872 = vmatpush1.bf16.msra.mxu0 0
      %873 = vmatprep.subr.bf16.mxu0 0
      %874 = vmatpush1.bf16.msra.mxu0 0
      %875 = vmatprep.subr.bf16.mxu0 0
      %876 = vmatpush1.bf16.msra.mxu0 0
      %877 = vmatprep.subr.bf16.mxu0 0
      %878 = vmatpush1.bf16.msra.mxu0 0
      %879 = vmatprep.subr.bf16.mxu0 0
      %880 = vmatpush1.bf16.msra.mxu0 0
      %881 = vmatprep.subr.bf16.mxu0 0
      %882 = vmatpush1.bf16.msra.mxu0 0
      %883 = vmatprep.subr.bf16.mxu0 0
      %884 = vmatpush1.bf16.msra.mxu0 0
      %885 = vmatprep.subr.bf16.mxu0 0
      %886 = vmatpush1.bf16.msra.mxu0 0
      %887 = vmatprep.subr.bf16.mxu0 0
      %888 = vmatpush1.bf16.msra.mxu0 0
      %889 = vmatprep.subr.bf16.mxu0 0
      %890 = vmatpush1.bf16.msra.mxu0 0
      %891 = vmatprep.subr.bf16.mxu0 0
      %892 = vmatpush1.bf16.msra.mxu0 0
      %893 = vmatprep.subr.bf16.mxu0 0
      %894 = vmatpush1.bf16.msra.mxu0 0
      %895 = vmatprep.mubr.bf16.mxu0 0
      %896 = vmatmul.mubr.bf16.gmra.mrb[0].mxu0 %v703
      %v897 = vpop.f32.mrb[0].mxu0
      %v898 = vadd.f32 %v849, %v897
      %v899 = vpop.f32.mrb[0].mxu0
      %v900 = vpop.f32.mrb[0].mxu0
      %v901 = vadd.f32 %v852, %v900
      %v902 = vpop.f32.mrb[0].mxu0
      %903 = vmatprep.mubr.bf16.mxu0 0
      %904 = vmatmul.mubr.bf16.gmra.mrb[0].mxu0 %v706
      %v905 = vpop.f32.mrb[0].mxu0
      %v906 = vadd.f32 %v857, %v905
      %v907 = vpop.f32.mrb[0].mxu0
      %v908 = vpop.f32.mrb[0].mxu0
      %v909 = vadd.f32 %v860, %v908
      %v910 = vpop.f32.mrb[0].mxu0
      %911 = vdwg.mxu0
      %v912 = vld [vmem:[%s212] sm:$0xff]
      %v913 = vld [vmem:[%s212 + $0x8] sm:$0xff]
      %v914 = vld [vmem:[%s212 + $0x10] sm:$0xff]
      %v915 = vld [vmem:[%s212 + $0x18] sm:$0xff]
      %v916 = vld [vmem:[%s212 + $0x20] sm:$0xff]
      %v917 = vld [vmem:[%s212 + $0x28] sm:$0xff]
      %v918 = vld [vmem:[%s212 + $0x30] sm:$0xff]
      %v919 = vld [vmem:[%s212 + $0x38] sm:$0xff]
      %v920 = vld [vmem:[%s212 + $0x40] sm:$0xff]
      %v921 = vld [vmem:[%s212 + $0x48] sm:$0xff]
      %v922 = vld [vmem:[%s212 + $0x50] sm:$0xff]
      %v923 = vld [vmem:[%s212 + $0x58] sm:$0xff]
      %v924 = vadd.f32 %v796, %v912
      %v925 = vadd.f32 %v798, %v913
      %v926 = vadd.f32 %v898, %v914
      %v927 = vadd.f32 %v800, %v915
      %v928 = vadd.f32 %v802, %v916
      %v929 = vadd.f32 %v901, %v917
      %v930 = vadd.f32 %v806, %v918
      %v931 = vadd.f32 %v808, %v919
      %v932 = vadd.f32 %v906, %v920
      %v933 = vadd.f32 %v810, %v921
      %v934 = vadd.f32 %v812, %v922
      %v935 = vadd.f32 %v909, %v923
      %v936 = vmul.f32 %v924, 0.70710677
      %v937 = vmul.f32 %v925, 0.70710677
      %v938 = vmul.f32 %v926, 0.70710677
      %v939 = vmul.f32 %v927, 0.70710677
      %v940 = vmul.f32 %v928, 0.70710677
      %v941 = vmul.f32 %v929, 0.70710677
      %v942 = vmul.f32 %v930, 0.70710677
      %v943 = vmul.f32 %v931, 0.70710677
      %v944 = vmul.f32 %v932, 0.70710677
      %v945 = vmul.f32 %v933, 0.70710677
      %v946 = vmul.f32 %v934, 0.70710677
      %v947 = vmul.f32 %v935, 0.70710677
      %948 = vst [vmem:[%s217] sm:$0xff] %v936
      %949 = vst [vmem:[%s217 + $0x8] sm:$0xff] %v937
      %950 = vst [vmem:[%s217 + $0x10] sm:$0xff] %v938
      %951 = vst [vmem:[%s217 + $0x18] sm:$0xff] %v939
      %952 = vst [vmem:[%s217 + $0x20] sm:$0xff] %v940
      %953 = vst [vmem:[%s217 + $0x28] sm:$0xff] %v941
      %954 = vst [vmem:[%s217 + $0x30] sm:$0xff] %v942
      %955 = vst [vmem:[%s217 + $0x38] sm:$0xff] %v943
      %956 = vst [vmem:[%s217 + $0x40] sm:$0xff] %v944
      %957 = vst [vmem:[%s217 + $0x48] sm:$0xff] %v945
      %958 = vst [vmem:[%s217 + $0x50] sm:$0xff] %v946
      %959 = vst [vmem:[%s217 + $0x58] sm:$0xff] %v947
      %p960 = scmp.lt.s32.totalorder %s15, 1
      %s961 = scalar_select %p960, %s15, 1
      %s962 = smul.addr %s961, 12
      %s963 = smul.addr %s962, 8
      %s964 = scalar_lea.vmem %s4, %s963
      // Predicated region
      $region37: #{_lambda_.7} parent=35 // pred_check
        %p965 = pneg %p127
      $region38: #{_lambda_.7} parent=35 // pred_check_branch
        %967 = sbr.rel (%p965) target = $region40
      $region39: #{_lambda_.7} parent=35 // pred_region
        _
      $region40: #{_lambda_.7} parent=35 // pred_fallthru
        _
    $region36: #{_lambda_.7} parent=5 // pred_fallthru
      _
    %p968 = scmp.le.s32.totalorder 2, %s10
    // Predicated region
    $region41: #{_lambda_.7} parent=5 // pred_check
      %p969 = pneg %p968
    $region42: #{_lambda_.7} parent=5 // pred_check_branch
      %971 = sbr.rel (%p969) target = $region44
    $region43: #{_lambda_.7} parent=5 // pred_region
      %s972 = ssub.s32 %s10, 2
      // Predicated region
      $region45: #{_lambda_.7} parent=43 // pred_check
        %p973 = pneg %p133
      $region46: #{_lambda_.7} parent=43 // pred_check_branch
        %975 = sbr.rel (%p973) target = $region48
      $region47: #{_lambda_.7} parent=43 // pred_region
        %p976 = scmp.lt.s32.totalorder %s16, 1
        %s977 = scalar_select %p976, %s16, 1
        %s978 = smul.addr %s977, 12
        %s979 = smul.addr %s978, 8
        %s980 = scalar_lea.vmem %s4, %s979
      $region48: #{_lambda_.7} parent=43 // pred_fallthru
        _
    $region44: #{_lambda_.7} parent=5 // pred_fallthru
      _
  $region6: #{_lambda_.7} parent=0 // loop_footer
    %s14 = sadd.s32 1, %s10
  $region7: #{_lambda_.7} parent=0 // loop_footer_branch
    %9 = sbr.rel target = $region3
  $region8: #{_lambda_.7} parent=0 // loop_exit
    _

// kernel: _lambda_.5
$region0: #{_lambda_.5}
  #allocation0 [shape = 'u32[]', space=smem, size = 0x4, offset = 0x4, fixed_abs, tag = 'smem constant byte address 0x4 - core index']
  #allocation1 [shape = 'u32[144,128]{1,0:T(1,128)}', space=vmem, size = 0x12000, scoped, tag = 'internal scratch']
  #allocation2 [shape = 'bf16[288,128]{1,0:T(16,128)(2,1)}', space=vmem, size = 0x12000, scoped, tag = 'scratch operand']
  %s0 = inlined_call_operand.vmem [shape: f32[2,32,256], index: 0, kind: input, shape index: {}]
  %s1 = inlined_call_operand.vmem [shape: f32[32,1], index: 1, kind: input, shape index: {}]
  %s2 = inlined_call_operand.vmem [shape: f32[32,1], index: 2, kind: input, shape index: {}]
  %s3 = inlined_call_operand.vmem [shape: bf16[64,288], index: 3, kind: input, shape index: {}]
  %s4 = inlined_call_operand.vmem [shape: f32[64,1], index: 4, kind: input, shape index: {}]
  %s5 = inlined_call_operand.vmem [shape: f32[2,32,128], index: 5, kind: input, shape index: {}]
  %s6 = inlined_call_operand.vmem [shape: bf16[64,32], index: 6, kind: input, shape index: {}]
  %s7 = inlined_call_operand.vmem [shape: f32[2,64,128], index: 7, kind: output, shape index: {}]
  %s8 = sld [smem:[#allocation0]]
  $region61: #{_lambda_.5} parent=0
    _
  %s10 = ssub.s32 1, %s8
  %s11 = scalar_select 0, %s10, %s8
  loop: start=0, step=1, limit=4
  $region2: #{_lambda_.5} parent=0 // loop_pre_header
    _
  $region3: #{_lambda_.5} parent=0 // loop_header
    %s13 = sphi 0, %s17
    %p14 = scmp.ge.s32.totalorder %s13, 4
    %s23 = sphi 0, %s25
    %s26 = sphi 0, %s23
    %s27 = sphi 0, %s26
    %s43 = sphi 0, %s27
    %s47 = sphi 0, %s47
    %s49 = sphi 0, %s47
    %s50 = sphi 0, %s49
    %s64 = sphi 0, %s50
    %s68 = sphi 0, %s68
    %s70 = sphi 0, %s68
    %s71 = sphi 0, %s70
    %s85 = sphi 0, %s71
    %s89 = sphi 0, %s89
    %s91 = sphi 0, %s89
    %s92 = sphi 0, %s91
    %s106 = sphi 0, %s92
    %s110 = sphi 0, %s110
    %s112 = sphi 0, %s110
    %s113 = sphi 0, %s112
    %s127 = sphi 0, %s113
    %s133 = sphi 0, %s135
    %s136 = sphi 0, %s133
    %s137 = sphi 0, %s136
    %s153 = sphi 0, %s137
    %s157 = sphi 0, %s157
    %s159 = sphi 0, %s157
    %s160 = sphi 0, %s159
    %s174 = sphi 0, %s160
    %s180 = sphi 0, %s182
    %s183 = sphi 0, %s180
    %s184 = sphi 0, %s183
    %s200 = sphi 0, %s184
  $region4: #{_lambda_.5} parent=0 // loop_header_branch
    %16 = sbr.rel (%p14) target = $region8
  $region5: #{_lambda_.5} parent=0 // loop_body
    %s18 = ssub.s32 %s13, 1
    %s19 = ssub.s32 %s13, 2
    %s20 = sadd.s32 %s13, 1
    %s21 = ssub.s32 %s13, %s20
    %p22 = scmp.eq.s32.totalorder %s21, 0
    %s24 = sadd.s32 %s23, 1
    %s25 = scalar_select %p22, %s23, %s24
    %p28 = pneg %p22
    %p29 = scmp.eq.s32.totalorder %s13, 1
    %p30 = por %p28, %p29
    %p31 = scmp.ne.s32.totalorder %s23, %s26
    %p32 = scmp.eq.s32.totalorder %s13, 0
    %p33 = por %p31, %p32
    %p34 = scmp.ne.s32.totalorder %s23, %s26
    %p35 = scmp.eq.s32.totalorder %s18, 1
    %p36 = por %p34, %p35
    %p37 = scmp.ne.s32.totalorder %s26, %s27
    %p38 = scmp.eq.s32.totalorder %s18, 0
    %p39 = por %p37, %p38
    %p40 = scmp.ne.s32.totalorder %s26, %s27
    %p41 = scmp.eq.s32.totalorder %s19, 1
    %p42 = por %p40, %p41
    %p44 = scmp.ne.s32.totalorder %s27, %s43
    %p45 = scmp.eq.s32.totalorder %s19, 0
    %p46 = por %p44, %p45
    %s48 = sadd.s32 %s47, 1
    %p51 = scmp.eq.s32.totalorder %s13, 1
    %p52 = scmp.ne.s32.totalorder %s47, %s49
    %p53 = scmp.eq.s32.totalorder %s13, 0
    %p54 = por %p52, %p53
    %p55 = scmp.ne.s32.totalorder %s47, %s49
    %p56 = scmp.eq.s32.totalorder %s18, 1
    %p57 = por %p55, %p56
    %p58 = scmp.ne.s32.totalorder %s49, %s50
    %p59 = scmp.eq.s32.totalorder %s18, 0
    %p60 = por %p58, %p59
    %p61 = scmp.ne.s32.totalorder %s49, %s50
    %p62 = scmp.eq.s32.totalorder %s19, 1
    %p63 = por %p61, %p62
    %p65 = scmp.ne.s32.totalorder %s50, %s64
    %p66 = scmp.eq.s32.totalorder %s19, 0
    %p67 = por %p65, %p66
    %s69 = sadd.s32 %s68, 1
    %p72 = scmp.eq.s32.totalorder %s13, 1
    %p73 = scmp.ne.s32.totalorder %s68, %s70
    %p74 = scmp.eq.s32.totalorder %s13, 0
    %p75 = por %p73, %p74
    %p76 = scmp.ne.s32.totalorder %s68, %s70
    %p77 = scmp.eq.s32.totalorder %s18, 1
    %p78 = por %p76, %p77
    %p79 = scmp.ne.s32.totalorder %s70, %s71
    %p80 = scmp.eq.s32.totalorder %s18, 0
    %p81 = por %p79, %p80
    %p82 = scmp.ne.s32.totalorder %s70, %s71
    %p83 = scmp.eq.s32.totalorder %s19, 1
    %p84 = por %p82, %p83
    %p86 = scmp.ne.s32.totalorder %s71, %s85
    %p87 = scmp.eq.s32.totalorder %s19, 0
    %p88 = por %p86, %p87
    %s90 = sadd.s32 %s89, 1
    %p93 = scmp.eq.s32.totalorder %s13, 1
    %p94 = scmp.ne.s32.totalorder %s89, %s91
    %p95 = scmp.eq.s32.totalorder %s13, 0
    %p96 = por %p94, %p95
    %p97 = scmp.ne.s32.totalorder %s89, %s91
    %p98 = scmp.eq.s32.totalorder %s18, 1
    %p99 = por %p97, %p98
    %p100 = scmp.ne.s32.totalorder %s91, %s92
    %p101 = scmp.eq.s32.totalorder %s18, 0
    %p102 = por %p100, %p101
    %p103 = scmp.ne.s32.totalorder %s91, %s92
    %p104 = scmp.eq.s32.totalorder %s19, 1
    %p105 = por %p103, %p104
    %p107 = scmp.ne.s32.totalorder %s92, %s106
    %p108 = scmp.eq.s32.totalorder %s19, 0
    %p109 = por %p107, %p108
    %s111 = sadd.s32 %s110, 1
    %p114 = scmp.eq.s32.totalorder %s13, 1
    %p115 = scmp.ne.s32.totalorder %s110, %s112
    %p116 = scmp.eq.s32.totalorder %s13, 0
    %p117 = por %p115, %p116
    %p118 = scmp.ne.s32.totalorder %s110, %s112
    %p119 = scmp.eq.s32.totalorder %s18, 1
    %p120 = por %p118, %p119
    %p121 = scmp.ne.s32.totalorder %s112, %s113
    %p122 = scmp.eq.s32.totalorder %s18, 0
    %p123 = por %p121, %p122
    %p124 = scmp.ne.s32.totalorder %s112, %s113
    %p125 = scmp.eq.s32.totalorder %s19, 1
    %p126 = por %p124, %p125
    %p128 = scmp.ne.s32.totalorder %s113, %s127
    %p129 = scmp.eq.s32.totalorder %s19, 0
    %p130 = por %p128, %p129
    %s131 = ssub.s32 %s13, %s20
    %p132 = scmp.eq.s32.totalorder %s131, 0
    %s134 = sadd.s32 %s133, 1
    %s135 = scalar_select %p132, %s133, %s134
    %p138 = pneg %p132
    %p139 = scmp.eq.s32.totalorder %s13, 1
    %p140 = por %p138, %p139
    %p141 = scmp.ne.s32.totalorder %s133, %s136
    %p142 = scmp.eq.s32.totalorder %s13, 0
    %p143 = por %p141, %p142
    %p144 = scmp.ne.s32.totalorder %s133, %s136
    %p145 = scmp.eq.s32.totalorder %s18, 1
    %p146 = por %p144, %p145
    %p147 = scmp.ne.s32.totalorder %s136, %s137
    %p148 = scmp.eq.s32.totalorder %s18, 0
    %p149 = por %p147, %p148
    %p150 = scmp.ne.s32.totalorder %s136, %s137
    %p151 = scmp.eq.s32.totalorder %s19, 1
    %p152 = por %p150, %p151
    %p154 = scmp.ne.s32.totalorder %s137, %s153
    %p155 = scmp.eq.s32.totalorder %s19, 0
    %p156 = por %p154, %p155
    %s158 = sadd.s32 %s157, 1
    %p161 = scmp.eq.s32.totalorder %s13, 1
    %p162 = scmp.ne.s32.totalorder %s157, %s159
    %p163 = scmp.eq.s32.totalorder %s13, 0
    %p164 = por %p162, %p163
    %p165 = scmp.ne.s32.totalorder %s157, %s159
    %p166 = scmp.eq.s32.totalorder %s18, 1
    %p167 = por %p165, %p166
    %p168 = scmp.ne.s32.totalorder %s159, %s160
    %p169 = scmp.eq.s32.totalorder %s18, 0
    %p170 = por %p168, %p169
    %p171 = scmp.ne.s32.totalorder %s159, %s160
    %p172 = scmp.eq.s32.totalorder %s19, 1
    %p173 = por %p171, %p172
    %p175 = scmp.ne.s32.totalorder %s160, %s174
    %p176 = scmp.eq.s32.totalorder %s19, 0
    %p177 = por %p175, %p176
    %s178 = ssub.s32 %s13, %s20
    %p179 = scmp.eq.s32.totalorder %s178, 0
    %s181 = sadd.s32 %s180, 1
    %s182 = scalar_select %p179, %s180, %s181
    %p185 = pneg %p179
    %p186 = scmp.eq.s32.totalorder %s13, 1
    %p187 = por %p185, %p186
    %p188 = scmp.ne.s32.totalorder %s180, %s183
    %p189 = scmp.eq.s32.totalorder %s13, 0
    %p190 = por %p188, %p189
    %p191 = scmp.ne.s32.totalorder %s180, %s183
    %p192 = scmp.eq.s32.totalorder %s18, 1
    %p193 = por %p191, %p192
    %p194 = scmp.ne.s32.totalorder %s183, %s184
    %p195 = scmp.eq.s32.totalorder %s18, 0
    %p196 = por %p194, %p195
    %p197 = scmp.ne.s32.totalorder %s183, %s184
    %p198 = scmp.eq.s32.totalorder %s19, 1
    %p199 = por %p197, %p198
    %p201 = scmp.ne.s32.totalorder %s184, %s200
    %p202 = scmp.eq.s32.totalorder %s19, 0
    %p203 = por %p201, %p202
    %p204 = scmp.le.s32.totalorder 1, %s13
    %p205 = scmp.lt.s32.totalorder %s13, 3
    %p206 = pnand %p204, %p205
    %p207 = pneg %p206
    // Predicated region
    $region9: #{_lambda_.5} parent=5 // pred_check
      _
    $region10: #{_lambda_.5} parent=5 // pred_check_branch
      %209 = sbr.rel (%p206) target = $region12
    $region11: #{_lambda_.5} parent=5 // pred_region
      %s210 = ssub.s32 %s13, 1
      // Predicated region
      $region13: #{_lambda_.5} parent=11 // pred_check
        %p211 = pneg %p60
      $region14: #{_lambda_.5} parent=11 // pred_check_branch
        %213 = sbr.rel (%p211) target = $region16
      $region15: #{_lambda_.5} parent=11 // pred_region
        _
      $region16: #{_lambda_.5} parent=11 // pred_fallthru
        _
      // Predicated region
      $region17: #{_lambda_.5} parent=11 // pred_check
        %p214 = pneg %p81
      $region18: #{_lambda_.5} parent=11 // pred_check_branch
        %216 = sbr.rel (%p214) target = $region20
      $region19: #{_lambda_.5} parent=11 // pred_region
        _
      $region20: #{_lambda_.5} parent=11 // pred_fallthru
        _
      // Predicated region
      $region21: #{_lambda_.5} parent=11 // pred_check
        %p217 = pneg %p102
      $region22: #{_lambda_.5} parent=11 // pred_check_branch
        %219 = sbr.rel (%p217) target = $region24
      $region23: #{_lambda_.5} parent=11 // pred_region
        _
      $region24: #{_lambda_.5} parent=11 // pred_fallthru
        _
      // Predicated region
      $region25: #{_lambda_.5} parent=11 // pred_check
        %p220 = pneg %p123
      $region26: #{_lambda_.5} parent=11 // pred_check_branch
        %222 = sbr.rel (%p220) target = $region28
      $region27: #{_lambda_.5} parent=11 // pred_region
        _
      $region28: #{_lambda_.5} parent=11 // pred_fallthru
        _
      // Predicated region
      $region29: #{_lambda_.5} parent=11 // pred_check
        %p223 = pneg %p170
      $region30: #{_lambda_.5} parent=11 // pred_check_branch
        %225 = sbr.rel (%p223) target = $region32
      $region31: #{_lambda_.5} parent=11 // pred_region
        _
      $region32: #{_lambda_.5} parent=11 // pred_fallthru
        _
    $region12: #{_lambda_.5} parent=5 // pred_fallthru
      _
    %p226 = scmp.lt.s32.totalorder %s13, 2
    // Predicated region
    $region33: #{_lambda_.5} parent=5 // pred_check
      %p227 = pneg %p226
    $region34: #{_lambda_.5} parent=5 // pred_check_branch
      %229 = sbr.rel (%p227) target = $region36
    $region35: #{_lambda_.5} parent=5 // pred_region
      // Predicated region
      $region37: #{_lambda_.5} parent=35 // pred_check
        %p230 = pneg %p33
      $region38: #{_lambda_.5} parent=35 // pred_check_branch
        %232 = sbr.rel (%p230) target = $region40
      $region39: #{_lambda_.5} parent=35 // pred_region
        %p233 = scmp.lt.s32.totalorder %s13, 1
        %s234 = scalar_select %p233, %s13, 1
        %s235 = smul.addr %s234, 8
        %s236 = smul.addr %s235, 8
        %s237 = scalar_lea.vmem %s0, %s236
      $region40: #{_lambda_.5} parent=35 // pred_fallthru
        _
      // Predicated region
      $region41: #{_lambda_.5} parent=35 // pred_check
        %p238 = pneg %p143
      $region42: #{_lambda_.5} parent=35 // pred_check_branch
        %240 = sbr.rel (%p238) target = $region44
      $region43: #{_lambda_.5} parent=35 // pred_region
        %p241 = scmp.lt.s32.totalorder %s13, 1
        %s242 = scalar_select %p241, %s13, 1
        %s243 = smul.addr %s242, 4
        %s244 = smul.addr %s243, 8
        %s245 = scalar_lea.vmem %s5, %s244
      $region44: #{_lambda_.5} parent=35 // pred_fallthru
        _
    $region36: #{_lambda_.5} parent=5 // pred_fallthru
      _
    %p246 = scmp.le.s32.totalorder 1, %s13
    %p247 = scmp.lt.s32.totalorder %s13, 3
    %p248 = pnand %p246, %p247
    %p249 = pneg %p248
    // Predicated region
    $region45: #{_lambda_.5} parent=5 // pred_check
      _
    $region46: #{_lambda_.5} parent=5 // pred_check_branch
      %251 = sbr.rel (%p248) target = $region48
    $region47: #{_lambda_.5} parent=5 // pred_region
      %s252 = ssub.s32 %s13, 1
      %p253 = scmp.lt.s32.totalorder %s18, 1
      %s254 = scalar_select %p253, %s18, 1
      %s255 = smul.addr %s254, 8
      %s256 = smul.addr %s255, 8
      %s257 = scalar_lea.vmem %s0, %s256
      %p258 = pneg %p39
      %p259 = pneg %p36
      %p260 = pneg %p60
      %p261 = pneg %p57
      %p262 = pneg %p81
      %p263 = pneg %p78
      %p264 = pneg %p102
      %p265 = pneg %p99
      %p266 = pneg %p123
      %p267 = pneg %p120
      %p268 = scmp.lt.s32.totalorder %s18, 1
      %s269 = scalar_select %p268, %s18, 1
      %s270 = smul.addr %s269, 4
      %s271 = smul.addr %s270, 8
      %s272 = scalar_lea.vmem %s5, %s271
      %p273 = pneg %p149
      %p274 = pneg %p146
      %p275 = pneg %p170
      %p276 = pneg %p167
      %p277 = pneg %p196
      %p278 = pneg %p193
      %p279 = scmp.lt.s32.totalorder %s18, 1
      %s280 = scalar_select %p279, %s18, 1
      %s281 = smul.addr %s280, 8
      %s282 = smul.addr %s281, 8
      %s283 = scalar_lea.vmem %s7, %s282
      %p284 = scmp.lt.s32.totalorder %s18, 1
      %s285 = scalar_select %p284, %s18, 1
      %s286 = smul.addr %s285, 8
      %s287 = smul.addr %s286, 8
      %s288 = scalar_lea.vmem %s0, %s287
      %p289 = scmp.lt.s32.totalorder %s18, 1
      %s290 = scalar_select %p289, %s18, 1
      %s291 = smul.addr %s290, 4
      %s292 = smul.addr %s291, 8
      %s293 = scalar_lea.vmem %s5, %s292
      %p294 = scmp.lt.s32.totalorder %s18, 1
      %s295 = scalar_select %p294, %s18, 1
      %s296 = smul.addr %s295, 8
      %s297 = smul.addr %s296, 8
      %s298 = scalar_lea.vmem %s7, %s297
      %v300 = vld [vmem:[%s288] sm:$0xff]
      %v301 = vld [vmem:[%s288 + $0x8] sm:$0xff]
      %v302 = vld [vmem:[%s288 + $0x10] sm:$0xff]
      %v303 = vld [vmem:[%s288 + $0x18] sm:$0xff]
      %v304 = vld [vmem:[%s288 + $0x20] sm:$0xff]
      %v305 = vld [vmem:[%s288 + $0x28] sm:$0xff]
      %v306 = vld [vmem:[%s288 + $0x30] sm:$0xff]
      %v307 = vld [vmem:[%s288 + $0x38] sm:$0xff]
      %v308 = vadd.f32 %v300, %v301
      %309 = vadd.xlane.f32.xlu0 %v308
      %v310 = vpop.xlane.xlu0 %309
      %v311 = vadd.f32 %v302, %v303
      %312 = vadd.xlane.f32.xlu0 %v311
      %v313 = vpop.xlane.xlu0 %312
      %v314 = vadd.f32 %v304, %v305
      %315 = vadd.xlane.f32.xlu0 %v314
      %v316 = vpop.xlane.xlu0 %315
      %v317 = vadd.f32 %v306, %v307
      %318 = vadd.xlane.f32.xlu0 %v317
      %v319 = vpop.xlane.xlu0 %318
      %v320 = vmul.f32 %v310, 0.015625
      %v321 = vmul.f32 %v313, 0.015625
      %v322 = vmul.f32 %v316, 0.015625
      %v323 = vmul.f32 %v319, 0.015625
      %v324 = vmul.f32 %v300, %v300
      %v325 = vmul.f32 %v301, %v301
      %v326 = vmul.f32 %v302, %v302
      %v327 = vmul.f32 %v303, %v303
      %v328 = vmul.f32 %v304, %v304
      %v329 = vmul.f32 %v305, %v305
      %v330 = vmul.f32 %v306, %v306
      %v331 = vmul.f32 %v307, %v307
      %v332 = vadd.f32 %v324, %v325
      %333 = vadd.xlane.f32.xlu0 %v332
      %v334 = vpop.xlane.xlu0 %333
      %v335 = vadd.f32 %v326, %v327
      %336 = vadd.xlane.f32.xlu0 %v335
      %v337 = vpop.xlane.xlu0 %336
      %v338 = vadd.f32 %v328, %v329
      %339 = vadd.xlane.f32.xlu0 %v338
      %v340 = vpop.xlane.xlu0 %339
      %v341 = vadd.f32 %v330, %v331
      %342 = vadd.xlane.f32.xlu0 %v341
      %v343 = vpop.xlane.xlu0 %342
      %v344 = vmul.f32 %v334, 0.015625
      %v345 = vmul.f32 %v337, 0.015625
      %v346 = vmul.f32 %v340, 0.015625
      %v347 = vmul.f32 %v343, 0.015625
      %v348 = vmul.f32 %v320, %v320
      %v349 = vmul.f32 %v321, %v321
      %v350 = vmul.f32 %v322, %v322
      %v351 = vmul.f32 %v323, %v323
      %v352 = vsub.f32 %v344, %v348
      %v353 = vsub.f32 %v345, %v349
      %v354 = vsub.f32 %v346, %v350
      %v355 = vsub.f32 %v347, %v351
      %v356 = vmax.f32 %v352, 0.0
      %v357 = vmax.f32 %v353, 0.0
      %v358 = vmax.f32 %v354, 0.0
      %v359 = vmax.f32 %v355, 0.0
      %v360 = vsub.f32 %v300, %v320
      %v361 = vsub.f32 %v301, %v320
      %v362 = vsub.f32 %v302, %v321
      %v363 = vsub.f32 %v303, %v321
      %v364 = vsub.f32 %v304, %v322
      %v365 = vsub.f32 %v305, %v322
      %v366 = vsub.f32 %v306, %v323
      %v367 = vsub.f32 %v307, %v323
      %v368 = vadd.f32 %v356, 1e-05
      %v369 = vadd.f32 %v357, 1e-05
      %v370 = vadd.f32 %v358, 1e-05
      %v371 = vadd.f32 %v359, 1e-05
      %v372 = vrsqrt.pop %v368
      %v373 = vrsqrt.pop %v369
      %v374 = vrsqrt.pop %v370
      %v375 = vrsqrt.pop %v371
      %v376 = vmul.f32 %v360, %v372
      %v377 = vmul.f32 %v361, %v372
      %v378 = vmul.f32 %v362, %v373
      %v379 = vmul.f32 %v363, %v373
      %v380 = vmul.f32 %v364, %v374
      %v381 = vmul.f32 %v365, %v374
      %v382 = vmul.f32 %v366, %v375
      %v383 = vmul.f32 %v367, %v375
      %v384 = vld [vmem:[%s1] sm:$0xff]
      %v385 = vld [vmem:[%s1 + $0x8] sm:$0xff]
      %v386 = vld [vmem:[%s1 + $0x10] sm:$0xff]
      %v387 = vld [vmem:[%s1 + $0x18] sm:$0xff]
      %389 = vset.pattern.permute.xlu0 0
      %390 = vperm.xlu0 %389, %v384
      %v391 = vpop.permute.xlu0 %390
      %394 = vset.pattern.permute.xlu0 0
      %395 = vperm.xlu0 %394, %v385
      %v396 = vpop.permute.xlu0 %395
      %399 = vset.pattern.permute.xlu0 0
      %400 = vperm.xlu0 %399, %v386
      %v401 = vpop.permute.xlu0 %400
      %404 = vset.pattern.permute.xlu0 0
      %405 = vperm.xlu0 %404, %v387
      %v406 = vpop.permute.xlu0 %405
      %v408 = vmul.f32 %v376, %v391
      %v409 = vmul.f32 %v377, %v391
      %v410 = vmul.f32 %v378, %v396
      %v411 = vmul.f32 %v379, %v396
      %v412 = vmul.f32 %v380, %v401
      %v413 = vmul.f32 %v381, %v401
      %v414 = vmul.f32 %v382, %v406
      %v415 = vmul.f32 %v383, %v406
      %v416 = vld [vmem:[%s2] sm:$0xff]
      %v417 = vld [vmem:[%s2 + $0x8] sm:$0xff]
      %v418 = vld [vmem:[%s2 + $0x10] sm:$0xff]
      %v419 = vld [vmem:[%s2 + $0x18] sm:$0xff]
      %421 = vset.pattern.permute.xlu0 0
      %422 = vperm.xlu0 %421, %v416
      %v423 = vpop.permute.xlu0 %422
      %426 = vset.pattern.permute.xlu0 0
      %427 = vperm.xlu0 %426, %v417
      %v428 = vpop.permute.xlu0 %427
      %431 = vset.pattern.permute.xlu0 0
      %432 = vperm.xlu0 %431, %v418
      %v433 = vpop.permute.xlu0 %432
      %436 = vset.pattern.permute.xlu0 0
      %437 = vperm.xlu0 %436, %v419
      %v438 = vpop.permute.xlu0 %437
      %v440 = vadd.f32 %v408, %v423
      %v441 = vadd.f32 %v409, %v423
      %v442 = vadd.f32 %v410, %v428
      %v443 = vadd.f32 %v411, %v428
      %v444 = vadd.f32 %v412, %v433
      %v445 = vadd.f32 %v413, %v433
      %v446 = vadd.f32 %v414, %v438
      %v447 = vadd.f32 %v415, %v438
      %vm448 = vcmp.ge.f32.partialorder %v440, 0.0
      %vm449 = vcmp.ge.f32.partialorder %v441, 0.0
      %vm450 = vcmp.ge.f32.partialorder %v442, 0.0
      %vm451 = vcmp.ge.f32.partialorder %v443, 0.0
      %vm452 = vcmp.ge.f32.partialorder %v444, 0.0
      %vm453 = vcmp.ge.f32.partialorder %v445, 0.0
      %vm454 = vcmp.ge.f32.partialorder %v446, 0.0
      %vm455 = vcmp.ge.f32.partialorder %v447, 0.0
      %v456 = vmul.f32 %v440, 0.2
      %v457 = vmul.f32 %v441, 0.2
      %v458 = vmul.f32 %v442, 0.2
      %v459 = vmul.f32 %v443, 0.2
      %v460 = vmul.f32 %v444, 0.2
      %v461 = vmul.f32 %v445, 0.2
      %v462 = vmul.f32 %v446, 0.2
      %v463 = vmul.f32 %v447, 0.2
      %v464 = vsel %vm448, %v440, %v456
      %v465 = vsel %vm449, %v441, %v457
      %v466 = vsel %vm450, %v442, %v458
      %v467 = vsel %vm451, %v443, %v459
      %v468 = vsel %vm452, %v444, %v460
      %v469 = vsel %vm453, %v445, %v461
      %v470 = vsel %vm454, %v446, %v462
      %v471 = vsel %vm455, %v447, %v463
      %v472 = vlaneseq
      %v473 = vand.u32 %v472, 127
      %v474 = vadd.s32 %v473, 128
      %v475 = vcvt.s32.f32 %v473
      %v476 = vcvt.s32.f32 %v474
      %v477 = vadd.f32 %v475, 0.5
      %v478 = vadd.f32 %v476, 0.5
      %v479 = vmul.f32 %v477, 0.1
      %v480 = vmul.f32 %v478, 0.1
      %v481 = vfloor.f32 %v479
      %v482 = vfloor.f32 %v480
      %v483 = vmul.f32 %v481, 10.0
      %v484 = vmul.f32 %v482, 10.0
      %v485 = vsub.f32 %v475, %v483
      %v486 = vsub.f32 %v476, %v484
      %vm487 = vcmp.ge.f32.partialorder %v481, 1.0
      %vm488 = vcmp.ge.f32.partialorder %v482, 1.0
      %vm489 = vcmp.le.f32.partialorder %v481, 8.0
      %vm490 = vcmp.le.f32.partialorder %v482, 8.0
      %vm491 = vmand %vm487, %vm489
      %vm492 = vmand %vm488, %vm490
      %vm493 = vcmp.ge.f32.partialorder %v485, 1.0
      %vm494 = vcmp.ge.f32.partialorder %v486, 1.0
      %vm495 = vmand %vm491, %vm493
      %vm496 = vmand %vm492, %vm494
      %vm497 = vcmp.le.f32.partialorder %v485, 8.0
      %vm498 = vcmp.le.f32.partialorder %v486, 8.0
      %vm499 = vmand %vm495, %vm497
      %vm500 = vmand %vm496, %vm498
      %v501 = vsel %vm499, 1, 0
      %v502 = vsel %vm500, 1, 0
      %v503 = vcvt.s32.f32 %v501
      %v504 = vcvt.s32.f32 %v502
      %v505 = vmul.f32 %v464, %v503
      %v506 = vmul.f32 %v465, %v504
      %v507 = vmul.f32 %v466, %v503
      %v508 = vmul.f32 %v467, %v504
      %v509 = vmul.f32 %v468, %v503
      %v510 = vmul.f32 %v469, %v504
      %v511 = vmul.f32 %v470, %v503
      %v512 = vmul.f32 %v471, %v504
      %v513 = vpack.c.bf16 %v507, %v505
      %v514 = vpack.c.bf16 %v508, %v506
      %v515 = vpack.c.bf16 %v511, %v509
      %v516 = vpack.c.bf16 %v512, %v510
      %517 = vst [vmem:[#allocation2] sm:$0xff] %v513
      %518 = vst [vmem:[#allocation2 + $0x8] sm:$0xff] %v515
      %523 = vrot.lane.b32.xlu0 %v513, 127
      %v524 = vpop.permute.xlu0 %523
      %525 = vrot.lane.b32.xlu0 %v514, 127
      %v526 = vpop.permute.xlu0 %525
      %527 = vrot.lane.b32.xlu0 %v515, 127
      %v528 = vpop.permute.xlu0 %527
      %529 = vrot.lane.b32.xlu0 %v516, 127
      %v530 = vpop.permute.xlu0 %529
      %vm531 = vcmask 1039360
      %v532 = vsel %vm531, %v524, %v526
      %v533 = vsel %vm531, %v528, %v530
      %536 = vst [vmem:[#allocation2 + $0x10] sm:$0xff] %v532
      %537 = vst [vmem:[#allocation2 + $0x18] sm:$0xff] %v533
      %538 = vrot.lane.b32.xlu0 %v513, 126
      %v539 = vpop.permute.xlu0 %538
      %540 = vrot.lane.b32.xlu0 %v514, 126
      %v541 = vpop.permute.xlu0 %540
      %542 = vrot.lane.b32.xlu0 %v515, 126
      %v543 = vpop.permute.xlu0 %542
      %544 = vrot.lane.b32.xlu0 %v516, 126
      %v545 = vpop.permute.xlu0 %544
      %vm546 = vcmask 1031168
      %v547 = vsel %vm546, %v539, %v541
      %v548 = vsel %vm546, %v543, %v545
      %551 = vst [vmem:[#allocation2 + $0x20] sm:$0xff] %v547
      %552 = vst [vmem:[#allocation2 + $0x28] sm:$0xff] %v548
      %553 = vrot.lane.b32.xlu0 %v513, 118
      %v554 = vpop.permute.xlu0 %553
      %555 = vrot.lane.b32.xlu0 %v514, 118
      %v556 = vpop.permute.xlu0 %555
      %557 = vrot.lane.b32.xlu0 %v515, 118
      %v558 = vpop.permute.xlu0 %557
      %559 = vrot.lane.b32.xlu0 %v516, 118
      %v560 = vpop.permute.xlu0 %559
      %vm561 = vcmask 965632
      %v562 = vsel %vm561, %v554, %v556
      %v563 = vsel %vm561, %v558, %v560
      %566 = vst [vmem:[#allocation2 + $0x30] sm:$0xff] %v562
      %567 = vst [vmem:[#allocation2 + $0x38] sm:$0xff] %v563
      %568 = vrot.lane.b32.xlu0 %v513, 117
      %v569 = vpop.permute.xlu0 %568
      %570 = vrot.lane.b32.xlu0 %v514, 117
      %v571 = vpop.permute.xlu0 %570
      %572 = vrot.lane.b32.xlu0 %v515, 117
      %v573 = vpop.permute.xlu0 %572
      %574 = vrot.lane.b32.xlu0 %v516, 117
      %v575 = vpop.permute.xlu0 %574
      %vm576 = vcmask 957440
      %v577 = vsel %vm576, %v569, %v571
      %v578 = vsel %vm576, %v573, %v575
      %581 = vst [vmem:[#allocation2 + $0x40] sm:$0xff] %v577
      %582 = vst [vmem:[#allocation2 + $0x48] sm:$0xff] %v578
      %583 = vrot.lane.b32.xlu0 %v513, 116
      %v584 = vpop.permute.xlu0 %583
      %585 = vrot.lane.b32.xlu0 %v514, 116
      %v586 = vpop.permute.xlu0 %585
      %587 = vrot.lane.b32.xlu0 %v515, 116
      %v588 = vpop.permute.xlu0 %587
      %589 = vrot.lane.b32.xlu0 %v516, 116
      %v590 = vpop.permute.xlu0 %589
      %vm591 = vcmask 949248
      %v592 = vsel %vm591, %v584, %v586
      %v593 = vsel %vm591, %v588, %v590
      %596 = vst [vmem:[#allocation2 + $0x50] sm:$0xff] %v592
      %597 = vst [vmem:[#allocation2 + $0x58] sm:$0xff] %v593
      %598 = vrot.lane.b32.xlu0 %v513, 108
      %v599 = vpop.permute.xlu0 %598
      %600 = vrot.lane.b32.xlu0 %v514, 108
      %v601 = vpop.permute.xlu0 %600
      %602 = vrot.lane.b32.xlu0 %v515, 108
      %v603 = vpop.permute.xlu0 %602
      %604 = vrot.lane.b32.xlu0 %v516, 108
      %v605 = vpop.permute.xlu0 %604
      %vm606 = vcmask 883712
      %v607 = vsel %vm606, %v599, %v601
      %v608 = vsel %vm606, %v603, %v605
      %611 = vst [vmem:[#allocation2 + $0x60] sm:$0xff] %v607
      %612 = vst [vmem:[#allocation2 + $0x68] sm:$0xff] %v608
      %613 = vrot.lane.b32.xlu0 %v513, 107
      %v614 = vpop.permute.xlu0 %613
      %615 = vrot.lane.b32.xlu0 %v514, 107
      %v616 = vpop.permute.xlu0 %615
      %617 = vrot.lane.b32.xlu0 %v515, 107
      %v618 = vpop.permute.xlu0 %617
      %619 = vrot.lane.b32.xlu0 %v516, 107
      %v620 = vpop.permute.xlu0 %619
      %vm621 = vcmask 875520
      %v622 = vsel %vm621, %v614, %v616
      %v623 = vsel %vm621, %v618, %v620
      %626 = vst [vmem:[#allocation2 + $0x70] sm:$0xff] %v622
      %627 = vst [vmem:[#allocation2 + $0x78] sm:$0xff] %v623
      %628 = vrot.lane.b32.xlu0 %v513, 106
      %v629 = vpop.permute.xlu0 %628
      %630 = vrot.lane.b32.xlu0 %v514, 106
      %v631 = vpop.permute.xlu0 %630
      %632 = vrot.lane.b32.xlu0 %v515, 106
      %v633 = vpop.permute.xlu0 %632
      %634 = vrot.lane.b32.xlu0 %v516, 106
      %v635 = vpop.permute.xlu0 %634
      %vm636 = vcmask 867328
      %v637 = vsel %vm636, %v629, %v631
      %v638 = vsel %vm636, %v633, %v635
      %641 = vst [vmem:[#allocation2 + $0x80] sm:$0xff] %v637
      %642 = vst [vmem:[#allocation2 + $0x88] sm:$0xff] %v638
      %v643 = vld [vmem:[%s3] sm:$0xff]
      %v644 = vld [vmem:[%s3 + $0x8] sm:$0xf]
      %v645 = vld [vmem:[%s3 + $0xc] sm:$0xff]
      %v646 = vld [vmem:[%s3 + $0x14] sm:$0xf]
      %v647 = vld [vmem:[%s3 + $0x18] sm:$0xff]
      %v648 = vld [vmem:[%s3 + $0x20] sm:$0xf]
      %v649 = vld [vmem:[%s3 + $0x24] sm:$0xff]
      %v650 = vld [vmem:[%s3 + $0x2c] sm:$0xf]
      %v651 = vld [vmem:[%s3 + $0x30] sm:$0xff]
      %v652 = vld [vmem:[%s3 + $0x38] sm:$0xf]
      %v653 = vld [vmem:[%s3 + $0x3c] sm:$0xff]
      %v654 = vld [vmem:[%s3 + $0x44] sm:$0xf]
      %v655 = vld [vmem:[%s3 + $0x48] sm:$0xff]
      %v656 = vld [vmem:[%s3 + $0x50] sm:$0xf]
      %v657 = vld [vmem:[%s3 + $0x54] sm:$0xff]
      %v658 = vld [vmem:[%s3 + $0x5c] sm:$0xf]
      %v659 = vld [vmem:[#allocation2] sm:$0xff]
      %v660 = vld [vmem:[#allocation2 + $0x8] sm:$0xff]
      %v661 = vld [vmem:[#allocation2 + $0x10] sm:$0xff]
      %v662 = vld [vmem:[#allocation2 + $0x18] sm:$0xff]
      %v663 = vld [vmem:[#allocation2 + $0x20] sm:$0xff]
      %v664 = vld [vmem:[#allocation2 + $0x28] sm:$0xff]
      %v665 = vld [vmem:[#allocation2 + $0x30] sm:$0xff]
      %v666 = vld [vmem:[#allocation2 + $0x38] sm:$0xff]
      %v667 = vld [vmem:[#allocation2 + $0x40] sm:$0xff]
      %v668 = vld [vmem:[#allocation2 + $0x48] sm:$0xff]
      %v669 = vld [vmem:[#allocation2 + $0x50] sm:$0xff]
      %v670 = vld [vmem:[#allocation2 + $0x58] sm:$0xff]
      %v671 = vld [vmem:[#allocation2 + $0x60] sm:$0xff]
      %v672 = vld [vmem:[#allocation2 + $0x68] sm:$0xff]
      %v673 = vld [vmem:[#allocation2 + $0x70] sm:$0xff]
      %v674 = vld [vmem:[#allocation2 + $0x78] sm:$0xff]
      %v675 = vld [vmem:[#allocation2 + $0x80] sm:$0xff]
      %v676 = vld [vmem:[#allocation2 + $0x88] sm:$0xff]
      %v677 = vld [vmem:[%s4] sm:$0xff]
      %v678 = vld [vmem:[%s4 + $0x8] sm:$0xff]
      %v679 = vld [vmem:[%s4 + $0x10] sm:$0xff]
      %v680 = vld [vmem:[%s4 + $0x18] sm:$0xff]
      %v681 = vld [vmem:[%s4 + $0x20] sm:$0xff]
      %v682 = vld [vmem:[%s4 + $0x28] sm:$0xff]
      %v683 = vld [vmem:[%s4 + $0x30] sm:$0xff]
      %v684 = vld [vmem:[%s4 + $0x38] sm:$0xff]
      %686 = vset.pattern.permute.xlu0 0
      %687 = vperm.xlu0 %686, %v677
      %v688 = vpop.permute.xlu0 %687
      %691 = vset.pattern.permute.xlu0 0
      %692 = vperm.xlu0 %691, %v678
      %v693 = vpop.permute.xlu0 %692
      %696 = vset.pattern.permute.xlu0 0
      %697 = vperm.xlu0 %696, %v679
      %v698 = vpop.permute.xlu0 %697
      %701 = vset.pattern.permute.xlu0 0
      %702 = vperm.xlu0 %701, %v680
      %v703 = vpop.permute.xlu0 %702
      %706 = vset.pattern.permute.xlu0 0
      %707 = vperm.xlu0 %706, %v681
      %v708 = vpop.permute.xlu0 %707
      %711 = vset.pattern.permute.xlu0 0
      %712 = vperm.xlu0 %711, %v682
      %v713 = vpop.permute.xlu0 %712
      %716 = vset.pattern.permute.xlu0 0
      %717 = vperm.xlu0 %716, %v683
      %v718 = vpop.permute.xlu0 %717
      %721 = vset.pattern.permute.xlu0 0
      %722 = vperm.xlu0 %721, %v684
      %v723 = vpop.permute.xlu0 %722
      %v741 = vunpack.c.l.b16 %v643
      %v742 = vunpack.c.h.b16 %v643
      %v743 = vunpack.c.l.b16 %v644
      %v744 = vunpack.c.l.b16 %v645
      %v745 = vunpack.c.h.b16 %v645
      %v746 = vunpack.c.l.b16 %v646
      %v747 = vunpack.c.l.b16 %v647
      %v748 = vunpack.c.h.b16 %v647
      %v749 = vunpack.c.l.b16 %v648
      %v750 = vunpack.c.l.b16 %v649
      %v751 = vunpack.c.h.b16 %v649
      %v752 = vunpack.c.l.b16 %v650
      %v753 = vunpack.c.l.b16 %v651
      %v754 = vunpack.c.h.b16 %v651
      %v755 = vunpack.c.l.b16 %v652
      %v756 = vunpack.c.l.b16 %v653
      %v757 = vunpack.c.h.b16 %v653
      %v758 = vunpack.c.l.b16 %v654
      %v759 = vunpack.c.l.b16 %v655
      %v760 = vunpack.c.h.b16 %v655
      %v761 = vunpack.c.l.b16 %v656
      %v762 = vunpack.c.l.b16 %v657
      %v763 = vunpack.c.h.b16 %v657
      %v764 = vunpack.c.l.b16 %v658
      %v765 = vpack.c.b16 %v744, %v741
      %v766 = vpack.c.b16 %v745, %v742
      %v767 = vpack.c.b16 %v746, %v743
      %v768 = vpack.c.b16 %v750, %v747
      %v769 = vpack.c.b16 %v751, %v748
      %v770 = vpack.c.b16 %v752, %v749
      %v771 = vpack.c.b16 %v756, %v753
      %v772 = vpack.c.b16 %v757, %v754
      %v773 = vpack.c.b16 %v758, %v755
      %v774 = vpack.c.b16 %v762, %v759
      %v775 = vpack.c.b16 %v763, %v760
      %v776 = vpack.c.b16 %v764, %v761
      %vm785 = vcmask 261120
      %v787 = vsel %vm785, %v767, 0
      %v790 = vsel %vm785, %v770, 0
      %v793 = vsel %vm785, %v773, 0
      %v796 = vsel %vm785, %v776, 0
      %798 = vmatprep.subr.bf16.mxu0 0
      %799 = vmatpush1.bf16.msra.mxu0 %v659
      %800 = vmatprep.subr.bf16.mxu0 0
      %801 = vmatpush1.bf16.msra.mxu0 %v660
      %802 = vmatprep.subr.bf16.mxu0 0
      %803 = vmatpush1.bf16.msra.mxu0 %v661
      %804 = vmatprep.subr.bf16.mxu0 0
      %805 = vmatpush1.bf16.msra.mxu0 %v662
      %806 = vmatprep.subr.bf16.mxu0 0
      %807 = vmatpush1.bf16.msra.mxu0 %v663
      %808 = vmatprep.subr.bf16.mxu0 0
      %809 = vmatpush1.bf16.msra.mxu0 %v664
      %810 = vmatprep.subr.bf16.mxu0 0
      %811 = vmatpush1.bf16.msra.mxu0 %v665
      %812 = vmatprep.subr.bf16.mxu0 0
      %813 = vmatpush1.bf16.msra.mxu0 %v666
      %814 = vmatprep.subr.bf16.mxu0 0
      %815 = vmatpush1.bf16.msra.mxu0 %v667
      %816 = vmatprep.subr.bf16.mxu0 0
      %817 = vmatpush1.bf16.msra.mxu0 %v668
      %818 = vmatprep.subr.bf16.mxu0 0
      %819 = vmatpush1.bf16.msra.mxu0 %v669
      %820 = vmatprep.subr.bf16.mxu0 0
      %821 = vmatpush1.bf16.msra.mxu0 %v670
      %822 = vmatprep.subr.bf16.mxu0 0
      %823 = vmatpush1.bf16.msra.mxu0 %v671
      %824 = vmatprep.subr.bf16.mxu0 0
      %825 = vmatpush1.bf16.msra.mxu0 %v672
      %826 = vmatprep.subr.bf16.mxu0 0
      %827 = vmatpush1.bf16.msra.mxu0 %v673
      %828 = vmatprep.subr.bf16.mxu0 0
      %829 = vmatpush1.bf16.msra.mxu0 %v674
      %830 = vmatprep.mubr.bf16.mxu0 %v766
      %831 = vmatmul.mubr.bf16.gmra.mrb[0].mxu0 %v765
      %v832 = vpop.f32.mrb[0].mxu0
      %v833 = vadd.f32 %v688, %v832
      %v834 = vpop.f32.mrb[0].mxu0
      %v835 = vpop.f32.mrb[0].mxu0
      %v836 = vadd.f32 %v693, %v835
      %v837 = vpop.f32.mrb[0].mxu0
      %838 = vmatprep.mubr.bf16.mxu0 %v769
      %839 = vmatmul.mubr.bf16.gmra.mrb[0].mxu0 %v768
      %v840 = vpop.f32.mrb[0].mxu0
      %v841 = vadd.f32 %v698, %v840
      %v842 = vpop.f32.mrb[0].mxu0
      %v843 = vpop.f32.mrb[0].mxu0
      %v844 = vadd.f32 %v703, %v843
      %v845 = vpop.f32.mrb[0].mxu0
      %846 = vmatprep.mubr.bf16.mxu0 %v772
      %847 = vmatmul.mubr.bf16.gmra.mrb[0].mxu0 %v771
      %v848 = vpop.f32.mrb[0].mxu0
      %v849 = vadd.f32 %v708, %v848
      %v850 = vpop.f32.mrb[0].mxu0
      %v851 = vpop.f32.mrb[0].mxu0
      %v852 = vadd.f32 %v713, %v851
      %v853 = vpop.f32.mrb[0].mxu0
      %854 = vmatprep.mubr.bf16.mxu0 %v775
      %855 = vmatmul.mubr.bf16.gmra.mrb[0].mxu0 %v774
      %v856 = vpop.f32.mrb[0].mxu0
      %v857 = vadd.f32 %v718, %v856
      %v858 = vpop.f32.mrb[0].mxu0
      %v859 = vpop.f32.mrb[0].mxu0
      %v860 = vadd.f32 %v723, %v859
      %v861 = vpop.f32.mrb[0].mxu0
      %862 = vdwg.mxu0
      %863 = vmatprep.subr.bf16.mxu0 0
      %864 = vmatpush1.bf16.msra.mxu0 %v675
      %865 = vmatprep.subr.bf16.mxu0 0
      %866 = vmatpush1.bf16.msra.mxu0 %v676
      %867 = vmatprep.subr.bf16.mxu0 0
      %868 = vmatpush1.bf16.msra.mxu0 0
      %869 = vmatprep.subr.bf16.mxu0 0
      %870 = vmatpush1.bf16.msra.mxu0 0
      %871 = vmatprep.subr.bf16.mxu0 0
      %872 = vmatpush1.bf16.msra.mxu0 0
      %873 = vmatprep.subr.bf16.mxu0 0
      %874 = vmatpush1.bf16.msra.mxu0 0
      %875 = vmatprep.subr.bf16.mxu0 0
      %876 = vmatpush1.bf16.msra.mxu0 0
      %877 = vmatprep.subr.bf16.mxu0 0
      %878 = vmatpush1.bf16.msra.mxu0 0
      %879 = vmatprep.subr.bf16.mxu0 0
      %880 = vmatpush1.bf16.msra.mxu0 0
      %881 = vmatprep.subr.bf16.mxu0 0
      %882 = vmatpush1.bf16.msra.mxu0 0
      %883 = vmatprep.subr.bf16.mxu0 0
      %884 = vmatpush1.bf16.msra.mxu0 0
      %885 = vmatprep.subr.bf16.mxu0 0
      %886 = vmatpush1.bf16.msra.mxu0 0
      %887 = vmatprep.subr.bf16.mxu0 0
      %888 = vmatpush1.bf16.msra.mxu0 0
      %889 = vmatprep.subr.bf16.mxu0 0
      %890 = vmatpush1.bf16.msra.mxu0 0
      %891 = vmatprep.subr.bf16.mxu0 0
      %892 = vmatpush1.bf16.msra.mxu0 0
      %893 = vmatprep.subr.bf16.mxu0 0
      %894 = vmatpush1.bf16.msra.mxu0 0
      %895 = vmatprep.mubr.bf16.mxu0 0
      %896 = vmatmul.mubr.bf16.gmra.mrb[0].mxu0 %v787
      %v897 = vpop.f32.mrb[0].mxu0
      %v898 = vadd.f32 %v833, %v897
      %v899 = vpop.f32.mrb[0].mxu0
      %v900 = vpop.f32.mrb[0].mxu0
      %v901 = vadd.f32 %v836, %v900
      %v902 = vpop.f32.mrb[0].mxu0
      %903 = vmatprep.mubr.bf16.mxu0 0
      %904 = vmatmul.mubr.bf16.gmra.mrb[0].mxu0 %v790
      %v905 = vpop.f32.mrb[0].mxu0
      %v906 = vadd.f32 %v841, %v905
      %v907 = vpop.f32.mrb[0].mxu0
      %v908 = vpop.f32.mrb[0].mxu0
      %v909 = vadd.f32 %v844, %v908
      %v910 = vpop.f32.mrb[0].mxu0
      %911 = vmatprep.mubr.bf16.mxu0 0
      %912 = vmatmul.mubr.bf16.gmra.mrb[0].mxu0 %v793
      %v913 = vpop.f32.mrb[0].mxu0
      %v914 = vadd.f32 %v849, %v913
      %v915 = vpop.f32.mrb[0].mxu0
      %v916 = vpop.f32.mrb[0].mxu0
      %v917 = vadd.f32 %v852, %v916
      %v918 = vpop.f32.mrb[0].mxu0
      %919 = vmatprep.mubr.bf16.mxu0 0
      %920 = vmatmul.mubr.bf16.gmra.mrb[0].mxu0 %v796
      %v921 = vpop.f32.mrb[0].mxu0
      %v922 = vadd.f32 %v857, %v921
      %v923 = vpop.f32.mrb[0].mxu0
      %v924 = vpop.f32.mrb[0].mxu0
      %v925 = vadd.f32 %v860, %v924
      %v926 = vpop.f32.mrb[0].mxu0
      %927 = vdwg.mxu0
      %v928 = vld [vmem:[%s6] sm:$0xf]
      %v929 = vld [vmem:[%s6 + $0x4] sm:$0xf]
      %v930 = vld [vmem:[%s6 + $0x8] sm:$0xf]
      %v931 = vld [vmem:[%s6 + $0xc] sm:$0xf]
      %v932 = vld [vmem:[%s6 + $0x10] sm:$0xf]
      %v933 = vld [vmem:[%s6 + $0x14] sm:$0xf]
      %v934 = vld [vmem:[%s6 + $0x18] sm:$0xf]
      %v935 = vld [vmem:[%s6 + $0x1c] sm:$0xf]
      %v936 = vld [vmem:[%s293] sm:$0xff]
      %v937 = vld [vmem:[%s293 + $0x8] sm:$0xff]
      %v938 = vld [vmem:[%s293 + $0x10] sm:$0xff]
      %v939 = vld [vmem:[%s293 + $0x18] sm:$0xff]
      %v940 = vpack.c.bf16 %v937, %v936
      %v941 = vpack.c.bf16 %v939, %v938
      %v950 = vunpack.c.l.b16 %v928
      %v951 = vunpack.c.l.b16 %v929
      %v952 = vunpack.c.l.b16 %v930
      %v953 = vunpack.c.l.b16 %v931
      %v954 = vunpack.c.l.b16 %v932
      %v955 = vunpack.c.l.b16 %v933
      %v956 = vunpack.c.l.b16 %v934
      %v957 = vunpack.c.l.b16 %v935
      %v958 = vpack.c.b16 %v951, %v950
      %v959 = vpack.c.b16 %v953, %v952
      %v960 = vpack.c.b16 %v955, %v954
      %v961 = vpack.c.b16 %v957, %v956
      %v963 = vsel %vm785, %v958, 0
      %v966 = vsel %vm785, %v959, 0
      %v969 = vsel %vm785, %v960, 0
      %v972 = vsel %vm785, %v961, 0
      %974 = vmatprep.subr.bf16.mxu0 0
      %975 = vmatpush1.bf16.msra.mxu0 %v940
      %976 = vmatprep.subr.bf16.mxu0 0
      %977 = vmatpush1.bf16.msra.mxu0 %v941
      %978 = vmatprep.subr.bf16.mxu0 0
      %979 = vmatpush1.bf16.msra.mxu0 0
      %980 = vmatprep.subr.bf16.mxu0 0
      %981 = vmatpush1.bf16.msra.mxu0 0
      %982 = vmatprep.subr.bf16.mxu0 0
      %983 = vmatpush1.bf16.msra.mxu0 0
      %984 = vmatprep.subr.bf16.mxu0 0
      %985 = vmatpush1.bf16.msra.mxu0 0
      %986 = vmatprep.subr.bf16.mxu0 0
      %987 = vmatpush1.bf16.msra.mxu0 0
      %988 = vmatprep.subr.bf16.mxu0 0
      %989 = vmatpush1.bf16.msra.mxu0 0
      %990 = vmatprep.subr.bf16.mxu0 0
      %991 = vmatpush1.bf16.msra.mxu0 0
      %992 = vmatprep.subr.bf16.mxu0 0
      %993 = vmatpush1.bf16.msra.mxu0 0
      %994 = vmatprep.subr.bf16.mxu0 0
      %995 = vmatpush1.bf16.msra.mxu0 0
      %996 = vmatprep.subr.bf16.mxu0 0
      %997 = vmatpush1.bf16.msra.mxu0 0
      %998 = vmatprep.subr.bf16.mxu0 0
      %999 = vmatpush1.bf16.msra.mxu0 0
      %1000 = vmatprep.subr.bf16.mxu0 0
      %1001 = vmatpush1.bf16.msra.mxu0 0
      %1002 = vmatprep.subr.bf16.mxu0 0
      %1003 = vmatpush1.bf16.msra.mxu0 0
      %1004 = vmatprep.subr.bf16.mxu0 0
      %1005 = vmatpush1.bf16.msra.mxu0 0
      %1006 = vmatprep.mubr.bf16.mxu0 0
      %1007 = vmatmul.mubr.bf16.gmra.mrb[0].mxu0 %v963
      %v1008 = vpop.f32.mrb[0].mxu0
      %v1009 = vadd.f32 0.0, %v1008
      %v1010 = vpop.f32.mrb[0].mxu0
      %v1011 = vpop.f32.mrb[0].mxu0
      %v1012 = vadd.f32 0.0, %v1011
      %v1013 = vpop.f32.mrb[0].mxu0
      %1014 = vmatprep.mubr.bf16.mxu0 0
      %1015 = vmatmul.mubr.bf16.gmra.mrb[0].mxu0 %v966
      %v1016 = vpop.f32.mrb[0].mxu0
      %v1017 = vadd.f32 0.0, %v1016
      %v1018 = vpop.f32.mrb[0].mxu0
      %v1019 = vpop.f32.mrb[0].mxu0
      %v1020 = vadd.f32 0.0, %v1019
      %v1021 = vpop.f32.mrb[0].mxu0
      %1022 = vmatprep.mubr.bf16.mxu0 0
      %1023 = vmatmul.mubr.bf16.gmra.mrb[0].mxu0 %v969
      %v1024 = vpop.f32.mrb[0].mxu0
      %v1025 = vadd.f32 0.0, %v1024
      %v1026 = vpop.f32.mrb[0].mxu0
      %v1027 = vpop.f32.mrb[0].mxu0
      %v1028 = vadd.f32 0.0, %v1027
      %v1029 = vpop.f32.mrb[0].mxu0
      %1030 = vmatprep.mubr.bf16.mxu0 0
      %1031 = vmatmul.mubr.bf16.gmra.mrb[0].mxu0 %v972
      %v1032 = vpop.f32.mrb[0].mxu0
      %v1033 = vadd.f32 0.0, %v1032
      %v1034 = vpop.f32.mrb[0].mxu0
      %v1035 = vpop.f32.mrb[0].mxu0
      %v1036 = vadd.f32 0.0, %v1035
      %v1037 = vpop.f32.mrb[0].mxu0
      %1038 = vdwg.mxu0
      %v1039 = vadd.f32 %v898, %v1009
      %v1040 = vadd.f32 %v901, %v1012
      %v1041 = vadd.f32 %v906, %v1017
      %v1042 = vadd.f32 %v909, %v1020
      %v1043 = vadd.f32 %v914, %v1025
      %v1044 = vadd.f32 %v917, %v1028
      %v1045 = vadd.f32 %v922, %v1033
      %v1046 = vadd.f32 %v925, %v1036
      %v1047 = vmul.f32 %v1039, 0.70710677
      %v1048 = vmul.f32 %v1040, 0.70710677
      %v1049 = vmul.f32 %v1041, 0.70710677
      %v1050 = vmul.f32 %v1042, 0.70710677
      %v1051 = vmul.f32 %v1043, 0.70710677
      %v1052 = vmul.f32 %v1044, 0.70710677
      %v1053 = vmul.f32 %v1045, 0.70710677
      %v1054 = vmul.f32 %v1046, 0.70710677
      %1055 = vst [vmem:[%s298] sm:$0xff] %v1047
      %1056 = vst [vmem:[%s298 + $0x8] sm:$0xff] %v1048
      %1057 = vst [vmem:[%s298 + $0x10] sm:$0xff] %v1049
      %1058 = vst [vmem:[%s298 + $0x18] sm:$0xff] %v1050
      %1059 = vst [vmem:[%s298 + $0x20] sm:$0xff] %v1051
      %1060 = vst [vmem:[%s298 + $0x28] sm:$0xff] %v1052
      %1061 = vst [vmem:[%s298 + $0x30] sm:$0xff] %v1053
      %1062 = vst [vmem:[%s298 + $0x38] sm:$0xff] %v1054
      %p1063 = scmp.lt.s32.totalorder %s18, 1
      %s1064 = scalar_select %p1063, %s18, 1
      %s1065 = smul.addr %s1064, 8
      %s1066 = smul.addr %s1065, 8
      %s1067 = scalar_lea.vmem %s7, %s1066
      // Predicated region
      $region49: #{_lambda_.5} parent=47 // pred_check
        %p1068 = pneg %p193
      $region50: #{_lambda_.5} parent=47 // pred_check_branch
        %1070 = sbr.rel (%p1068) target = $region52
      $region51: #{_lambda_.5} parent=47 // pred_region
        _
      $region52: #{_lambda_.5} parent=47 // pred_fallthru
        _
    $region48: #{_lambda_.5} parent=5 // pred_fallthru
      _
    %p1071 = scmp.le.s32.totalorder 2, %s13
    // Predicated region
    $region53: #{_lambda_.5} parent=5 // pred_check
      %p1072 = pneg %p1071
    $region54: #{_lambda_.5} parent=5 // pred_check_branch
      %1074 = sbr.rel (%p1072) target = $region56
    $region55: #{_lambda_.5} parent=5 // pred_region
      %s1075 = ssub.s32 %s13, 2
      // Predicated region
      $region57: #{_lambda_.5} parent=55 // pred_check
        %p1076 = pneg %p199
      $region58: #{_lambda_.5} parent=55 // pred_check_branch
        %1078 = sbr.rel (%p1076) target = $region60
      $region59: #{_lambda_.5} parent=55 // pred_region
        %p1079 = scmp.lt.s32.totalorder %s19, 1
        %s1080 = scalar_select %p1079, %s19, 1
        %s1081 = smul.addr %s1080, 8
        %s1082 = smul.addr %s1081, 8
        %s1083 = scalar_lea.vmem %s7, %s1082
      $region60: #{_lambda_.5} parent=55 // pred_fallthru
        _
    $region56: #{_lambda_.5} parent=5 // pred_fallthru
      _
  $region6: #{_lambda_.5} parent=0 // loop_footer
    %s17 = sadd.s32 1, %s13
  $region7: #{_lambda_.5} parent=0 // loop_footer_branch
    %12 = sbr.rel target = $region3
  $region8: #{_lambda_.5} parent=0 // loop_exit
    _

</llo_original>
